<compile_context>
chip_gen: v7x
topology: tpu7x:2x2x1
jax: 0.10.0
libtpu: 0.0.40
codegen_flags: <defaults>
</compile_context>

<pallas_src>
import math
from functools import partial

import jax
import jax.numpy as jnp
from jax.experimental import pallas as pl
from jax.experimental.pallas import tpu as pltpu


def _round_up(x, m):
    return ((x + m - 1) // m) * m


def _pick_time_chunk(seq_len, target):
    t = max(1, min(seq_len, target))
    while seq_len % t:
        t -= 1
    return t


# --------------------------- dense (matmul) kernel -------------------------- #
# One-shot  out = x @ w + b, used for the non-recurrent matmuls (layer-0 input
# projection over all timesteps and the final vocab projection).  Grid is
# (M tiles, N tiles) with the full (padded) K resident per block; both axes are
# "parallel" so megacore / v7x dual-TC can shard them.

def _dense_kernel(x_ref, w_ref, b_ref, o_ref):
    o_ref[...] = (jnp.dot(x_ref[...], w_ref[...],
                          preferred_element_type=jnp.float32)
                  + b_ref[...]).astype(o_ref.dtype)


def pallas_dense(x, w, b, *, block_m=256, block_n=512):
    """x: (M, K), w: (K, N), b: (N,) -> (M, N) float32, padded/tiled internally."""
    M, K = x.shape
    Kw, N = w.shape
    assert K == Kw
    k_p = _round_up(K, 128)                       # lane-dense contraction dim
    m8 = _round_up(M, 8)
    tm = min(block_m, m8)
    m_p = _round_up(m8, tm)
    n128 = _round_up(N, 128)
    tn = min(block_n, n128)
    n_p = _round_up(n128, tn)

    x_p = jnp.pad(x.astype(jnp.float32), ((0, m_p - M), (0, k_p - K)))
    w_p = jnp.pad(w.astype(jnp.float32), ((0, k_p - K), (0, n_p - N)))
    b_p = jnp.pad(b.astype(jnp.float32).reshape(1, N), ((0, 0), (0, n_p - N)))

    out = pl.pallas_call(
        _dense_kernel,
        out_shape=jax.ShapeDtypeStruct((m_p, n_p), jnp.float32),
        grid_spec=pltpu.PrefetchScalarGridSpec(
            num_scalar_prefetch=0,
            grid=(m_p // tm, n_p // tn),
            in_specs=[
                pl.BlockSpec((tm, k_p), lambda i, j: (i, 0)),
                pl.BlockSpec((k_p, tn), lambda i, j: (0, j)),
                pl.BlockSpec((1, tn), lambda i, j: (0, j)),
            ],
            out_specs=pl.BlockSpec((tm, tn), lambda i, j: (i, j)),
        ),
        compiler_params=pltpu.CompilerParams(
            dimension_semantics=("parallel", "parallel")),
    )(x_p, w_p, b_p)
    return out[:M, :N]


# --------------------------- recurrent LSTM kernel --------------------------- #

def lstm_recurrent_kernel(g0_ref,     # (T, Bp, 4Hp) precomputed x @ Wih0 + b0
                          whh0_ref,   # (Hp, 4Hp)
                          wih1_ref,   # (Hp, 4Hp)
                          whh1_ref,   # (Hp, 4Hp)
                          b1_ref,     # (1, 4Hp)
                          h0_ref,     # (L, Bp, Hp) initial hidden
                          c0_ref,     # (L, Bp, Hp) initial cell
                          hseq_ref,   # (T, Bp, Hp) layer-1 hidden per step (out)
                          hn_ref,     # (L, Bp, Hp) carried / final hidden (out)
                          cn_ref):    # (L, Bp, Hp) carried / final cell  (out)
    hp = hn_ref.shape[-1]
    t_chunk = g0_ref.shape[0]

    @pl.when(pl.program_id(0) == 0)
    def _():
        hn_ref[...] = h0_ref[...]
        cn_ref[...] = c0_ref[...]

    # Resident weights: load once per grid step, hoisted out of the time loop.
    whh0 = whh0_ref[...]
    wih1 = wih1_ref[...]
    whh1 = whh1_ref[...]
    b1 = b1_ref[...]

    def cell(gates, c_prev):
        # Gate columns pre-ordered (i, f, o, g): one sigmoid slab, one tanh slab,
        # all slices lane-aligned (Hp is a multiple of 128).
        ifo = jax.nn.sigmoid(gates[:, :3 * hp])
        g = jnp.tanh(gates[:, 3 * hp:])
        i = ifo[:, :hp]
        f = ifo[:, hp:2 * hp]
        o = ifo[:, 2 * hp:]
        c_new = f * c_prev + i * g
        h_new = o * jnp.tanh(c_new)
        return h_new, c_new

    def step(t, carry):
        del carry
        # ---- layer 0: input contribution precomputed; only recurrent matmul here.
        gates0 = g0_ref[t] + jnp.dot(hn_ref[0], whh0,
                                     preferred_element_type=jnp.float32)
        h0_new, c0_new = cell(gates0, cn_ref[0])
        hn_ref[0] = h0_new
        cn_ref[0] = c0_new

        # ---- layer 1
        gates1 = (jnp.dot(h0_new, wih1, preferred_element_type=jnp.float32)
                  + jnp.dot(hn_ref[1], whh1, preferred_element_type=jnp.float32)
                  + b1)
        h1_new, c1_new = cell(gates1, cn_ref[1])
        hn_ref[1] = h1_new
        cn_ref[1] = c1_new

        hseq_ref[t] = h1_new
        return 0

    jax.lax.fori_loop(0, t_chunk, step, 0, unroll=True)


# ------------------------------ weight prep ---------------------------------- #

def _prep_gate_matrix(w, h_pad, in_pad):
    """PyTorch (4H, in) gate-major weight -> (in_pad, 4*h_pad): gate order
    (i, f, g, o) -> (i, f, o, g), zero-padded for lane/sublane density."""
    four_h, in_dim = w.shape
    h = four_h // 4
    gi, gf, gg, go = jnp.split(w, 4, axis=0)
    pad = lambda blk: jnp.pad(blk, ((0, h_pad - h), (0, in_pad - in_dim)))
    return jnp.concatenate([pad(gi), pad(gf), pad(go), pad(gg)], axis=0).T


def _prep_gate_bias(b, h_pad):
    h = b.shape[0] // 4
    bi, bf, bg, bo = jnp.split(b, 4)
    pad = lambda v: jnp.pad(v, (0, h_pad - h))
    return jnp.concatenate([pad(bi), pad(bf), pad(bo), pad(bg)])


# ------------------------------ JAX wrapper ----------------------------------- #

def lstm_language_model_forward(token_ids, params, hidden=None, *, seq_chunk=16):
    """Matches LSTMLanguageModel.forward: returns (logits, (h_n, c_n))."""
    emb_table = params["embedding"]                      # (V, E)
    B, S = token_ids.shape
    V, E = emb_table.shape
    H = params["w_hh0"].shape[1]
    L = 2

    h_pad = _round_up(H, 128)                            # lane-dense hidden
    b_pad = _round_up(max(B, 8), 8)                      # sublane-dense batch
    G = 4 * h_pad
    T = _pick_time_chunk(S, seq_chunk)                   # timesteps per grid step

    # ---- glue: embedding gather, time-major layout -------------------------
    x_tm = jnp.transpose(jnp.take(emb_table, token_ids, axis=0), (1, 0, 2))  # (S,B,E)

    # ---- weight prep (gate reorder + padding), once, outside the kernels ----
    wih0 = _prep_gate_matrix(params["w_ih0"], h_pad, E)          # (E, G)
    whh0 = _prep_gate_matrix(params["w_hh0"], h_pad, h_pad)      # (Hp, G)
    wih1 = _prep_gate_matrix(params["w_ih1"], h_pad, h_pad)      # (Hp, G)
    whh1 = _prep_gate_matrix(params["w_hh1"], h_pad, h_pad)      # (Hp, G)
    b0 = _prep_gate_bias(params["b_ih0"] + params["b_hh0"], h_pad)           # (G,)
    b1 = _prep_gate_bias(params["b_ih1"] + params["b_hh1"], h_pad).reshape(1, G)
    # TODO(synk): at production sizes, cast wih/whh/wfc and the gate stream to
    # bf16 (keep f32 accumulation + f32 state) to halve weight DMA/VMEM.

    # ---- hoisted layer-0 input projection for ALL timesteps (one big matmul)
    g0_flat = pallas_dense(x_tm.reshape(S * B, E), wih0, b0)     # (S*B, G)
    g0 = jnp.pad(g0_flat.reshape(S, B, G), ((0, 0), (0, b_pad - B), (0, 0)))

    # ---- initial state -------------------------------------------------------
    if hidden is None:
        h0_p = jnp.zeros((L, b_pad, h_pad), jnp.float32)
        c0_p = jnp.zeros((L, b_pad, h_pad), jnp.float32)
    else:
        h0, c0 = hidden
        pad3 = ((0, 0), (0, b_pad - B), (0, h_pad - H))
        h0_p = jnp.pad(h0.astype(jnp.float32), pad3)
        c0_p = jnp.pad(c0.astype(jnp.float32), pad3)

    # ---- recurrent kernel ----------------------------------------------------
    grid_spec = pltpu.PrefetchScalarGridSpec(
        num_scalar_prefetch=0,
        grid=(S // T,),
        in_specs=[
            pl.BlockSpec((T, b_pad, G), lambda n: (n, 0, 0)),      # gate stream
            pl.BlockSpec((h_pad, G), lambda n: (0, 0)),            # whh0 (resident)
            pl.BlockSpec((h_pad, G), lambda n: (0, 0)),            # wih1
            pl.BlockSpec((h_pad, G), lambda n: (0, 0)),            # whh1
            pl.BlockSpec((1, G), lambda n: (0, 0)),                # b1
            pl.BlockSpec((L, b_pad, h_pad), lambda n: (0, 0, 0)),  # h0
            pl.BlockSpec((L, b_pad, h_pad), lambda n: (0, 0, 0)),  # c0
        ],
        out_specs=[
            pl.BlockSpec((T, b_pad, h_pad), lambda n: (n, 0, 0)),  # h sequence
            pl.BlockSpec((L, b_pad, h_pad), lambda n: (0, 0, 0)),  # h_n (carried state)
            pl.BlockSpec((L, b_pad, h_pad), lambda n: (0, 0, 0)),  # c_n (carried state)
        ],
    )
    # NOTE: constant-index weight specs could additionally be single-buffered
    # (pipeline_mode=pl.Buffered(1)) at production sizes; after hoisting the FC
    # and layer-0 projection the remaining resident weights are small.
    # TODO(synk): on v7x, add a leading batch-parallel grid axis (batch padded to
    # >= 16) to occupy both TensorCores; the time axis itself must stay serial.
    h_seq, hn_p, cn_p = pl.pallas_call(
        lstm_recurrent_kernel,
        out_shape=(
            jax.ShapeDtypeStruct((S, b_pad, h_pad), jnp.float32),
            jax.ShapeDtypeStruct((L, b_pad, h_pad), jnp.float32),
            jax.ShapeDtypeStruct((L, b_pad, h_pad), jnp.float32),
        ),
        grid_spec=grid_spec,
        input_output_aliases={5: 1, 6: 2},                       # h0 -> h_n, c0 -> c_n
        compiler_params=pltpu.CompilerParams(
            dimension_semantics=("arbitrary",),                  # carried state
            vmem_limit_bytes=32 * 1024 * 1024,                   # v7x-safe budget
        ),
    )(g0, whh0, wih1, whh1, b1, h0_p, c0_p)

    # ---- hoisted vocab projection: one large (S*B, Hp) x (Hp, V) matmul ------
    h_flat = h_seq[:, :B, :].reshape(S * B, h_pad)
    wfc = jnp.pad(params["w_fc"].T, ((0, h_pad - H), (0, 0)))    # (Hp, V)
    logits_flat = pallas_dense(h_flat, wfc, params["b_fc"])      # (S*B, V)
    logits = jnp.transpose(logits_flat.reshape(S, B, V), (1, 0, 2))

    return logits, (hn_p[:, :B, :H], cn_p[:, :B, :H])


# --------------------------- pure-JAX reference ------------------------------- #

def lstm_language_model_ref(token_ids, params, hidden=None):
    emb_table = params["embedding"]
    B, S = token_ids.shape
    H = params["w_hh0"].shape[1]
    L = 2
    x_emb = jnp.take(emb_table, token_ids, axis=0)          # (B, S, E)

    if hidden is None:
        h = jnp.zeros((L, B, H), jnp.float32)
        c = jnp.zeros((L, B, H), jnp.float32)
    else:
        h, c = hidden

    layer_w = [
        (params["w_ih0"], params["w_hh0"], params["b_ih0"], params["b_hh0"]),
        (params["w_ih1"], params["w_hh1"], params["b_ih1"], params["b_hh1"]),
    ]

    def cell(x, h_prev, c_prev, w_ih, w_hh, b_ih, b_hh):
        gates = x @ w_ih.T + b_ih + h_prev @ w_hh.T + b_hh
        i, f, g, o = jnp.split(gates, 4, axis=-1)
        i, f, o = jax.nn.sigmoid(i), jax.nn.sigmoid(f), jax.nn.sigmoid(o)
        g = jnp.tanh(g)
        c_new = f * c_prev + i * g
        h_new = o * jnp.tanh(c_new)
        return h_new, c_new

    outs = []
    for t in range(S):
        x_t = x_emb[:, t, :]
        new_h, new_c = [], []
        inp = x_t
        for l in range(L):
            w_ih, w_hh, b_ih, b_hh = layer_w[l]
            h_l, c_l = cell(inp, h[l], c[l], w_ih, w_hh, b_ih, b_hh)
            new_h.append(h_l)
            new_c.append(c_l)
            inp = h_l
        h = jnp.stack(new_h)
        c = jnp.stack(new_c)
        outs.append(inp)
    out = jnp.stack(outs, axis=1)                            # (B, S, H)
    logits = out @ params["w_fc"].T + params["b_fc"]
    return logits, (h, c)


# ------------------------------- param init ----------------------------------- #

def init_params(key, vocab_size, embed_dim, hidden_dim):
    ks = jax.random.split(key, 12)
    stdv = 1.0 / math.sqrt(hidden_dim)
    u = lambda k, shape: jax.random.uniform(k, shape, jnp.float32, -stdv, stdv)
    return {
        "embedding": jax.random.normal(ks[0], (vocab_size, embed_dim), jnp.float32) * 0.1,
        "w_ih0": u(ks[1], (4 * hidden_dim, embed_dim)),
        "w_hh0": u(ks[2], (4 * hidden_dim, hidden_dim)),
        "b_ih0": u(ks[3], (4 * hidden_dim,)),
        "b_hh0": u(ks[4], (4 * hidden_dim,)),
        "w_ih1": u(ks[5], (4 * hidden_dim, hidden_dim)),
        "w_hh1": u(ks[6], (4 * hidden_dim, hidden_dim)),
        "b_ih1": u(ks[7], (4 * hidden_dim,)),
        "b_hh1": u(ks[8], (4 * hidden_dim,)),
        "w_fc": u(ks[9], (vocab_size, hidden_dim)),
        "b_fc": u(ks[10], (vocab_size,)),
    }


# ---------------------------------- main --------------------------------------- #

if __name__ == "__main__":
    VOCAB, EMBED, HIDDEN = 128, 32, 64
    BATCH, SEQ = 4, 8

    key = jax.random.PRNGKey(0)
    pkey, xkey = jax.random.split(key)
    params = init_params(pkey, VOCAB, EMBED, HIDDEN)
    token_ids = jax.random.randint(xkey, (BATCH, SEQ), 0, VOCAB, dtype=jnp.int32)

    fwd = jax.jit(partial(lstm_language_model_forward, params=params))
    logits, (h_n, c_n) = fwd(token_ids)
    jax.block_until_ready((logits, h_n, c_n))

    # Correctness check against pure-JAX reference.
    ref_logits, (ref_h, ref_c) = lstm_language_model_ref(token_ids, params)
    assert logits.shape == (BATCH, SEQ, VOCAB)
    assert h_n.shape == (2, BATCH, HIDDEN) and c_n.shape == (2, BATCH, HIDDEN)
    assert jnp.allclose(logits, ref_logits, rtol=1e-4, atol=1e-4)
    assert jnp.allclose(h_n, ref_h, rtol=1e-4, atol=1e-4)
    assert jnp.allclose(c_n, ref_c, rtol=1e-4, atol=1e-4)

    print("KERNEL_OK")
</pallas_src>

<mosaic_0001>
module attributes {stable_mosaic.version = 11 : i64} {
  func.func @_dense_kernel(%arg0: i32, %arg1: i32, %arg2: memref<32x128xf32, #tpu.memory_space<vmem>>, %arg3: memref<128x512xf32, #tpu.memory_space<vmem>>, %arg4: memref<1x512xf32, #tpu.memory_space<vmem>>, %arg5: memref<32x512xf32, #tpu.memory_space<vmem>>) attributes {dimension_semantics = [#tpu.dimension_semantics<parallel>, #tpu.dimension_semantics<parallel>], iteration_bounds = array<i64: 1, 1>, scalar_prefetch = 0 : i64, scratch_operands = 0 : i64, tpu.core_type = #tpu.core_type<tc>, window_params = [{transform_indices = @transform_0, window_bounds = array<i64: 32, 128>}, {transform_indices = @transform_1, window_bounds = array<i64: 128, 512>}, {transform_indices = @transform_2, window_bounds = array<i64: 1, 512>}, {transform_indices = @transform_3, window_bounds = array<i64: 32, 512>}]} {
    %c0 = arith.constant 0 : index
    %c0_0 = arith.constant 0 : index
    %0 = vector.load %arg2[%c0, %c0_0] : memref<32x128xf32, #tpu.memory_space<vmem>>, vector<32x128xf32>
    %c0_1 = arith.constant 0 : index
    %c0_2 = arith.constant 0 : index
    %1 = vector.load %arg3[%c0_1, %c0_2] : memref<128x512xf32, #tpu.memory_space<vmem>>, vector<128x512xf32>
    %cst = arith.constant dense<0.000000e+00> : vector<32x512xf32>
    %2 = tpu.matmul %0, %1, %cst {dimension_numbers = #tpu.dot_dimension_numbers<[1], [0], [0], [1], [0, 0, 1, 1], [], []>} : vector<32x128xf32>, vector<128x512xf32>, vector<32x512xf32> -> vector<32x512xf32>
    %c0_3 = arith.constant 0 : index
    %c0_4 = arith.constant 0 : index
    %3 = vector.load %arg4[%c0_3, %c0_4] : memref<1x512xf32, #tpu.memory_space<vmem>>, vector<1x512xf32>
    %4 = vector.broadcast %3 : vector<1x512xf32> to vector<32x512xf32>
    %5 = arith.addf %2, %4 : vector<32x512xf32>
    %c0_5 = arith.constant 0 : index
    %c0_6 = arith.constant 0 : index
    %6 = vector.load %arg5[%c0_5, %c0_6] : memref<32x512xf32, #tpu.memory_space<vmem>>, vector<32x512xf32>
    tpu.vector_store %arg5[%c0_5, %c0_6], %5 {strides = array<i32>} : memref<32x512xf32, #tpu.memory_space<vmem>>, vector<32x512xf32>,
    return
  }
  func.func @transform_0(%arg0: i32, %arg1: i32) -> (i32, i32) {
    %c0_i32 = arith.constant 0 : i32
    %c0_i32_0 = arith.constant 0 : i32
    return %arg0, %c0_i32 : i32, i32
  }
  func.func @transform_1(%arg0: i32, %arg1: i32) -> (i32, i32) {
    %c0_i32 = arith.constant 0 : i32
    %c0_i32_0 = arith.constant 0 : i32
    return %c0_i32, %arg1 : i32, i32
  }
  func.func @transform_2(%arg0: i32, %arg1: i32) -> (i32, i32) {
    %c0_i32 = arith.constant 0 : i32
    %c0_i32_0 = arith.constant 0 : i32
    return %c0_i32, %arg1 : i32, i32
  }
  func.func @transform_3(%arg0: i32, %arg1: i32) -> (i32, i32) {
    %c0_i32 = arith.constant 0 : i32
    return %arg0, %arg1 : i32, i32
  }
}

module attributes {stable_mosaic.version = 11 : i64} {
  func.func @_dense_kernel(%arg0: i32, %arg1: i32, %arg2: memref<32x128xf32, #tpu.memory_space<vmem>>, %arg3: memref<128x128xf32, #tpu.memory_space<vmem>>, %arg4: memref<1x128xf32, #tpu.memory_space<vmem>>, %arg5: memref<32x128xf32, #tpu.memory_space<vmem>>) attributes {dimension_semantics = [#tpu.dimension_semantics<parallel>, #tpu.dimension_semantics<parallel>], iteration_bounds = array<i64: 1, 1>, scalar_prefetch = 0 : i64, scratch_operands = 0 : i64, tpu.core_type = #tpu.core_type<tc>, window_params = [{transform_indices = @transform_0, window_bounds = array<i64: 32, 128>}, {transform_indices = @transform_1, window_bounds = array<i64: 128, 128>}, {transform_indices = @transform_2, window_bounds = array<i64: 1, 128>}, {transform_indices = @transform_3, window_bounds = array<i64: 32, 128>}]} {
    %c0 = arith.constant 0 : index
    %c0_0 = arith.constant 0 : index
    %0 = vector.load %arg2[%c0, %c0_0] : memref<32x128xf32, #tpu.memory_space<vmem>>, vector<32x128xf32>
    %c0_1 = arith.constant 0 : index
    %c0_2 = arith.constant 0 : index
    %1 = vector.load %arg3[%c0_1, %c0_2] : memref<128x128xf32, #tpu.memory_space<vmem>>, vector<128x128xf32>
    %cst = arith.constant dense<0.000000e+00> : vector<32x128xf32>
    %2 = tpu.matmul %0, %1, %cst {dimension_numbers = #tpu.dot_dimension_numbers<[1], [0], [0], [1], [0, 0, 1, 1], [], []>} : vector<32x128xf32>, vector<128x128xf32>, vector<32x128xf32> -> vector<32x128xf32>
    %c0_3 = arith.constant 0 : index
    %c0_4 = arith.constant 0 : index
    %3 = vector.load %arg4[%c0_3, %c0_4] : memref<1x128xf32, #tpu.memory_space<vmem>>, vector<1x128xf32>
    %4 = vector.broadcast %3 : vector<1x128xf32> to vector<32x128xf32>
    %5 = arith.addf %2, %4 : vector<32x128xf32>
    %c0_5 = arith.constant 0 : index
    %c0_6 = arith.constant 0 : index
    %6 = vector.load %arg5[%c0_5, %c0_6] : memref<32x128xf32, #tpu.memory_space<vmem>>, vector<32x128xf32>
    tpu.vector_store %arg5[%c0_5, %c0_6], %5 {strides = array<i32>} : memref<32x128xf32, #tpu.memory_space<vmem>>, vector<32x128xf32>,
    return
  }
  func.func @transform_0(%arg0: i32, %arg1: i32) -> (i32, i32) {
    %c0_i32 = arith.constant 0 : i32
    %c0_i32_0 = arith.constant 0 : i32
    return %arg0, %c0_i32 : i32, i32
  }
  func.func @transform_1(%arg0: i32, %arg1: i32) -> (i32, i32) {
    %c0_i32 = arith.constant 0 : i32
    %c0_i32_0 = arith.constant 0 : i32
    return %c0_i32, %arg1 : i32, i32
  }
  func.func @transform_2(%arg0: i32, %arg1: i32) -> (i32, i32) {
    %c0_i32 = arith.constant 0 : i32
    %c0_i32_0 = arith.constant 0 : i32
    return %c0_i32, %arg1 : i32, i32
  }
  func.func @transform_3(%arg0: i32, %arg1: i32) -> (i32, i32) {
    %c0_i32 = arith.constant 0 : i32
    return %arg0, %arg1 : i32, i32
  }
}

module attributes {stable_mosaic.version = 11 : i64} {
  func.func @lstm_recurrent_kernel(%arg0: i32, %arg1: memref<8x8x512xf32, #tpu.memory_space<vmem>>, %arg2: memref<128x512xf32, #tpu.memory_space<vmem>>, %arg3: memref<128x512xf32, #tpu.memory_space<vmem>>, %arg4: memref<128x512xf32, #tpu.memory_space<vmem>>, %arg5: memref<1x512xf32, #tpu.memory_space<vmem>>, %arg6: memref<2x8x128xf32, #tpu.memory_space<vmem>>, %arg7: memref<2x8x128xf32, #tpu.memory_space<vmem>>, %arg8: memref<8x8x128xf32, #tpu.memory_space<vmem>>, %arg9: memref<2x8x128xf32, #tpu.memory_space<vmem>>, %arg10: memref<2x8x128xf32, #tpu.memory_space<vmem>>) attributes {dimension_semantics = [#tpu.dimension_semantics<arbitrary>], iteration_bounds = array<i64: 1>, scalar_prefetch = 0 : i64, scratch_operands = 0 : i64, tpu.core_type = #tpu.core_type<tc>, window_params = [{transform_indices = @transform_0, window_bounds = array<i64: 8, 8, 512>}, {pipeline_mode = #tpu.pipeline_mode<synchronous>, transform_indices = @transform_1, window_bounds = array<i64: 128, 512>}, {pipeline_mode = #tpu.pipeline_mode<synchronous>, transform_indices = @transform_2, window_bounds = array<i64: 128, 512>}, {pipeline_mode = #tpu.pipeline_mode<synchronous>, transform_indices = @transform_3, window_bounds = array<i64: 128, 512>}, {pipeline_mode = #tpu.pipeline_mode<synchronous>, transform_indices = @transform_4, window_bounds = array<i64: 1, 512>}, {pipeline_mode = #tpu.pipeline_mode<synchronous>, transform_indices = @transform_5, window_bounds = array<i64: 2, 8, 128>}, {pipeline_mode = #tpu.pipeline_mode<synchronous>, transform_indices = @transform_6, window_bounds = array<i64: 2, 8, 128>}, {transform_indices = @transform_7, window_bounds = array<i64: 8, 8, 128>}, {pipeline_mode = #tpu.pipeline_mode<synchronous>, transform_indices = @transform_8, window_bounds = array<i64: 2, 8, 128>}, {pipeline_mode = #tpu.pipeline_mode<synchronous>, transform_indices = @transform_9, window_bounds = array<i64: 2, 8, 128>}]} {
    %c0_i32 = arith.constant 0 : i32
    %0 = arith.cmpi eq, %arg0, %c0_i32 : i32
    %1 = arith.extui %0 : i1 to i32
    %c0_i32_0 = arith.constant 0 : i32
    %2 = arith.cmpi ne, %1, %c0_i32_0 : i32
    scf.if %2 {
      %c0_271 = arith.constant 0 : index
      %c0_272 = arith.constant 0 : index
      %c0_273 = arith.constant 0 : index
      %535 = vector.load %arg6[%c0_271, %c0_272, %c0_273] : memref<2x8x128xf32, #tpu.memory_space<vmem>>, vector<2x8x128xf32>
      %c0_274 = arith.constant 0 : index
      %c0_275 = arith.constant 0 : index
      %c0_276 = arith.constant 0 : index
      %536 = vector.load %arg9[%c0_274, %c0_275, %c0_276] : memref<2x8x128xf32, #tpu.memory_space<vmem>>, vector<2x8x128xf32>
      tpu.vector_store %arg9[%c0_274, %c0_275, %c0_276], %535 {strides = array<i32>} : memref<2x8x128xf32, #tpu.memory_space<vmem>>, vector<2x8x128xf32>,
      %c0_277 = arith.constant 0 : index
      %c0_278 = arith.constant 0 : index
      %c0_279 = arith.constant 0 : index
      %537 = vector.load %arg7[%c0_277, %c0_278, %c0_279] : memref<2x8x128xf32, #tpu.memory_space<vmem>>, vector<2x8x128xf32>
      %c0_280 = arith.constant 0 : index
      %c0_281 = arith.constant 0 : index
      %c0_282 = arith.constant 0 : index
      %538 = vector.load %arg10[%c0_280, %c0_281, %c0_282] : memref<2x8x128xf32, #tpu.memory_space<vmem>>, vector<2x8x128xf32>
      tpu.vector_store %arg10[%c0_280, %c0_281, %c0_282], %537 {strides = array<i32>} : memref<2x8x128xf32, #tpu.memory_space<vmem>>, vector<2x8x128xf32>,
    } else {
    }
    %c0 = arith.constant 0 : index
    %c0_1 = arith.constant 0 : index
    %3 = vector.load %arg2[%c0, %c0_1] : memref<128x512xf32, #tpu.memory_space<vmem>>, vector<128x512xf32>
    %c0_2 = arith.constant 0 : index
    %c0_3 = arith.constant 0 : index
    %4 = vector.load %arg3[%c0_2, %c0_3] : memref<128x512xf32, #tpu.memory_space<vmem>>, vector<128x512xf32>
    %c0_4 = arith.constant 0 : index
    %c0_5 = arith.constant 0 : index
    %5 = vector.load %arg4[%c0_4, %c0_5] : memref<128x512xf32, #tpu.memory_space<vmem>>, vector<128x512xf32>
    %c0_6 = arith.constant 0 : index
    %c0_7 = arith.constant 0 : index
    %6 = vector.load %arg5[%c0_6, %c0_7] : memref<1x512xf32, #tpu.memory_space<vmem>>, vector<1x512xf32>
    %c0_i32_8 = arith.constant 0 : i32
    %7 = arith.index_cast %c0_i32_8 : i32 to index
    %c0_9 = arith.constant 0 : index
    %c0_10 = arith.constant 0 : index
    %8 = vector.load %arg1[%7, %c0_9, %c0_10] : memref<8x8x512xf32, #tpu.memory_space<vmem>>, vector<1x8x512xf32>
    %9 = vector.shape_cast %8 : vector<1x8x512xf32> to vector<8x512xf32>
    %c0_11 = arith.constant 0 : index
    %c0_12 = arith.constant 0 : index
    %c0_13 = arith.constant 0 : index
    %10 = vector.load %arg9[%c0_11, %c0_12, %c0_13] : memref<2x8x128xf32, #tpu.memory_space<vmem>>, vector<1x8x128xf32>
    %11 = vector.shape_cast %10 : vector<1x8x128xf32> to vector<8x128xf32>
    %cst = arith.constant dense<0.000000e+00> : vector<8x512xf32>
    %12 = tpu.matmul %11, %3, %cst {dimension_numbers = #tpu.dot_dimension_numbers<[1], [0], [0], [1], [0, 0, 1, 1], [], []>} : vector<8x128xf32>, vector<128x512xf32>, vector<8x512xf32> -> vector<8x512xf32>
    %13 = arith.addf %9, %12 : vector<8x512xf32>
    %c0_14 = arith.constant 0 : index
    %c0_15 = arith.constant 0 : index
    %c0_16 = arith.constant 0 : index
    %14 = vector.load %arg10[%c0_14, %c0_15, %c0_16] : memref<2x8x128xf32, #tpu.memory_space<vmem>>, vector<1x8x128xf32>
    %15 = vector.shape_cast %14 : vector<1x8x128xf32> to vector<8x128xf32>
    %16 = vector.extract_strided_slice %13 {offsets = [0, 0], sizes = [8, 384], strides = [1, 1]} : vector<8x512xf32> to vector<8x384xf32>
    %17 = arith.negf %16 : vector<8x384xf32>
    %18 = math.exp %17 : vector<8x384xf32>
    %cst_17 = arith.constant 1.000000e+00 : f32
    %19 = vector.broadcast %cst_17 : f32 to vector<8x384xf32>
    %20 = arith.addf %19, %18 : vector<8x384xf32>
    %21 = arith.divf %19, %20 : vector<8x384xf32>
    %22 = vector.extract_strided_slice %13 {offsets = [0, 384], sizes = [8, 128], strides = [1, 1]} : vector<8x512xf32> to vector<8x128xf32>
    %23 = math.tanh %22 : vector<8x128xf32>
    %24 = vector.extract_strided_slice %21 {offsets = [0, 0], sizes = [8, 128], strides = [1, 1]} : vector<8x384xf32> to vector<8x128xf32>
    %25 = vector.extract_strided_slice %21 {offsets = [0, 128], sizes = [8, 128], strides = [1, 1]} : vector<8x384xf32> to vector<8x128xf32>
    %26 = vector.extract_strided_slice %21 {offsets = [0, 256], sizes = [8, 128], strides = [1, 1]} : vector<8x384xf32> to vector<8x128xf32>
    %27 = arith.mulf %25, %15 : vector<8x128xf32>
    %28 = arith.mulf %24, %23 : vector<8x128xf32>
    %29 = arith.addf %27, %28 : vector<8x128xf32>
    %30 = math.tanh %29 : vector<8x128xf32>
    %31 = arith.mulf %26, %30 : vector<8x128xf32>
    %c0_18 = arith.constant 0 : index
    %c0_19 = arith.constant 0 : index
    %c0_20 = arith.constant 0 : index
    %32 = vector.load %arg9[%c0_18, %c0_19, %c0_20] : memref<2x8x128xf32, #tpu.memory_space<vmem>>, vector<1x8x128xf32>
    %33 = vector.shape_cast %32 : vector<1x8x128xf32> to vector<8x128xf32>
    %34 = vector.shape_cast %31 : vector<8x128xf32> to vector<1x8x128xf32>
    tpu.vector_store %arg9[%c0_18, %c0_19, %c0_20], %34 {strides = array<i32>} : memref<2x8x128xf32, #tpu.memory_space<vmem>>, vector<1x8x128xf32>,
    %c0_21 = arith.constant 0 : index
    %c0_22 = arith.constant 0 : index
    %c0_23 = arith.constant 0 : index
    %35 = vector.load %arg10[%c0_21, %c0_22, %c0_23] : memref<2x8x128xf32, #tpu.memory_space<vmem>>, vector<1x8x128xf32>
    %36 = vector.shape_cast %35 : vector<1x8x128xf32> to vector<8x128xf32>
    %37 = vector.shape_cast %29 : vector<8x128xf32> to vector<1x8x128xf32>
    tpu.vector_store %arg10[%c0_21, %c0_22, %c0_23], %37 {strides = array<i32>} : memref<2x8x128xf32, #tpu.memory_space<vmem>>, vector<1x8x128xf32>,
    %cst_24 = arith.constant dense<0.000000e+00> : vector<8x512xf32>
    %38 = tpu.matmul %31, %4, %cst_24 {dimension_numbers = #tpu.dot_dimension_numbers<[1], [0], [0], [1], [0, 0, 1, 1], [], []>} : vector<8x128xf32>, vector<128x512xf32>, vector<8x512xf32> -> vector<8x512xf32>
    %c1 = arith.constant 1 : index
    %c0_25 = arith.constant 0 : index
    %c0_26 = arith.constant 0 : index
    %39 = vector.load %arg9[%c1, %c0_25, %c0_26] : memref<2x8x128xf32, #tpu.memory_space<vmem>>, vector<1x8x128xf32>
    %40 = vector.shape_cast %39 : vector<1x8x128xf32> to vector<8x128xf32>
    %cst_27 = arith.constant dense<0.000000e+00> : vector<8x512xf32>
    %41 = tpu.matmul %40, %5, %cst_27 {dimension_numbers = #tpu.dot_dimension_numbers<[1], [0], [0], [1], [0, 0, 1, 1], [], []>} : vector<8x128xf32>, vector<128x512xf32>, vector<8x512xf32> -> vector<8x512xf32>
    %42 = arith.addf %38, %41 : vector<8x512xf32>
    %43 = vector.broadcast %6 : vector<1x512xf32> to vector<8x512xf32>
    %44 = arith.addf %42, %43 : vector<8x512xf32>
    %c1_28 = arith.constant 1 : index
    %c0_29 = arith.constant 0 : index
    %c0_30 = arith.constant 0 : index
    %45 = vector.load %arg10[%c1_28, %c0_29, %c0_30] : memref<2x8x128xf32, #tpu.memory_space<vmem>>, vector<1x8x128xf32>
    %46 = vector.shape_cast %45 : vector<1x8x128xf32> to vector<8x128xf32>
    %47 = vector.extract_strided_slice %44 {offsets = [0, 0], sizes = [8, 384], strides = [1, 1]} : vector<8x512xf32> to vector<8x384xf32>
    %48 = arith.negf %47 : vector<8x384xf32>
    %49 = math.exp %48 : vector<8x384xf32>
    %cst_31 = arith.constant 1.000000e+00 : f32
    %50 = vector.broadcast %cst_31 : f32 to vector<8x384xf32>
    %51 = arith.addf %50, %49 : vector<8x384xf32>
    %52 = arith.divf %50, %51 : vector<8x384xf32>
    %53 = vector.extract_strided_slice %44 {offsets = [0, 384], sizes = [8, 128], strides = [1, 1]} : vector<8x512xf32> to vector<8x128xf32>
    %54 = math.tanh %53 : vector<8x128xf32>
    %55 = vector.extract_strided_slice %52 {offsets = [0, 0], sizes = [8, 128], strides = [1, 1]} : vector<8x384xf32> to vector<8x128xf32>
    %56 = vector.extract_strided_slice %52 {offsets = [0, 128], sizes = [8, 128], strides = [1, 1]} : vector<8x384xf32> to vector<8x128xf32>
    %57 = vector.extract_strided_slice %52 {offsets = [0, 256], sizes = [8, 128], strides = [1, 1]} : vector<8x384xf32> to vector<8x128xf32>
    %58 = arith.mulf %56, %46 : vector<8x128xf32>
    %59 = arith.mulf %55, %54 : vector<8x128xf32>
    %60 = arith.addf %58, %59 : vector<8x128xf32>
    %61 = math.tanh %60 : vector<8x128xf32>
    %62 = arith.mulf %57, %61 : vector<8x128xf32>
    %c1_32 = arith.constant 1 : index
    %c0_33 = arith.constant 0 : index
    %c0_34 = arith.constant 0 : index
    %63 = vector.load %arg9[%c1_32, %c0_33, %c0_34] : memref<2x8x128xf32, #tpu.memory_space<vmem>>, vector<1x8x128xf32>
    %64 = vector.shape_cast %63 : vector<1x8x128xf32> to vector<8x128xf32>
    %65 = vector.shape_cast %62 : vector<8x128xf32> to vector<1x8x128xf32>
    tpu.vector_store %arg9[%c1_32, %c0_33, %c0_34], %65 {strides = array<i32>} : memref<2x8x128xf32, #tpu.memory_space<vmem>>, vector<1x8x128xf32>,
    %c1_35 = arith.constant 1 : index
    %c0_36 = arith.constant 0 : index
    %c0_37 = arith.constant 0 : index
    %66 = vector.load %arg10[%c1_35, %c0_36, %c0_37] : memref<2x8x128xf32, #tpu.memory_space<vmem>>, vector<1x8x128xf32>
    %67 = vector.shape_cast %66 : vector<1x8x128xf32> to vector<8x128xf32>
    %68 = vector.shape_cast %60 : vector<8x128xf32> to vector<1x8x128xf32>
    tpu.vector_store %arg10[%c1_35, %c0_36, %c0_37], %68 {strides = array<i32>} : memref<2x8x128xf32, #tpu.memory_space<vmem>>, vector<1x8x128xf32>,
    %69 = arith.index_cast %c0_i32_8 : i32 to index
    %c0_38 = arith.constant 0 : index
    %c0_39 = arith.constant 0 : index
    %70 = vector.load %arg8[%69, %c0_38, %c0_39] : memref<8x8x128xf32, #tpu.memory_space<vmem>>, vector<1x8x128xf32>
    %71 = vector.shape_cast %70 : vector<1x8x128xf32> to vector<8x128xf32>
    %72 = vector.shape_cast %62 : vector<8x128xf32> to vector<1x8x128xf32>
    tpu.vector_store %arg8[%69, %c0_38, %c0_39], %72 {strides = array<i32>} : memref<8x8x128xf32, #tpu.memory_space<vmem>>, vector<1x8x128xf32>,
    %c1_i32 = arith.constant 1 : i32
    %73 = arith.index_cast %c1_i32 : i32 to index
    %c0_40 = arith.constant 0 : index
    %c0_41 = arith.constant 0 : index
    %74 = vector.load %arg1[%73, %c0_40, %c0_41] : memref<8x8x512xf32, #tpu.memory_space<vmem>>, vector<1x8x512xf32>
    %75 = vector.shape_cast %74 : vector<1x8x512xf32> to vector<8x512xf32>
    %c0_42 = arith.constant 0 : index
    %c0_43 = arith.constant 0 : index
    %c0_44 = arith.constant 0 : index
    %76 = vector.load %arg9[%c0_42, %c0_43, %c0_44] : memref<2x8x128xf32, #tpu.memory_space<vmem>>, vector<1x8x128xf32>
    %77 = vector.shape_cast %76 : vector<1x8x128xf32> to vector<8x128xf32>
    %cst_45 = arith.constant dense<0.000000e+00> : vector<8x512xf32>
    %78 = tpu.matmul %77, %3, %cst_45 {dimension_numbers = #tpu.dot_dimension_numbers<[1], [0], [0], [1], [0, 0, 1, 1], [], []>} : vector<8x128xf32>, vector<128x512xf32>, vector<8x512xf32> -> vector<8x512xf32>
    %79 = arith.addf %75, %78 : vector<8x512xf32>
    %c0_46 = arith.constant 0 : index
    %c0_47 = arith.constant 0 : index
    %c0_48 = arith.constant 0 : index
    %80 = vector.load %arg10[%c0_46, %c0_47, %c0_48] : memref<2x8x128xf32, #tpu.memory_space<vmem>>, vector<1x8x128xf32>
    %81 = vector.shape_cast %80 : vector<1x8x128xf32> to vector<8x128xf32>
    %82 = vector.extract_strided_slice %79 {offsets = [0, 0], sizes = [8, 384], strides = [1, 1]} : vector<8x512xf32> to vector<8x384xf32>
    %83 = arith.negf %82 : vector<8x384xf32>
    %84 = math.exp %83 : vector<8x384xf32>
    %cst_49 = arith.constant 1.000000e+00 : f32
    %85 = vector.broadcast %cst_49 : f32 to vector<8x384xf32>
    %86 = arith.addf %85, %84 : vector<8x384xf32>
    %87 = arith.divf %85, %86 : vector<8x384xf32>
    %88 = vector.extract_strided_slice %79 {offsets = [0, 384], sizes = [8, 128], strides = [1, 1]} : vector<8x512xf32> to vector<8x128xf32>
    %89 = math.tanh %88 : vector<8x128xf32>
    %90 = vector.extract_strided_slice %87 {offsets = [0, 0], sizes = [8, 128], strides = [1, 1]} : vector<8x384xf32> to vector<8x128xf32>
    %91 = vector.extract_strided_slice %87 {offsets = [0, 128], sizes = [8, 128], strides = [1, 1]} : vector<8x384xf32> to vector<8x128xf32>
    %92 = vector.extract_strided_slice %87 {offsets = [0, 256], sizes = [8, 128], strides = [1, 1]} : vector<8x384xf32> to vector<8x128xf32>
    %93 = arith.mulf %91, %81 : vector<8x128xf32>
    %94 = arith.mulf %90, %89 : vector<8x128xf32>
    %95 = arith.addf %93, %94 : vector<8x128xf32>
    %96 = math.tanh %95 : vector<8x128xf32>
    %97 = arith.mulf %92, %96 : vector<8x128xf32>
    %c0_50 = arith.constant 0 : index
    %c0_51 = arith.constant 0 : index
    %c0_52 = arith.constant 0 : index
    %98 = vector.load %arg9[%c0_50, %c0_51, %c0_52] : memref<2x8x128xf32, #tpu.memory_space<vmem>>, vector<1x8x128xf32>
    %99 = vector.shape_cast %98 : vector<1x8x128xf32> to vector<8x128xf32>
    %100 = vector.shape_cast %97 : vector<8x128xf32> to vector<1x8x128xf32>
    tpu.vector_store %arg9[%c0_50, %c0_51, %c0_52], %100 {strides = array<i32>} : memref<2x8x128xf32, #tpu.memory_space<vmem>>, vector<1x8x128xf32>,
    %c0_53 = arith.constant 0 : index
    %c0_54 = arith.constant 0 : index
    %c0_55 = arith.constant 0 : index
    %101 = vector.load %arg10[%c0_53, %c0_54, %c0_55] : memref<2x8x128xf32, #tpu.memory_space<vmem>>, vector<1x8x128xf32>
    %102 = vector.shape_cast %101 : vector<1x8x128xf32> to vector<8x128xf32>
    %103 = vector.shape_cast %95 : vector<8x128xf32> to vector<1x8x128xf32>
    tpu.vector_store %arg10[%c0_53, %c0_54, %c0_55], %103 {strides = array<i32>} : memref<2x8x128xf32, #tpu.memory_space<vmem>>, vector<1x8x128xf32>,
    %cst_56 = arith.constant dense<0.000000e+00> : vector<8x512xf32>
    %104 = tpu.matmul %97, %4, %cst_56 {dimension_numbers = #tpu.dot_dimension_numbers<[1], [0], [0], [1], [0, 0, 1, 1], [], []>} : vector<8x128xf32>, vector<128x512xf32>, vector<8x512xf32> -> vector<8x512xf32>
    %c1_57 = arith.constant 1 : index
    %c0_58 = arith.constant 0 : index
    %c0_59 = arith.constant 0 : index
    %105 = vector.load %arg9[%c1_57, %c0_58, %c0_59] : memref<2x8x128xf32, #tpu.memory_space<vmem>>, vector<1x8x128xf32>
    %106 = vector.shape_cast %105 : vector<1x8x128xf32> to vector<8x128xf32>
    %cst_60 = arith.constant dense<0.000000e+00> : vector<8x512xf32>
    %107 = tpu.matmul %106, %5, %cst_60 {dimension_numbers = #tpu.dot_dimension_numbers<[1], [0], [0], [1], [0, 0, 1, 1], [], []>} : vector<8x128xf32>, vector<128x512xf32>, vector<8x512xf32> -> vector<8x512xf32>
    %108 = arith.addf %104, %107 : vector<8x512xf32>
    %109 = vector.broadcast %6 : vector<1x512xf32> to vector<8x512xf32>
    %110 = arith.addf %108, %109 : vector<8x512xf32>
    %c1_61 = arith.constant 1 : index
    %c0_62 = arith.constant 0 : index
    %c0_63 = arith.constant 0 : index
    %111 = vector.load %arg10[%c1_61, %c0_62, %c0_63] : memref<2x8x128xf32, #tpu.memory_space<vmem>>, vector<1x8x128xf32>
    %112 = vector.shape_cast %111 : vector<1x8x128xf32> to vector<8x128xf32>
    %113 = vector.extract_strided_slice %110 {offsets = [0, 0], sizes = [8, 384], strides = [1, 1]} : vector<8x512xf32> to vector<8x384xf32>
    %114 = arith.negf %113 : vector<8x384xf32>
    %115 = math.exp %114 : vector<8x384xf32>
    %cst_64 = arith.constant 1.000000e+00 : f32
    %116 = vector.broadcast %cst_64 : f32 to vector<8x384xf32>
    %117 = arith.addf %116, %115 : vector<8x384xf32>
    %118 = arith.divf %116, %117 : vector<8x384xf32>
    %119 = vector.extract_strided_slice %110 {offsets = [0, 384], sizes = [8, 128], strides = [1, 1]} : vector<8x512xf32> to vector<8x128xf32>
    %120 = math.tanh %119 : vector<8x128xf32>
    %121 = vector.extract_strided_slice %118 {offsets = [0, 0], sizes = [8, 128], strides = [1, 1]} : vector<8x384xf32> to vector<8x128xf32>
    %122 = vector.extract_strided_slice %118 {offsets = [0, 128], sizes = [8, 128], strides = [1, 1]} : vector<8x384xf32> to vector<8x128xf32>
    %123 = vector.extract_strided_slice %118 {offsets = [0, 256], sizes = [8, 128], strides = [1, 1]} : vector<8x384xf32> to vector<8x128xf32>
    %124 = arith.mulf %122, %112 : vector<8x128xf32>
    %125 = arith.mulf %121, %120 : vector<8x128xf32>
    %126 = arith.addf %124, %125 : vector<8x128xf32>
    %127 = math.tanh %126 : vector<8x128xf32>
    %128 = arith.mulf %123, %127 : vector<8x128xf32>
    %c1_65 = arith.constant 1 : index
    %c0_66 = arith.constant 0 : index
    %c0_67 = arith.constant 0 : index
    %129 = vector.load %arg9[%c1_65, %c0_66, %c0_67] : memref<2x8x128xf32, #tpu.memory_space<vmem>>, vector<1x8x128xf32>
    %130 = vector.shape_cast %129 : vector<1x8x128xf32> to vector<8x128xf32>
    %131 = vector.shape_cast %128 : vector<8x128xf32> to vector<1x8x128xf32>
    tpu.vector_store %arg9[%c1_65, %c0_66, %c0_67], %131 {strides = array<i32>} : memref<2x8x128xf32, #tpu.memory_space<vmem>>, vector<1x8x128xf32>,
    %c1_68 = arith.constant 1 : index
    %c0_69 = arith.constant 0 : index
    %c0_70 = arith.constant 0 : index
    %132 = vector.load %arg10[%c1_68, %c0_69, %c0_70] : memref<2x8x128xf32, #tpu.memory_space<vmem>>, vector<1x8x128xf32>
    %133 = vector.shape_cast %132 : vector<1x8x128xf32> to vector<8x128xf32>
    %134 = vector.shape_cast %126 : vector<8x128xf32> to vector<1x8x128xf32>
    tpu.vector_store %arg10[%c1_68, %c0_69, %c0_70], %134 {strides = array<i32>} : memref<2x8x128xf32, #tpu.memory_space<vmem>>, vector<1x8x128xf32>,
    %135 = arith.index_cast %c1_i32 : i32 to index
    %c0_71 = arith.constant 0 : index
    %c0_72 = arith.constant 0 : index
    %136 = vector.load %arg8[%135, %c0_71, %c0_72] : memref<8x8x128xf32, #tpu.memory_space<vmem>>, vector<1x8x128xf32>
    %137 = vector.shape_cast %136 : vector<1x8x128xf32> to vector<8x128xf32>
    %138 = vector.shape_cast %128 : vector<8x128xf32> to vector<1x8x128xf32>
    tpu.vector_store %arg8[%135, %c0_71, %c0_72], %138 {strides = array<i32>} : memref<8x8x128xf32, #tpu.memory_space<vmem>>, vector<1x8x128xf32>,
    %c2_i32 = arith.constant 2 : i32
    %139 = arith.index_cast %c2_i32 : i32 to index
    %c0_73 = arith.constant 0 : index
    %c0_74 = arith.constant 0 : index
    %140 = vector.load %arg1[%139, %c0_73, %c0_74] : memref<8x8x512xf32, #tpu.memory_space<vmem>>, vector<1x8x512xf32>
    %141 = vector.shape_cast %140 : vector<1x8x512xf32> to vector<8x512xf32>
    %c0_75 = arith.constant 0 : index
    %c0_76 = arith.constant 0 : index
    %c0_77 = arith.constant 0 : index
    %142 = vector.load %arg9[%c0_75, %c0_76, %c0_77] : memref<2x8x128xf32, #tpu.memory_space<vmem>>, vector<1x8x128xf32>
    %143 = vector.shape_cast %142 : vector<1x8x128xf32> to vector<8x128xf32>
    %cst_78 = arith.constant dense<0.000000e+00> : vector<8x512xf32>
    %144 = tpu.matmul %143, %3, %cst_78 {dimension_numbers = #tpu.dot_dimension_numbers<[1], [0], [0], [1], [0, 0, 1, 1], [], []>} : vector<8x128xf32>, vector<128x512xf32>, vector<8x512xf32> -> vector<8x512xf32>
    %145 = arith.addf %141, %144 : vector<8x512xf32>
    %c0_79 = arith.constant 0 : index
    %c0_80 = arith.constant 0 : index
    %c0_81 = arith.constant 0 : index
    %146 = vector.load %arg10[%c0_79, %c0_80, %c0_81] : memref<2x8x128xf32, #tpu.memory_space<vmem>>, vector<1x8x128xf32>
    %147 = vector.shape_cast %146 : vector<1x8x128xf32> to vector<8x128xf32>
    %148 = vector.extract_strided_slice %145 {offsets = [0, 0], sizes = [8, 384], strides = [1, 1]} : vector<8x512xf32> to vector<8x384xf32>
    %149 = arith.negf %148 : vector<8x384xf32>
    %150 = math.exp %149 : vector<8x384xf32>
    %cst_82 = arith.constant 1.000000e+00 : f32
    %151 = vector.broadcast %cst_82 : f32 to vector<8x384xf32>
    %152 = arith.addf %151, %150 : vector<8x384xf32>
    %153 = arith.divf %151, %152 : vector<8x384xf32>
    %154 = vector.extract_strided_slice %145 {offsets = [0, 384], sizes = [8, 128], strides = [1, 1]} : vector<8x512xf32> to vector<8x128xf32>
    %155 = math.tanh %154 : vector<8x128xf32>
    %156 = vector.extract_strided_slice %153 {offsets = [0, 0], sizes = [8, 128], strides = [1, 1]} : vector<8x384xf32> to vector<8x128xf32>
    %157 = vector.extract_strided_slice %153 {offsets = [0, 128], sizes = [8, 128], strides = [1, 1]} : vector<8x384xf32> to vector<8x128xf32>
    %158 = vector.extract_strided_slice %153 {offsets = [0, 256], sizes = [8, 128], strides = [1, 1]} : vector<8x384xf32> to vector<8x128xf32>
    %159 = arith.mulf %157, %147 : vector<8x128xf32>
    %160 = arith.mulf %156, %155 : vector<8x128xf32>
    %161 = arith.addf %159, %160 : vector<8x128xf32>
    %162 = math.tanh %161 : vector<8x128xf32>
    %163 = arith.mulf %158, %162 : vector<8x128xf32>
    %c0_83 = arith.constant 0 : index
    %c0_84 = arith.constant 0 : index
    %c0_85 = arith.constant 0 : index
    %164 = vector.load %arg9[%c0_83, %c0_84, %c0_85] : memref<2x8x128xf32, #tpu.memory_space<vmem>>, vector<1x8x128xf32>
    %165 = vector.shape_cast %164 : vector<1x8x128xf32> to vector<8x128xf32>
    %166 = vector.shape_cast %163 : vector<8x128xf32> to vector<1x8x128xf32>
    tpu.vector_store %arg9[%c0_83, %c0_84, %c0_85], %166 {strides = array<i32>} : memref<2x8x128xf32, #tpu.memory_space<vmem>>, vector<1x8x128xf32>,
    %c0_86 = arith.constant 0 : index
    %c0_87 = arith.constant 0 : index
    %c0_88 = arith.constant 0 : index
    %167 = vector.load %arg10[%c0_86, %c0_87, %c0_88] : memref<2x8x128xf32, #tpu.memory_space<vmem>>, vector<1x8x128xf32>
    %168 = vector.shape_cast %167 : vector<1x8x128xf32> to vector<8x128xf32>
    %169 = vector.shape_cast %161 : vector<8x128xf32> to vector<1x8x128xf32>
    tpu.vector_store %arg10[%c0_86, %c0_87, %c0_88], %169 {strides = array<i32>} : memref<2x8x128xf32, #tpu.memory_space<vmem>>, vector<1x8x128xf32>,
    %cst_89 = arith.constant dense<0.000000e+00> : vector<8x512xf32>
    %170 = tpu.matmul %163, %4, %cst_89 {dimension_numbers = #tpu.dot_dimension_numbers<[1], [0], [0], [1], [0, 0, 1, 1], [], []>} : vector<8x128xf32>, vector<128x512xf32>, vector<8x512xf32> -> vector<8x512xf32>
    %c1_90 = arith.constant 1 : index
    %c0_91 = arith.constant 0 : index
    %c0_92 = arith.constant 0 : index
    %171 = vector.load %arg9[%c1_90, %c0_91, %c0_92] : memref<2x8x128xf32, #tpu.memory_space<vmem>>, vector<1x8x128xf32>
    %172 = vector.shape_cast %171 : vector<1x8x128xf32> to vector<8x128xf32>
    %cst_93 = arith.constant dense<0.000000e+00> : vector<8x512xf32>
    %173 = tpu.matmul %172, %5, %cst_93 {dimension_numbers = #tpu.dot_dimension_numbers<[1], [0], [0], [1], [0, 0, 1, 1], [], []>} : vector<8x128xf32>, vector<128x512xf32>, vector<8x512xf32> -> vector<8x512xf32>
    %174 = arith.addf %170, %173 : vector<8x512xf32>
    %175 = vector.broadcast %6 : vector<1x512xf32> to vector<8x512xf32>
    %176 = arith.addf %174, %175 : vector<8x512xf32>
    %c1_94 = arith.constant 1 : index
    %c0_95 = arith.constant 0 : index
    %c0_96 = arith.constant 0 : index
    %177 = vector.load %arg10[%c1_94, %c0_95, %c0_96] : memref<2x8x128xf32, #tpu.memory_space<vmem>>, vector<1x8x128xf32>
    %178 = vector.shape_cast %177 : vector<1x8x128xf32> to vector<8x128xf32>
    %179 = vector.extract_strided_slice %176 {offsets = [0, 0], sizes = [8, 384], strides = [1, 1]} : vector<8x512xf32> to vector<8x384xf32>
    %180 = arith.negf %179 : vector<8x384xf32>
    %181 = math.exp %180 : vector<8x384xf32>
    %cst_97 = arith.constant 1.000000e+00 : f32
    %182 = vector.broadcast %cst_97 : f32 to vector<8x384xf32>
    %183 = arith.addf %182, %181 : vector<8x384xf32>
    %184 = arith.divf %182, %183 : vector<8x384xf32>
    %185 = vector.extract_strided_slice %176 {offsets = [0, 384], sizes = [8, 128], strides = [1, 1]} : vector<8x512xf32> to vector<8x128xf32>
    %186 = math.tanh %185 : vector<8x128xf32>
    %187 = vector.extract_strided_slice %184 {offsets = [0, 0], sizes = [8, 128], strides = [1, 1]} : vector<8x384xf32> to vector<8x128xf32>
    %188 = vector.extract_strided_slice %184 {offsets = [0, 128], sizes = [8, 128], strides = [1, 1]} : vector<8x384xf32> to vector<8x128xf32>
    %189 = vector.extract_strided_slice %184 {offsets = [0, 256], sizes = [8, 128], strides = [1, 1]} : vector<8x384xf32> to vector<8x128xf32>
    %190 = arith.mulf %188, %178 : vector<8x128xf32>
    %191 = arith.mulf %187, %186 : vector<8x128xf32>
    %192 = arith.addf %190, %191 : vector<8x128xf32>
    %193 = math.tanh %192 : vector<8x128xf32>
    %194 = arith.mulf %189, %193 : vector<8x128xf32>
    %c1_98 = arith.constant 1 : index
    %c0_99 = arith.constant 0 : index
    %c0_100 = arith.constant 0 : index
    %195 = vector.load %arg9[%c1_98, %c0_99, %c0_100] : memref<2x8x128xf32, #tpu.memory_space<vmem>>, vector<1x8x128xf32>
    %196 = vector.shape_cast %195 : vector<1x8x128xf32> to vector<8x128xf32>
    %197 = vector.shape_cast %194 : vector<8x128xf32> to vector<1x8x128xf32>
    tpu.vector_store %arg9[%c1_98, %c0_99, %c0_100], %197 {strides = array<i32>} : memref<2x8x128xf32, #tpu.memory_space<vmem>>, vector<1x8x128xf32>,
    %c1_101 = arith.constant 1 : index
    %c0_102 = arith.constant 0 : index
    %c0_103 = arith.constant 0 : index
    %198 = vector.load %arg10[%c1_101, %c0_102, %c0_103] : memref<2x8x128xf32, #tpu.memory_space<vmem>>, vector<1x8x128xf32>
    %199 = vector.shape_cast %198 : vector<1x8x128xf32> to vector<8x128xf32>
    %200 = vector.shape_cast %192 : vector<8x128xf32> to vector<1x8x128xf32>
    tpu.vector_store %arg10[%c1_101, %c0_102, %c0_103], %200 {strides = array<i32>} : memref<2x8x128xf32, #tpu.memory_space<vmem>>, vector<1x8x128xf32>,
    %201 = arith.index_cast %c2_i32 : i32 to index
    %c0_104 = arith.constant 0 : index
    %c0_105 = arith.constant 0 : index
    %202 = vector.load %arg8[%201, %c0_104, %c0_105] : memref<8x8x128xf32, #tpu.memory_space<vmem>>, vector<1x8x128xf32>
    %203 = vector.shape_cast %202 : vector<1x8x128xf32> to vector<8x128xf32>
    %204 = vector.shape_cast %194 : vector<8x128xf32> to vector<1x8x128xf32>
    tpu.vector_store %arg8[%201, %c0_104, %c0_105], %204 {strides = array<i32>} : memref<8x8x128xf32, #tpu.memory_space<vmem>>, vector<1x8x128xf32>,
    %c3_i32 = arith.constant 3 : i32
    %205 = arith.index_cast %c3_i32 : i32 to index
    %c0_106 = arith.constant 0 : index
    %c0_107 = arith.constant 0 : index
    %206 = vector.load %arg1[%205, %c0_106, %c0_107] : memref<8x8x512xf32, #tpu.memory_space<vmem>>, vector<1x8x512xf32>
    %207 = vector.shape_cast %206 : vector<1x8x512xf32> to vector<8x512xf32>
    %c0_108 = arith.constant 0 : index
    %c0_109 = arith.constant 0 : index
    %c0_110 = arith.constant 0 : index
    %208 = vector.load %arg9[%c0_108, %c0_109, %c0_110] : memref<2x8x128xf32, #tpu.memory_space<vmem>>, vector<1x8x128xf32>
    %209 = vector.shape_cast %208 : vector<1x8x128xf32> to vector<8x128xf32>
    %cst_111 = arith.constant dense<0.000000e+00> : vector<8x512xf32>
    %210 = tpu.matmul %209, %3, %cst_111 {dimension_numbers = #tpu.dot_dimension_numbers<[1], [0], [0], [1], [0, 0, 1, 1], [], []>} : vector<8x128xf32>, vector<128x512xf32>, vector<8x512xf32> -> vector<8x512xf32>
    %211 = arith.addf %207, %210 : vector<8x512xf32>
    %c0_112 = arith.constant 0 : index
    %c0_113 = arith.constant 0 : index
    %c0_114 = arith.constant 0 : index
    %212 = vector.load %arg10[%c0_112, %c0_113, %c0_114] : memref<2x8x128xf32, #tpu.memory_space<vmem>>, vector<1x8x128xf32>
    %213 = vector.shape_cast %212 : vector<1x8x128xf32> to vector<8x128xf32>
    %214 = vector.extract_strided_slice %211 {offsets = [0, 0], sizes = [8, 384], strides = [1, 1]} : vector<8x512xf32> to vector<8x384xf32>
    %215 = arith.negf %214 : vector<8x384xf32>
    %216 = math.exp %215 : vector<8x384xf32>
    %cst_115 = arith.constant 1.000000e+00 : f32
    %217 = vector.broadcast %cst_115 : f32 to vector<8x384xf32>
    %218 = arith.addf %217, %216 : vector<8x384xf32>
    %219 = arith.divf %217, %218 : vector<8x384xf32>
    %220 = vector.extract_strided_slice %211 {offsets = [0, 384], sizes = [8, 128], strides = [1, 1]} : vector<8x512xf32> to vector<8x128xf32>
    %221 = math.tanh %220 : vector<8x128xf32>
    %222 = vector.extract_strided_slice %219 {offsets = [0, 0], sizes = [8, 128], strides = [1, 1]} : vector<8x384xf32> to vector<8x128xf32>
    %223 = vector.extract_strided_slice %219 {offsets = [0, 128], sizes = [8, 128], strides = [1, 1]} : vector<8x384xf32> to vector<8x128xf32>
    %224 = vector.extract_strided_slice %219 {offsets = [0, 256], sizes = [8, 128], strides = [1, 1]} : vector<8x384xf32> to vector<8x128xf32>
    %225 = arith.mulf %223, %213 : vector<8x128xf32>
    %226 = arith.mulf %222, %221 : vector<8x128xf32>
    %227 = arith.addf %225, %226 : vector<8x128xf32>
    %228 = math.tanh %227 : vector<8x128xf32>
    %229 = arith.mulf %224, %228 : vector<8x128xf32>
    %c0_116 = arith.constant 0 : index
    %c0_117 = arith.constant 0 : index
    %c0_118 = arith.constant 0 : index
    %230 = vector.load %arg9[%c0_116, %c0_117, %c0_118] : memref<2x8x128xf32, #tpu.memory_space<vmem>>, vector<1x8x128xf32>
    %231 = vector.shape_cast %230 : vector<1x8x128xf32> to vector<8x128xf32>
    %232 = vector.shape_cast %229 : vector<8x128xf32> to vector<1x8x128xf32>
    tpu.vector_store %arg9[%c0_116, %c0_117, %c0_118], %232 {strides = array<i32>} : memref<2x8x128xf32, #tpu.memory_space<vmem>>, vector<1x8x128xf32>,
    %c0_119 = arith.constant 0 : index
    %c0_120 = arith.constant 0 : index
    %c0_121 = arith.constant 0 : index
    %233 = vector.load %arg10[%c0_119, %c0_120, %c0_121] : memref<2x8x128xf32, #tpu.memory_space<vmem>>, vector<1x8x128xf32>
    %234 = vector.shape_cast %233 : vector<1x8x128xf32> to vector<8x128xf32>
    %235 = vector.shape_cast %227 : vector<8x128xf32> to vector<1x8x128xf32>
    tpu.vector_store %arg10[%c0_119, %c0_120, %c0_121], %235 {strides = array<i32>} : memref<2x8x128xf32, #tpu.memory_space<vmem>>, vector<1x8x128xf32>,
    %cst_122 = arith.constant dense<0.000000e+00> : vector<8x512xf32>
    %236 = tpu.matmul %229, %4, %cst_122 {dimension_numbers = #tpu.dot_dimension_numbers<[1], [0], [0], [1], [0, 0, 1, 1], [], []>} : vector<8x128xf32>, vector<128x512xf32>, vector<8x512xf32> -> vector<8x512xf32>
    %c1_123 = arith.constant 1 : index
    %c0_124 = arith.constant 0 : index
    %c0_125 = arith.constant 0 : index
    %237 = vector.load %arg9[%c1_123, %c0_124, %c0_125] : memref<2x8x128xf32, #tpu.memory_space<vmem>>, vector<1x8x128xf32>
    %238 = vector.shape_cast %237 : vector<1x8x128xf32> to vector<8x128xf32>
    %cst_126 = arith.constant dense<0.000000e+00> : vector<8x512xf32>
    %239 = tpu.matmul %238, %5, %cst_126 {dimension_numbers = #tpu.dot_dimension_numbers<[1], [0], [0], [1], [0, 0, 1, 1], [], []>} : vector<8x128xf32>, vector<128x512xf32>, vector<8x512xf32> -> vector<8x512xf32>
    %240 = arith.addf %236, %239 : vector<8x512xf32>
    %241 = vector.broadcast %6 : vector<1x512xf32> to vector<8x512xf32>
    %242 = arith.addf %240, %241 : vector<8x512xf32>
    %c1_127 = arith.constant 1 : index
    %c0_128 = arith.constant 0 : index
    %c0_129 = arith.constant 0 : index
    %243 = vector.load %arg10[%c1_127, %c0_128, %c0_129] : memref<2x8x128xf32, #tpu.memory_space<vmem>>, vector<1x8x128xf32>
    %244 = vector.shape_cast %243 : vector<1x8x128xf32> to vector<8x128xf32>
    %245 = vector.extract_strided_slice %242 {offsets = [0, 0], sizes = [8, 384], strides = [1, 1]} : vector<8x512xf32> to vector<8x384xf32>
    %246 = arith.negf %245 : vector<8x384xf32>
    %247 = math.exp %246 : vector<8x384xf32>
    %cst_130 = arith.constant 1.000000e+00 : f32
    %248 = vector.broadcast %cst_130 : f32 to vector<8x384xf32>
    %249 = arith.addf %248, %247 : vector<8x384xf32>
    %250 = arith.divf %248, %249 : vector<8x384xf32>
    %251 = vector.extract_strided_slice %242 {offsets = [0, 384], sizes = [8, 128], strides = [1, 1]} : vector<8x512xf32> to vector<8x128xf32>
    %252 = math.tanh %251 : vector<8x128xf32>
    %253 = vector.extract_strided_slice %250 {offsets = [0, 0], sizes = [8, 128], strides = [1, 1]} : vector<8x384xf32> to vector<8x128xf32>
    %254 = vector.extract_strided_slice %250 {offsets = [0, 128], sizes = [8, 128], strides = [1, 1]} : vector<8x384xf32> to vector<8x128xf32>
    %255 = vector.extract_strided_slice %250 {offsets = [0, 256], sizes = [8, 128], strides = [1, 1]} : vector<8x384xf32> to vector<8x128xf32>
    %256 = arith.mulf %254, %244 : vector<8x128xf32>
    %257 = arith.mulf %253, %252 : vector<8x128xf32>
    %258 = arith.addf %256, %257 : vector<8x128xf32>
    %259 = math.tanh %258 : vector<8x128xf32>
    %260 = arith.mulf %255, %259 : vector<8x128xf32>
    %c1_131 = arith.constant 1 : index
    %c0_132 = arith.constant 0 : index
    %c0_133 = arith.constant 0 : index
    %261 = vector.load %arg9[%c1_131, %c0_132, %c0_133] : memref<2x8x128xf32, #tpu.memory_space<vmem>>, vector<1x8x128xf32>
    %262 = vector.shape_cast %261 : vector<1x8x128xf32> to vector<8x128xf32>
    %263 = vector.shape_cast %260 : vector<8x128xf32> to vector<1x8x128xf32>
    tpu.vector_store %arg9[%c1_131, %c0_132, %c0_133], %263 {strides = array<i32>} : memref<2x8x128xf32, #tpu.memory_space<vmem>>, vector<1x8x128xf32>,
    %c1_134 = arith.constant 1 : index
    %c0_135 = arith.constant 0 : index
    %c0_136 = arith.constant 0 : index
    %264 = vector.load %arg10[%c1_134, %c0_135, %c0_136] : memref<2x8x128xf32, #tpu.memory_space<vmem>>, vector<1x8x128xf32>
    %265 = vector.shape_cast %264 : vector<1x8x128xf32> to vector<8x128xf32>
    %266 = vector.shape_cast %258 : vector<8x128xf32> to vector<1x8x128xf32>
    tpu.vector_store %arg10[%c1_134, %c0_135, %c0_136], %266 {strides = array<i32>} : memref<2x8x128xf32, #tpu.memory_space<vmem>>, vector<1x8x128xf32>,
    %267 = arith.index_cast %c3_i32 : i32 to index
    %c0_137 = arith.constant 0 : index
    %c0_138 = arith.constant 0 : index
    %268 = vector.load %arg8[%267, %c0_137, %c0_138] : memref<8x8x128xf32, #tpu.memory_space<vmem>>, vector<1x8x128xf32>
    %269 = vector.shape_cast %268 : vector<1x8x128xf32> to vector<8x128xf32>
    %270 = vector.shape_cast %260 : vector<8x128xf32> to vector<1x8x128xf32>
    tpu.vector_store %arg8[%267, %c0_137, %c0_138], %270 {strides = array<i32>} : memref<8x8x128xf32, #tpu.memory_space<vmem>>, vector<1x8x128xf32>,
    %c4_i32 = arith.constant 4 : i32
    %271 = arith.index_cast %c4_i32 : i32 to index
    %c0_139 = arith.constant 0 : index
    %c0_140 = arith.constant 0 : index
    %272 = vector.load %arg1[%271, %c0_139, %c0_140] : memref<8x8x512xf32, #tpu.memory_space<vmem>>, vector<1x8x512xf32>
    %273 = vector.shape_cast %272 : vector<1x8x512xf32> to vector<8x512xf32>
    %c0_141 = arith.constant 0 : index
    %c0_142 = arith.constant 0 : index
    %c0_143 = arith.constant 0 : index
    %274 = vector.load %arg9[%c0_141, %c0_142, %c0_143] : memref<2x8x128xf32, #tpu.memory_space<vmem>>, vector<1x8x128xf32>
    %275 = vector.shape_cast %274 : vector<1x8x128xf32> to vector<8x128xf32>
    %cst_144 = arith.constant dense<0.000000e+00> : vector<8x512xf32>
    %276 = tpu.matmul %275, %3, %cst_144 {dimension_numbers = #tpu.dot_dimension_numbers<[1], [0], [0], [1], [0, 0, 1, 1], [], []>} : vector<8x128xf32>, vector<128x512xf32>, vector<8x512xf32> -> vector<8x512xf32>
    %277 = arith.addf %273, %276 : vector<8x512xf32>
    %c0_145 = arith.constant 0 : index
    %c0_146 = arith.constant 0 : index
    %c0_147 = arith.constant 0 : index
    %278 = vector.load %arg10[%c0_145, %c0_146, %c0_147] : memref<2x8x128xf32, #tpu.memory_space<vmem>>, vector<1x8x128xf32>
    %279 = vector.shape_cast %278 : vector<1x8x128xf32> to vector<8x128xf32>
    %280 = vector.extract_strided_slice %277 {offsets = [0, 0], sizes = [8, 384], strides = [1, 1]} : vector<8x512xf32> to vector<8x384xf32>
    %281 = arith.negf %280 : vector<8x384xf32>
    %282 = math.exp %281 : vector<8x384xf32>
    %cst_148 = arith.constant 1.000000e+00 : f32
    %283 = vector.broadcast %cst_148 : f32 to vector<8x384xf32>
    %284 = arith.addf %283, %282 : vector<8x384xf32>
    %285 = arith.divf %283, %284 : vector<8x384xf32>
    %286 = vector.extract_strided_slice %277 {offsets = [0, 384], sizes = [8, 128], strides = [1, 1]} : vector<8x512xf32> to vector<8x128xf32>
    %287 = math.tanh %286 : vector<8x128xf32>
    %288 = vector.extract_strided_slice %285 {offsets = [0, 0], sizes = [8, 128], strides = [1, 1]} : vector<8x384xf32> to vector<8x128xf32>
    %289 = vector.extract_strided_slice %285 {offsets = [0, 128], sizes = [8, 128], strides = [1, 1]} : vector<8x384xf32> to vector<8x128xf32>
    %290 = vector.extract_strided_slice %285 {offsets = [0, 256], sizes = [8, 128], strides = [1, 1]} : vector<8x384xf32> to vector<8x128xf32>
    %291 = arith.mulf %289, %279 : vector<8x128xf32>
    %292 = arith.mulf %288, %287 : vector<8x128xf32>
    %293 = arith.addf %291, %292 : vector<8x128xf32>
    %294 = math.tanh %293 : vector<8x128xf32>
    %295 = arith.mulf %290, %294 : vector<8x128xf32>
    %c0_149 = arith.constant 0 : index
    %c0_150 = arith.constant 0 : index
    %c0_151 = arith.constant 0 : index
    %296 = vector.load %arg9[%c0_149, %c0_150, %c0_151] : memref<2x8x128xf32, #tpu.memory_space<vmem>>, vector<1x8x128xf32>
    %297 = vector.shape_cast %296 : vector<1x8x128xf32> to vector<8x128xf32>
    %298 = vector.shape_cast %295 : vector<8x128xf32> to vector<1x8x128xf32>
    tpu.vector_store %arg9[%c0_149, %c0_150, %c0_151], %298 {strides = array<i32>} : memref<2x8x128xf32, #tpu.memory_space<vmem>>, vector<1x8x128xf32>,
    %c0_152 = arith.constant 0 : index
    %c0_153 = arith.constant 0 : index
    %c0_154 = arith.constant 0 : index
    %299 = vector.load %arg10[%c0_152, %c0_153, %c0_154] : memref<2x8x128xf32, #tpu.memory_space<vmem>>, vector<1x8x128xf32>
    %300 = vector.shape_cast %299 : vector<1x8x128xf32> to vector<8x128xf32>
    %301 = vector.shape_cast %293 : vector<8x128xf32> to vector<1x8x128xf32>
    tpu.vector_store %arg10[%c0_152, %c0_153, %c0_154], %301 {strides = array<i32>} : memref<2x8x128xf32, #tpu.memory_space<vmem>>, vector<1x8x128xf32>,
    %cst_155 = arith.constant dense<0.000000e+00> : vector<8x512xf32>
    %302 = tpu.matmul %295, %4, %cst_155 {dimension_numbers = #tpu.dot_dimension_numbers<[1], [0], [0], [1], [0, 0, 1, 1], [], []>} : vector<8x128xf32>, vector<128x512xf32>, vector<8x512xf32> -> vector<8x512xf32>
    %c1_156 = arith.constant 1 : index
    %c0_157 = arith.constant 0 : index
    %c0_158 = arith.constant 0 : index
    %303 = vector.load %arg9[%c1_156, %c0_157, %c0_158] : memref<2x8x128xf32, #tpu.memory_space<vmem>>, vector<1x8x128xf32>
    %304 = vector.shape_cast %303 : vector<1x8x128xf32> to vector<8x128xf32>
    %cst_159 = arith.constant dense<0.000000e+00> : vector<8x512xf32>
    %305 = tpu.matmul %304, %5, %cst_159 {dimension_numbers = #tpu.dot_dimension_numbers<[1], [0], [0], [1], [0, 0, 1, 1], [], []>} : vector<8x128xf32>, vector<128x512xf32>, vector<8x512xf32> -> vector<8x512xf32>
    %306 = arith.addf %302, %305 : vector<8x512xf32>
    %307 = vector.broadcast %6 : vector<1x512xf32> to vector<8x512xf32>
    %308 = arith.addf %306, %307 : vector<8x512xf32>
    %c1_160 = arith.constant 1 : index
    %c0_161 = arith.constant 0 : index
    %c0_162 = arith.constant 0 : index
    %309 = vector.load %arg10[%c1_160, %c0_161, %c0_162] : memref<2x8x128xf32, #tpu.memory_space<vmem>>, vector<1x8x128xf32>
    %310 = vector.shape_cast %309 : vector<1x8x128xf32> to vector<8x128xf32>
    %311 = vector.extract_strided_slice %308 {offsets = [0, 0], sizes = [8, 384], strides = [1, 1]} : vector<8x512xf32> to vector<8x384xf32>
    %312 = arith.negf %311 : vector<8x384xf32>
    %313 = math.exp %312 : vector<8x384xf32>
    %cst_163 = arith.constant 1.000000e+00 : f32
    %314 = vector.broadcast %cst_163 : f32 to vector<8x384xf32>
    %315 = arith.addf %314, %313 : vector<8x384xf32>
    %316 = arith.divf %314, %315 : vector<8x384xf32>
    %317 = vector.extract_strided_slice %308 {offsets = [0, 384], sizes = [8, 128], strides = [1, 1]} : vector<8x512xf32> to vector<8x128xf32>
    %318 = math.tanh %317 : vector<8x128xf32>
    %319 = vector.extract_strided_slice %316 {offsets = [0, 0], sizes = [8, 128], strides = [1, 1]} : vector<8x384xf32> to vector<8x128xf32>
    %320 = vector.extract_strided_slice %316 {offsets = [0, 128], sizes = [8, 128], strides = [1, 1]} : vector<8x384xf32> to vector<8x128xf32>
    %321 = vector.extract_strided_slice %316 {offsets = [0, 256], sizes = [8, 128], strides = [1, 1]} : vector<8x384xf32> to vector<8x128xf32>
    %322 = arith.mulf %320, %310 : vector<8x128xf32>
    %323 = arith.mulf %319, %318 : vector<8x128xf32>
    %324 = arith.addf %322, %323 : vector<8x128xf32>
    %325 = math.tanh %324 : vector<8x128xf32>
    %326 = arith.mulf %321, %325 : vector<8x128xf32>
    %c1_164 = arith.constant 1 : index
    %c0_165 = arith.constant 0 : index
    %c0_166 = arith.constant 0 : index
    %327 = vector.load %arg9[%c1_164, %c0_165, %c0_166] : memref<2x8x128xf32, #tpu.memory_space<vmem>>, vector<1x8x128xf32>
    %328 = vector.shape_cast %327 : vector<1x8x128xf32> to vector<8x128xf32>
    %329 = vector.shape_cast %326 : vector<8x128xf32> to vector<1x8x128xf32>
    tpu.vector_store %arg9[%c1_164, %c0_165, %c0_166], %329 {strides = array<i32>} : memref<2x8x128xf32, #tpu.memory_space<vmem>>, vector<1x8x128xf32>,
    %c1_167 = arith.constant 1 : index
    %c0_168 = arith.constant 0 : index
    %c0_169 = arith.constant 0 : index
    %330 = vector.load %arg10[%c1_167, %c0_168, %c0_169] : memref<2x8x128xf32, #tpu.memory_space<vmem>>, vector<1x8x128xf32>
    %331 = vector.shape_cast %330 : vector<1x8x128xf32> to vector<8x128xf32>
    %332 = vector.shape_cast %324 : vector<8x128xf32> to vector<1x8x128xf32>
    tpu.vector_store %arg10[%c1_167, %c0_168, %c0_169], %332 {strides = array<i32>} : memref<2x8x128xf32, #tpu.memory_space<vmem>>, vector<1x8x128xf32>,
    %333 = arith.index_cast %c4_i32 : i32 to index
    %c0_170 = arith.constant 0 : index
    %c0_171 = arith.constant 0 : index
    %334 = vector.load %arg8[%333, %c0_170, %c0_171] : memref<8x8x128xf32, #tpu.memory_space<vmem>>, vector<1x8x128xf32>
    %335 = vector.shape_cast %334 : vector<1x8x128xf32> to vector<8x128xf32>
    %336 = vector.shape_cast %326 : vector<8x128xf32> to vector<1x8x128xf32>
    tpu.vector_store %arg8[%333, %c0_170, %c0_171], %336 {strides = array<i32>} : memref<8x8x128xf32, #tpu.memory_space<vmem>>, vector<1x8x128xf32>,
    %c5_i32 = arith.constant 5 : i32
    %337 = arith.index_cast %c5_i32 : i32 to index
    %c0_172 = arith.constant 0 : index
    %c0_173 = arith.constant 0 : index
    %338 = vector.load %arg1[%337, %c0_172, %c0_173] : memref<8x8x512xf32, #tpu.memory_space<vmem>>, vector<1x8x512xf32>
    %339 = vector.shape_cast %338 : vector<1x8x512xf32> to vector<8x512xf32>
    %c0_174 = arith.constant 0 : index
    %c0_175 = arith.constant 0 : index
    %c0_176 = arith.constant 0 : index
    %340 = vector.load %arg9[%c0_174, %c0_175, %c0_176] : memref<2x8x128xf32, #tpu.memory_space<vmem>>, vector<1x8x128xf32>
    %341 = vector.shape_cast %340 : vector<1x8x128xf32> to vector<8x128xf32>
    %cst_177 = arith.constant dense<0.000000e+00> : vector<8x512xf32>
    %342 = tpu.matmul %341, %3, %cst_177 {dimension_numbers = #tpu.dot_dimension_numbers<[1], [0], [0], [1], [0, 0, 1, 1], [], []>} : vector<8x128xf32>, vector<128x512xf32>, vector<8x512xf32> -> vector<8x512xf32>
    %343 = arith.addf %339, %342 : vector<8x512xf32>
    %c0_178 = arith.constant 0 : index
    %c0_179 = arith.constant 0 : index
    %c0_180 = arith.constant 0 : index
    %344 = vector.load %arg10[%c0_178, %c0_179, %c0_180] : memref<2x8x128xf32, #tpu.memory_space<vmem>>, vector<1x8x128xf32>
    %345 = vector.shape_cast %344 : vector<1x8x128xf32> to vector<8x128xf32>
    %346 = vector.extract_strided_slice %343 {offsets = [0, 0], sizes = [8, 384], strides = [1, 1]} : vector<8x512xf32> to vector<8x384xf32>
    %347 = arith.negf %346 : vector<8x384xf32>
    %348 = math.exp %347 : vector<8x384xf32>
    %cst_181 = arith.constant 1.000000e+00 : f32
    %349 = vector.broadcast %cst_181 : f32 to vector<8x384xf32>
    %350 = arith.addf %349, %348 : vector<8x384xf32>
    %351 = arith.divf %349, %350 : vector<8x384xf32>
    %352 = vector.extract_strided_slice %343 {offsets = [0, 384], sizes = [8, 128], strides = [1, 1]} : vector<8x512xf32> to vector<8x128xf32>
    %353 = math.tanh %352 : vector<8x128xf32>
    %354 = vector.extract_strided_slice %351 {offsets = [0, 0], sizes = [8, 128], strides = [1, 1]} : vector<8x384xf32> to vector<8x128xf32>
    %355 = vector.extract_strided_slice %351 {offsets = [0, 128], sizes = [8, 128], strides = [1, 1]} : vector<8x384xf32> to vector<8x128xf32>
    %356 = vector.extract_strided_slice %351 {offsets = [0, 256], sizes = [8, 128], strides = [1, 1]} : vector<8x384xf32> to vector<8x128xf32>
    %357 = arith.mulf %355, %345 : vector<8x128xf32>
    %358 = arith.mulf %354, %353 : vector<8x128xf32>
    %359 = arith.addf %357, %358 : vector<8x128xf32>
    %360 = math.tanh %359 : vector<8x128xf32>
    %361 = arith.mulf %356, %360 : vector<8x128xf32>
    %c0_182 = arith.constant 0 : index
    %c0_183 = arith.constant 0 : index
    %c0_184 = arith.constant 0 : index
    %362 = vector.load %arg9[%c0_182, %c0_183, %c0_184] : memref<2x8x128xf32, #tpu.memory_space<vmem>>, vector<1x8x128xf32>
    %363 = vector.shape_cast %362 : vector<1x8x128xf32> to vector<8x128xf32>
    %364 = vector.shape_cast %361 : vector<8x128xf32> to vector<1x8x128xf32>
    tpu.vector_store %arg9[%c0_182, %c0_183, %c0_184], %364 {strides = array<i32>} : memref<2x8x128xf32, #tpu.memory_space<vmem>>, vector<1x8x128xf32>,
    %c0_185 = arith.constant 0 : index
    %c0_186 = arith.constant 0 : index
    %c0_187 = arith.constant 0 : index
    %365 = vector.load %arg10[%c0_185, %c0_186, %c0_187] : memref<2x8x128xf32, #tpu.memory_space<vmem>>, vector<1x8x128xf32>
    %366 = vector.shape_cast %365 : vector<1x8x128xf32> to vector<8x128xf32>
    %367 = vector.shape_cast %359 : vector<8x128xf32> to vector<1x8x128xf32>
    tpu.vector_store %arg10[%c0_185, %c0_186, %c0_187], %367 {strides = array<i32>} : memref<2x8x128xf32, #tpu.memory_space<vmem>>, vector<1x8x128xf32>,
    %cst_188 = arith.constant dense<0.000000e+00> : vector<8x512xf32>
    %368 = tpu.matmul %361, %4, %cst_188 {dimension_numbers = #tpu.dot_dimension_numbers<[1], [0], [0], [1], [0, 0, 1, 1], [], []>} : vector<8x128xf32>, vector<128x512xf32>, vector<8x512xf32> -> vector<8x512xf32>
    %c1_189 = arith.constant 1 : index
    %c0_190 = arith.constant 0 : index
    %c0_191 = arith.constant 0 : index
    %369 = vector.load %arg9[%c1_189, %c0_190, %c0_191] : memref<2x8x128xf32, #tpu.memory_space<vmem>>, vector<1x8x128xf32>
    %370 = vector.shape_cast %369 : vector<1x8x128xf32> to vector<8x128xf32>
    %cst_192 = arith.constant dense<0.000000e+00> : vector<8x512xf32>
    %371 = tpu.matmul %370, %5, %cst_192 {dimension_numbers = #tpu.dot_dimension_numbers<[1], [0], [0], [1], [0, 0, 1, 1], [], []>} : vector<8x128xf32>, vector<128x512xf32>, vector<8x512xf32> -> vector<8x512xf32>
    %372 = arith.addf %368, %371 : vector<8x512xf32>
    %373 = vector.broadcast %6 : vector<1x512xf32> to vector<8x512xf32>
    %374 = arith.addf %372, %373 : vector<8x512xf32>
    %c1_193 = arith.constant 1 : index
    %c0_194 = arith.constant 0 : index
    %c0_195 = arith.constant 0 : index
    %375 = vector.load %arg10[%c1_193, %c0_194, %c0_195] : memref<2x8x128xf32, #tpu.memory_space<vmem>>, vector<1x8x128xf32>
    %376 = vector.shape_cast %375 : vector<1x8x128xf32> to vector<8x128xf32>
    %377 = vector.extract_strided_slice %374 {offsets = [0, 0], sizes = [8, 384], strides = [1, 1]} : vector<8x512xf32> to vector<8x384xf32>
    %378 = arith.negf %377 : vector<8x384xf32>
    %379 = math.exp %378 : vector<8x384xf32>
    %cst_196 = arith.constant 1.000000e+00 : f32
    %380 = vector.broadcast %cst_196 : f32 to vector<8x384xf32>
    %381 = arith.addf %380, %379 : vector<8x384xf32>
    %382 = arith.divf %380, %381 : vector<8x384xf32>
    %383 = vector.extract_strided_slice %374 {offsets = [0, 384], sizes = [8, 128], strides = [1, 1]} : vector<8x512xf32> to vector<8x128xf32>
    %384 = math.tanh %383 : vector<8x128xf32>
    %385 = vector.extract_strided_slice %382 {offsets = [0, 0], sizes = [8, 128], strides = [1, 1]} : vector<8x384xf32> to vector<8x128xf32>
    %386 = vector.extract_strided_slice %382 {offsets = [0, 128], sizes = [8, 128], strides = [1, 1]} : vector<8x384xf32> to vector<8x128xf32>
    %387 = vector.extract_strided_slice %382 {offsets = [0, 256], sizes = [8, 128], strides = [1, 1]} : vector<8x384xf32> to vector<8x128xf32>
    %388 = arith.mulf %386, %376 : vector<8x128xf32>
    %389 = arith.mulf %385, %384 : vector<8x128xf32>
    %390 = arith.addf %388, %389 : vector<8x128xf32>
    %391 = math.tanh %390 : vector<8x128xf32>
    %392 = arith.mulf %387, %391 : vector<8x128xf32>
    %c1_197 = arith.constant 1 : index
    %c0_198 = arith.constant 0 : index
    %c0_199 = arith.constant 0 : index
    %393 = vector.load %arg9[%c1_197, %c0_198, %c0_199] : memref<2x8x128xf32, #tpu.memory_space<vmem>>, vector<1x8x128xf32>
    %394 = vector.shape_cast %393 : vector<1x8x128xf32> to vector<8x128xf32>
    %395 = vector.shape_cast %392 : vector<8x128xf32> to vector<1x8x128xf32>
    tpu.vector_store %arg9[%c1_197, %c0_198, %c0_199], %395 {strides = array<i32>} : memref<2x8x128xf32, #tpu.memory_space<vmem>>, vector<1x8x128xf32>,
    %c1_200 = arith.constant 1 : index
    %c0_201 = arith.constant 0 : index
    %c0_202 = arith.constant 0 : index
    %396 = vector.load %arg10[%c1_200, %c0_201, %c0_202] : memref<2x8x128xf32, #tpu.memory_space<vmem>>, vector<1x8x128xf32>
    %397 = vector.shape_cast %396 : vector<1x8x128xf32> to vector<8x128xf32>
    %398 = vector.shape_cast %390 : vector<8x128xf32> to vector<1x8x128xf32>
    tpu.vector_store %arg10[%c1_200, %c0_201, %c0_202], %398 {strides = array<i32>} : memref<2x8x128xf32, #tpu.memory_space<vmem>>, vector<1x8x128xf32>,
    %399 = arith.index_cast %c5_i32 : i32 to index
    %c0_203 = arith.constant 0 : index
    %c0_204 = arith.constant 0 : index
    %400 = vector.load %arg8[%399, %c0_203, %c0_204] : memref<8x8x128xf32, #tpu.memory_space<vmem>>, vector<1x8x128xf32>
    %401 = vector.shape_cast %400 : vector<1x8x128xf32> to vector<8x128xf32>
    %402 = vector.shape_cast %392 : vector<8x128xf32> to vector<1x8x128xf32>
    tpu.vector_store %arg8[%399, %c0_203, %c0_204], %402 {strides = array<i32>} : memref<8x8x128xf32, #tpu.memory_space<vmem>>, vector<1x8x128xf32>,
    %c6_i32 = arith.constant 6 : i32
    %403 = arith.index_cast %c6_i32 : i32 to index
    %c0_205 = arith.constant 0 : index
    %c0_206 = arith.constant 0 : index
    %404 = vector.load %arg1[%403, %c0_205, %c0_206] : memref<8x8x512xf32, #tpu.memory_space<vmem>>, vector<1x8x512xf32>
    %405 = vector.shape_cast %404 : vector<1x8x512xf32> to vector<8x512xf32>
    %c0_207 = arith.constant 0 : index
    %c0_208 = arith.constant 0 : index
    %c0_209 = arith.constant 0 : index
    %406 = vector.load %arg9[%c0_207, %c0_208, %c0_209] : memref<2x8x128xf32, #tpu.memory_space<vmem>>, vector<1x8x128xf32>
    %407 = vector.shape_cast %406 : vector<1x8x128xf32> to vector<8x128xf32>
    %cst_210 = arith.constant dense<0.000000e+00> : vector<8x512xf32>
    %408 = tpu.matmul %407, %3, %cst_210 {dimension_numbers = #tpu.dot_dimension_numbers<[1], [0], [0], [1], [0, 0, 1, 1], [], []>} : vector<8x128xf32>, vector<128x512xf32>, vector<8x512xf32> -> vector<8x512xf32>
    %409 = arith.addf %405, %408 : vector<8x512xf32>
    %c0_211 = arith.constant 0 : index
    %c0_212 = arith.constant 0 : index
    %c0_213 = arith.constant 0 : index
    %410 = vector.load %arg10[%c0_211, %c0_212, %c0_213] : memref<2x8x128xf32, #tpu.memory_space<vmem>>, vector<1x8x128xf32>
    %411 = vector.shape_cast %410 : vector<1x8x128xf32> to vector<8x128xf32>
    %412 = vector.extract_strided_slice %409 {offsets = [0, 0], sizes = [8, 384], strides = [1, 1]} : vector<8x512xf32> to vector<8x384xf32>
    %413 = arith.negf %412 : vector<8x384xf32>
    %414 = math.exp %413 : vector<8x384xf32>
    %cst_214 = arith.constant 1.000000e+00 : f32
    %415 = vector.broadcast %cst_214 : f32 to vector<8x384xf32>
    %416 = arith.addf %415, %414 : vector<8x384xf32>
    %417 = arith.divf %415, %416 : vector<8x384xf32>
    %418 = vector.extract_strided_slice %409 {offsets = [0, 384], sizes = [8, 128], strides = [1, 1]} : vector<8x512xf32> to vector<8x128xf32>
    %419 = math.tanh %418 : vector<8x128xf32>
    %420 = vector.extract_strided_slice %417 {offsets = [0, 0], sizes = [8, 128], strides = [1, 1]} : vector<8x384xf32> to vector<8x128xf32>
    %421 = vector.extract_strided_slice %417 {offsets = [0, 128], sizes = [8, 128], strides = [1, 1]} : vector<8x384xf32> to vector<8x128xf32>
    %422 = vector.extract_strided_slice %417 {offsets = [0, 256], sizes = [8, 128], strides = [1, 1]} : vector<8x384xf32> to vector<8x128xf32>
    %423 = arith.mulf %421, %411 : vector<8x128xf32>
    %424 = arith.mulf %420, %419 : vector<8x128xf32>
    %425 = arith.addf %423, %424 : vector<8x128xf32>
    %426 = math.tanh %425 : vector<8x128xf32>
    %427 = arith.mulf %422, %426 : vector<8x128xf32>
    %c0_215 = arith.constant 0 : index
    %c0_216 = arith.constant 0 : index
    %c0_217 = arith.constant 0 : index
    %428 = vector.load %arg9[%c0_215, %c0_216, %c0_217] : memref<2x8x128xf32, #tpu.memory_space<vmem>>, vector<1x8x128xf32>
    %429 = vector.shape_cast %428 : vector<1x8x128xf32> to vector<8x128xf32>
    %430 = vector.shape_cast %427 : vector<8x128xf32> to vector<1x8x128xf32>
    tpu.vector_store %arg9[%c0_215, %c0_216, %c0_217], %430 {strides = array<i32>} : memref<2x8x128xf32, #tpu.memory_space<vmem>>, vector<1x8x128xf32>,
    %c0_218 = arith.constant 0 : index
    %c0_219 = arith.constant 0 : index
    %c0_220 = arith.constant 0 : index
    %431 = vector.load %arg10[%c0_218, %c0_219, %c0_220] : memref<2x8x128xf32, #tpu.memory_space<vmem>>, vector<1x8x128xf32>
    %432 = vector.shape_cast %431 : vector<1x8x128xf32> to vector<8x128xf32>
    %433 = vector.shape_cast %425 : vector<8x128xf32> to vector<1x8x128xf32>
    tpu.vector_store %arg10[%c0_218, %c0_219, %c0_220], %433 {strides = array<i32>} : memref<2x8x128xf32, #tpu.memory_space<vmem>>, vector<1x8x128xf32>,
    %cst_221 = arith.constant dense<0.000000e+00> : vector<8x512xf32>
    %434 = tpu.matmul %427, %4, %cst_221 {dimension_numbers = #tpu.dot_dimension_numbers<[1], [0], [0], [1], [0, 0, 1, 1], [], []>} : vector<8x128xf32>, vector<128x512xf32>, vector<8x512xf32> -> vector<8x512xf32>
    %c1_222 = arith.constant 1 : index
    %c0_223 = arith.constant 0 : index
    %c0_224 = arith.constant 0 : index
    %435 = vector.load %arg9[%c1_222, %c0_223, %c0_224] : memref<2x8x128xf32, #tpu.memory_space<vmem>>, vector<1x8x128xf32>
    %436 = vector.shape_cast %435 : vector<1x8x128xf32> to vector<8x128xf32>
    %cst_225 = arith.constant dense<0.000000e+00> : vector<8x512xf32>
    %437 = tpu.matmul %436, %5, %cst_225 {dimension_numbers = #tpu.dot_dimension_numbers<[1], [0], [0], [1], [0, 0, 1, 1], [], []>} : vector<8x128xf32>, vector<128x512xf32>, vector<8x512xf32> -> vector<8x512xf32>
    %438 = arith.addf %434, %437 : vector<8x512xf32>
    %439 = vector.broadcast %6 : vector<1x512xf32> to vector<8x512xf32>
    %440 = arith.addf %438, %439 : vector<8x512xf32>
    %c1_226 = arith.constant 1 : index
    %c0_227 = arith.constant 0 : index
    %c0_228 = arith.constant 0 : index
    %441 = vector.load %arg10[%c1_226, %c0_227, %c0_228] : memref<2x8x128xf32, #tpu.memory_space<vmem>>, vector<1x8x128xf32>
    %442 = vector.shape_cast %441 : vector<1x8x128xf32> to vector<8x128xf32>
    %443 = vector.extract_strided_slice %440 {offsets = [0, 0], sizes = [8, 384], strides = [1, 1]} : vector<8x512xf32> to vector<8x384xf32>
    %444 = arith.negf %443 : vector<8x384xf32>
    %445 = math.exp %444 : vector<8x384xf32>
    %cst_229 = arith.constant 1.000000e+00 : f32
    %446 = vector.broadcast %cst_229 : f32 to vector<8x384xf32>
    %447 = arith.addf %446, %445 : vector<8x384xf32>
    %448 = arith.divf %446, %447 : vector<8x384xf32>
    %449 = vector.extract_strided_slice %440 {offsets = [0, 384], sizes = [8, 128], strides = [1, 1]} : vector<8x512xf32> to vector<8x128xf32>
    %450 = math.tanh %449 : vector<8x128xf32>
    %451 = vector.extract_strided_slice %448 {offsets = [0, 0], sizes = [8, 128], strides = [1, 1]} : vector<8x384xf32> to vector<8x128xf32>
    %452 = vector.extract_strided_slice %448 {offsets = [0, 128], sizes = [8, 128], strides = [1, 1]} : vector<8x384xf32> to vector<8x128xf32>
    %453 = vector.extract_strided_slice %448 {offsets = [0, 256], sizes = [8, 128], strides = [1, 1]} : vector<8x384xf32> to vector<8x128xf32>
    %454 = arith.mulf %452, %442 : vector<8x128xf32>
    %455 = arith.mulf %451, %450 : vector<8x128xf32>
    %456 = arith.addf %454, %455 : vector<8x128xf32>
    %457 = math.tanh %456 : vector<8x128xf32>
    %458 = arith.mulf %453, %457 : vector<8x128xf32>
    %c1_230 = arith.constant 1 : index
    %c0_231 = arith.constant 0 : index
    %c0_232 = arith.constant 0 : index
    %459 = vector.load %arg9[%c1_230, %c0_231, %c0_232] : memref<2x8x128xf32, #tpu.memory_space<vmem>>, vector<1x8x128xf32>
    %460 = vector.shape_cast %459 : vector<1x8x128xf32> to vector<8x128xf32>
    %461 = vector.shape_cast %458 : vector<8x128xf32> to vector<1x8x128xf32>
    tpu.vector_store %arg9[%c1_230, %c0_231, %c0_232], %461 {strides = array<i32>} : memref<2x8x128xf32, #tpu.memory_space<vmem>>, vector<1x8x128xf32>,
    %c1_233 = arith.constant 1 : index
    %c0_234 = arith.constant 0 : index
    %c0_235 = arith.constant 0 : index
    %462 = vector.load %arg10[%c1_233, %c0_234, %c0_235] : memref<2x8x128xf32, #tpu.memory_space<vmem>>, vector<1x8x128xf32>
    %463 = vector.shape_cast %462 : vector<1x8x128xf32> to vector<8x128xf32>
    %464 = vector.shape_cast %456 : vector<8x128xf32> to vector<1x8x128xf32>
    tpu.vector_store %arg10[%c1_233, %c0_234, %c0_235], %464 {strides = array<i32>} : memref<2x8x128xf32, #tpu.memory_space<vmem>>, vector<1x8x128xf32>,
    %465 = arith.index_cast %c6_i32 : i32 to index
    %c0_236 = arith.constant 0 : index
    %c0_237 = arith.constant 0 : index
    %466 = vector.load %arg8[%465, %c0_236, %c0_237] : memref<8x8x128xf32, #tpu.memory_space<vmem>>, vector<1x8x128xf32>
    %467 = vector.shape_cast %466 : vector<1x8x128xf32> to vector<8x128xf32>
    %468 = vector.shape_cast %458 : vector<8x128xf32> to vector<1x8x128xf32>
    tpu.vector_store %arg8[%465, %c0_236, %c0_237], %468 {strides = array<i32>} : memref<8x8x128xf32, #tpu.memory_space<vmem>>, vector<1x8x128xf32>,
    %c7_i32 = arith.constant 7 : i32
    %469 = arith.index_cast %c7_i32 : i32 to index
    %c0_238 = arith.constant 0 : index
    %c0_239 = arith.constant 0 : index
    %470 = vector.load %arg1[%469, %c0_238, %c0_239] : memref<8x8x512xf32, #tpu.memory_space<vmem>>, vector<1x8x512xf32>
    %471 = vector.shape_cast %470 : vector<1x8x512xf32> to vector<8x512xf32>
    %c0_240 = arith.constant 0 : index
    %c0_241 = arith.constant 0 : index
    %c0_242 = arith.constant 0 : index
    %472 = vector.load %arg9[%c0_240, %c0_241, %c0_242] : memref<2x8x128xf32, #tpu.memory_space<vmem>>, vector<1x8x128xf32>
    %473 = vector.shape_cast %472 : vector<1x8x128xf32> to vector<8x128xf32>
    %cst_243 = arith.constant dense<0.000000e+00> : vector<8x512xf32>
    %474 = tpu.matmul %473, %3, %cst_243 {dimension_numbers = #tpu.dot_dimension_numbers<[1], [0], [0], [1], [0, 0, 1, 1], [], []>} : vector<8x128xf32>, vector<128x512xf32>, vector<8x512xf32> -> vector<8x512xf32>
    %475 = arith.addf %471, %474 : vector<8x512xf32>
    %c0_244 = arith.constant 0 : index
    %c0_245 = arith.constant 0 : index
    %c0_246 = arith.constant 0 : index
    %476 = vector.load %arg10[%c0_244, %c0_245, %c0_246] : memref<2x8x128xf32, #tpu.memory_space<vmem>>, vector<1x8x128xf32>
    %477 = vector.shape_cast %476 : vector<1x8x128xf32> to vector<8x128xf32>
    %478 = vector.extract_strided_slice %475 {offsets = [0, 0], sizes = [8, 384], strides = [1, 1]} : vector<8x512xf32> to vector<8x384xf32>
    %479 = arith.negf %478 : vector<8x384xf32>
    %480 = math.exp %479 : vector<8x384xf32>
    %cst_247 = arith.constant 1.000000e+00 : f32
    %481 = vector.broadcast %cst_247 : f32 to vector<8x384xf32>
    %482 = arith.addf %481, %480 : vector<8x384xf32>
    %483 = arith.divf %481, %482 : vector<8x384xf32>
    %484 = vector.extract_strided_slice %475 {offsets = [0, 384], sizes = [8, 128], strides = [1, 1]} : vector<8x512xf32> to vector<8x128xf32>
    %485 = math.tanh %484 : vector<8x128xf32>
    %486 = vector.extract_strided_slice %483 {offsets = [0, 0], sizes = [8, 128], strides = [1, 1]} : vector<8x384xf32> to vector<8x128xf32>
    %487 = vector.extract_strided_slice %483 {offsets = [0, 128], sizes = [8, 128], strides = [1, 1]} : vector<8x384xf32> to vector<8x128xf32>
    %488 = vector.extract_strided_slice %483 {offsets = [0, 256], sizes = [8, 128], strides = [1, 1]} : vector<8x384xf32> to vector<8x128xf32>
    %489 = arith.mulf %487, %477 : vector<8x128xf32>
    %490 = arith.mulf %486, %485 : vector<8x128xf32>
    %491 = arith.addf %489, %490 : vector<8x128xf32>
    %492 = math.tanh %491 : vector<8x128xf32>
    %493 = arith.mulf %488, %492 : vector<8x128xf32>
    %c0_248 = arith.constant 0 : index
    %c0_249 = arith.constant 0 : index
    %c0_250 = arith.constant 0 : index
    %494 = vector.load %arg9[%c0_248, %c0_249, %c0_250] : memref<2x8x128xf32, #tpu.memory_space<vmem>>, vector<1x8x128xf32>
    %495 = vector.shape_cast %494 : vector<1x8x128xf32> to vector<8x128xf32>
    %496 = vector.shape_cast %493 : vector<8x128xf32> to vector<1x8x128xf32>
    tpu.vector_store %arg9[%c0_248, %c0_249, %c0_250], %496 {strides = array<i32>} : memref<2x8x128xf32, #tpu.memory_space<vmem>>, vector<1x8x128xf32>,
    %c0_251 = arith.constant 0 : index
    %c0_252 = arith.constant 0 : index
    %c0_253 = arith.constant 0 : index
    %497 = vector.load %arg10[%c0_251, %c0_252, %c0_253] : memref<2x8x128xf32, #tpu.memory_space<vmem>>, vector<1x8x128xf32>
    %498 = vector.shape_cast %497 : vector<1x8x128xf32> to vector<8x128xf32>
    %499 = vector.shape_cast %491 : vector<8x128xf32> to vector<1x8x128xf32>
    tpu.vector_store %arg10[%c0_251, %c0_252, %c0_253], %499 {strides = array<i32>} : memref<2x8x128xf32, #tpu.memory_space<vmem>>, vector<1x8x128xf32>,
    %cst_254 = arith.constant dense<0.000000e+00> : vector<8x512xf32>
    %500 = tpu.matmul %493, %4, %cst_254 {dimension_numbers = #tpu.dot_dimension_numbers<[1], [0], [0], [1], [0, 0, 1, 1], [], []>} : vector<8x128xf32>, vector<128x512xf32>, vector<8x512xf32> -> vector<8x512xf32>
    %c1_255 = arith.constant 1 : index
    %c0_256 = arith.constant 0 : index
    %c0_257 = arith.constant 0 : index
    %501 = vector.load %arg9[%c1_255, %c0_256, %c0_257] : memref<2x8x128xf32, #tpu.memory_space<vmem>>, vector<1x8x128xf32>
    %502 = vector.shape_cast %501 : vector<1x8x128xf32> to vector<8x128xf32>
    %cst_258 = arith.constant dense<0.000000e+00> : vector<8x512xf32>
    %503 = tpu.matmul %502, %5, %cst_258 {dimension_numbers = #tpu.dot_dimension_numbers<[1], [0], [0], [1], [0, 0, 1, 1], [], []>} : vector<8x128xf32>, vector<128x512xf32>, vector<8x512xf32> -> vector<8x512xf32>
    %504 = arith.addf %500, %503 : vector<8x512xf32>
    %505 = vector.broadcast %6 : vector<1x512xf32> to vector<8x512xf32>
    %506 = arith.addf %504, %505 : vector<8x512xf32>
    %c1_259 = arith.constant 1 : index
    %c0_260 = arith.constant 0 : index
    %c0_261 = arith.constant 0 : index
    %507 = vector.load %arg10[%c1_259, %c0_260, %c0_261] : memref<2x8x128xf32, #tpu.memory_space<vmem>>, vector<1x8x128xf32>
    %508 = vector.shape_cast %507 : vector<1x8x128xf32> to vector<8x128xf32>
    %509 = vector.extract_strided_slice %506 {offsets = [0, 0], sizes = [8, 384], strides = [1, 1]} : vector<8x512xf32> to vector<8x384xf32>
    %510 = arith.negf %509 : vector<8x384xf32>
    %511 = math.exp %510 : vector<8x384xf32>
    %cst_262 = arith.constant 1.000000e+00 : f32
    %512 = vector.broadcast %cst_262 : f32 to vector<8x384xf32>
    %513 = arith.addf %512, %511 : vector<8x384xf32>
    %514 = arith.divf %512, %513 : vector<8x384xf32>
    %515 = vector.extract_strided_slice %506 {offsets = [0, 384], sizes = [8, 128], strides = [1, 1]} : vector<8x512xf32> to vector<8x128xf32>
    %516 = math.tanh %515 : vector<8x128xf32>
    %517 = vector.extract_strided_slice %514 {offsets = [0, 0], sizes = [8, 128], strides = [1, 1]} : vector<8x384xf32> to vector<8x128xf32>
    %518 = vector.extract_strided_slice %514 {offsets = [0, 128], sizes = [8, 128], strides = [1, 1]} : vector<8x384xf32> to vector<8x128xf32>
    %519 = vector.extract_strided_slice %514 {offsets = [0, 256], sizes = [8, 128], strides = [1, 1]} : vector<8x384xf32> to vector<8x128xf32>
    %520 = arith.mulf %518, %508 : vector<8x128xf32>
    %521 = arith.mulf %517, %516 : vector<8x128xf32>
    %522 = arith.addf %520, %521 : vector<8x128xf32>
    %523 = math.tanh %522 : vector<8x128xf32>
    %524 = arith.mulf %519, %523 : vector<8x128xf32>
    %c1_263 = arith.constant 1 : index
    %c0_264 = arith.constant 0 : index
    %c0_265 = arith.constant 0 : index
    %525 = vector.load %arg9[%c1_263, %c0_264, %c0_265] : memref<2x8x128xf32, #tpu.memory_space<vmem>>, vector<1x8x128xf32>
    %526 = vector.shape_cast %525 : vector<1x8x128xf32> to vector<8x128xf32>
    %527 = vector.shape_cast %524 : vector<8x128xf32> to vector<1x8x128xf32>
    tpu.vector_store %arg9[%c1_263, %c0_264, %c0_265], %527 {strides = array<i32>} : memref<2x8x128xf32, #tpu.memory_space<vmem>>, vector<1x8x128xf32>,
    %c1_266 = arith.constant 1 : index
    %c0_267 = arith.constant 0 : index
    %c0_268 = arith.constant 0 : index
    %528 = vector.load %arg10[%c1_266, %c0_267, %c0_268] : memref<2x8x128xf32, #tpu.memory_space<vmem>>, vector<1x8x128xf32>
    %529 = vector.shape_cast %528 : vector<1x8x128xf32> to vector<8x128xf32>
    %530 = vector.shape_cast %522 : vector<8x128xf32> to vector<1x8x128xf32>
    tpu.vector_store %arg10[%c1_266, %c0_267, %c0_268], %530 {strides = array<i32>} : memref<2x8x128xf32, #tpu.memory_space<vmem>>, vector<1x8x128xf32>,
    %531 = arith.index_cast %c7_i32 : i32 to index
    %c0_269 = arith.constant 0 : index
    %c0_270 = arith.constant 0 : index
    %532 = vector.load %arg8[%531, %c0_269, %c0_270] : memref<8x8x128xf32, #tpu.memory_space<vmem>>, vector<1x8x128xf32>
    %533 = vector.shape_cast %532 : vector<1x8x128xf32> to vector<8x128xf32>
    %534 = vector.shape_cast %524 : vector<8x128xf32> to vector<1x8x128xf32>
    tpu.vector_store %arg8[%531, %c0_269, %c0_270], %534 {strides = array<i32>} : memref<8x8x128xf32, #tpu.memory_space<vmem>>, vector<1x8x128xf32>,
    %c8_i32 = arith.constant 8 : i32
    return
  }
  func.func @transform_0(%arg0: i32) -> (i32, i32, i32) {
    %c0_i32 = arith.constant 0 : i32
    %c0_i32_0 = arith.constant 0 : i32
    %c0_i32_1 = arith.constant 0 : i32
    return %arg0, %c0_i32, %c0_i32_0 : i32, i32, i32
  }
  func.func @transform_1(%arg0: i32) -> (i32, i32) {
    %c0_i32 = arith.constant 0 : i32
    %c0_i32_0 = arith.constant 0 : i32
    %c0_i32_1 = arith.constant 0 : i32
    return %c0_i32, %c0_i32_0 : i32, i32
  }
  func.func @transform_2(%arg0: i32) -> (i32, i32) {
    %c0_i32 = arith.constant 0 : i32
    %c0_i32_0 = arith.constant 0 : i32
    %c0_i32_1 = arith.constant 0 : i32
    return %c0_i32, %c0_i32_0 : i32, i32
  }
  func.func @transform_3(%arg0: i32) -> (i32, i32) {
    %c0_i32 = arith.constant 0 : i32
    %c0_i32_0 = arith.constant 0 : i32
    %c0_i32_1 = arith.constant 0 : i32
    return %c0_i32, %c0_i32_0 : i32, i32
  }
  func.func @transform_4(%arg0: i32) -> (i32, i32) {
    %c0_i32 = arith.constant 0 : i32
    %c0_i32_0 = arith.constant 0 : i32
    %c0_i32_1 = arith.constant 0 : i32
    return %c0_i32, %c0_i32_0 : i32, i32
  }
  func.func @transform_5(%arg0: i32) -> (i32, i32, i32) {
    %c0_i32 = arith.constant 0 : i32
    %c0_i32_0 = arith.constant 0 : i32
    %c0_i32_1 = arith.constant 0 : i32
    %c0_i32_2 = arith.constant 0 : i32
    return %c0_i32, %c0_i32_0, %c0_i32_1 : i32, i32, i32
  }
  func.func @transform_6(%arg0: i32) -> (i32, i32, i32) {
    %c0_i32 = arith.constant 0 : i32
    %c0_i32_0 = arith.constant 0 : i32
    %c0_i32_1 = arith.constant 0 : i32
    %c0_i32_2 = arith.constant 0 : i32
    return %c0_i32, %c0_i32_0, %c0_i32_1 : i32, i32, i32
  }
  func.func @transform_7(%arg0: i32) -> (i32, i32, i32) {
    %c0_i32 = arith.constant 0 : i32
    %c0_i32_0 = arith.constant 0 : i32
    %c0_i32_1 = arith.constant 0 : i32
    return %arg0, %c0_i32, %c0_i32_0 : i32, i32, i32
  }
  func.func @transform_8(%arg0: i32) -> (i32, i32, i32) {
    %c0_i32 = arith.constant 0 : i32
    %c0_i32_0 = arith.constant 0 : i32
    %c0_i32_1 = arith.constant 0 : i32
    %c0_i32_2 = arith.constant 0 : i32
    return %c0_i32, %c0_i32_0, %c0_i32_1 : i32, i32, i32
  }
  func.func @transform_9(%arg0: i32) -> (i32, i32, i32) {
    %c0_i32 = arith.constant 0 : i32
    %c0_i32_0 = arith.constant 0 : i32
    %c0_i32_1 = arith.constant 0 : i32
    %c0_i32_2 = arith.constant 0 : i32
    return %c0_i32, %c0_i32_0, %c0_i32_1 : i32, i32, i32
  }
}

</mosaic_0001>

<llo_original>
// kernel: lstm_language_model_forward.3
$region0: #{lstm_language_model_forward.3}
  #allocation0 [shape = 'u32[]', space=smem, size = 0x4, offset = 0x4, fixed_abs, tag = 'smem constant byte address 0x4 - core index']
  #allocation1 [shape = 'u32[144,128]{1,0:T(1,128)}', space=vmem, size = 0x12000, scoped, tag = 'internal scratch']
  %s0 = inlined_call_operand.vmem [shape: f32[32,128], index: 0, kind: input, shape index: {}]
  %s1 = inlined_call_operand.hbm [shape: f32[128,512], index: 1, kind: input, shape index: {}]
  %s2 = inlined_call_operand.vmem [shape: f32[1,512], index: 2, kind: input, shape index: {}]
  %s3 = inlined_call_operand.vmem [shape: f32[32,512], index: 3, kind: output, shape index: {}]
  %s4 = sld [smem:[#allocation0]]
  $region26: #{lstm_language_model_forward.3} parent=0
    _
  %s6 = ssub.s32 1, %s4
  %s7 = scalar_select 0, %s6, %s4
  $region1: #{lstm_language_model_forward.3} parent=0
    #allocation2 [shape = 'u8[262144]{0}', space=vmem, size = 0x40000, scoped, tag = 'input window, operand 1, single buffered']
    #allocation3 [shape = 's32[1]{0}', space=sflag, size = 0x4, scoped, tag = 'scoped memory for lstm_language_model_forward.3']
    %8 = vsyncpa [#allocation3], 0
    // Predicated region
    $region2: #{lstm_language_model_forward.3} parent=1 // pred_check
      _
    $region3: #{lstm_language_model_forward.3} parent=1 // pred_check_branch
      %10 = sbr.rel (0) target = $region5
    $region4: #{lstm_language_model_forward.3} parent=1 // pred_region
      _
    $region5: #{lstm_language_model_forward.3} parent=1 // pred_fallthru
      _
    // Predicated region
    $region6: #{lstm_language_model_forward.3} parent=1 // pred_check
      _
    $region7: #{lstm_language_model_forward.3} parent=1 // pred_check_branch
      %12 = sbr.rel (0) target = $region9
    $region8: #{lstm_language_model_forward.3} parent=1 // pred_region
      %s14 = ssub.s32 8192, 8192
      %15 = vsyncadd [#allocation3], %s14
      %s16 = sshll.u32 [#allocation2], 4
      %s17 = int_to_ptr.vmem [resolvable:$true] %s16
      %22 = dma.hbm_to_vmem [thread:$0]  %s1, 8192, %s17, [#allocation3], 512, 512, 32
    $region9: #{lstm_language_model_forward.3} parent=1 // pred_fallthru
      _
    // Predicated region
    $region10: #{lstm_language_model_forward.3} parent=1 // pred_check
      _
    $region11: #{lstm_language_model_forward.3} parent=1 // pred_check_branch
      %24 = sbr.rel (0) target = $region13
    $region12: #{lstm_language_model_forward.3} parent=1 // pred_region
      _
    $region13: #{lstm_language_model_forward.3} parent=1 // pred_fallthru
      _
    // Predicated region
    $region14: #{lstm_language_model_forward.3} parent=1 // pred_check
      _
    $region15: #{lstm_language_model_forward.3} parent=1 // pred_check_branch
      %26 = sbr.rel (0) target = $region17
    $region16: #{lstm_language_model_forward.3} parent=1 // pred_region
      %27 = dma.done [#allocation3], 8192
    $region17: #{lstm_language_model_forward.3} parent=1 // pred_fallthru
      _
    %v28 = vld [vmem:[%s0] sm:$0xff]
    %v29 = vld [vmem:[%s0 + $0x8] sm:$0xff]
    %v30 = vld [vmem:[%s0 + $0x10] sm:$0xff]
    %v31 = vld [vmem:[%s0 + $0x18] sm:$0xff]
    %v32 = vld [vmem:[#allocation2] sm:$0xff]
    %v33 = vld [vmem:[#allocation2 + $0x8] sm:$0xff]
    %v34 = vld [vmem:[#allocation2 + $0x10] sm:$0xff]
    %v35 = vld [vmem:[#allocation2 + $0x18] sm:$0xff]
    %v36 = vld [vmem:[#allocation2 + $0x20] sm:$0xff]
    %v37 = vld [vmem:[#allocation2 + $0x28] sm:$0xff]
    %v38 = vld [vmem:[#allocation2 + $0x30] sm:$0xff]
    %v39 = vld [vmem:[#allocation2 + $0x38] sm:$0xff]
    %v40 = vld [vmem:[#allocation2 + $0x40] sm:$0xff]
    %v41 = vld [vmem:[#allocation2 + $0x48] sm:$0xff]
    %v42 = vld [vmem:[#allocation2 + $0x50] sm:$0xff]
    %v43 = vld [vmem:[#allocation2 + $0x58] sm:$0xff]
    %v44 = vld [vmem:[#allocation2 + $0x60] sm:$0xff]
    %v45 = vld [vmem:[#allocation2 + $0x68] sm:$0xff]
    %v46 = vld [vmem:[#allocation2 + $0x70] sm:$0xff]
    %v47 = vld [vmem:[#allocation2 + $0x78] sm:$0xff]
    %v48 = vld [vmem:[#allocation2 + $0x80] sm:$0xff]
    %v49 = vld [vmem:[#allocation2 + $0x88] sm:$0xff]
    %v50 = vld [vmem:[#allocation2 + $0x90] sm:$0xff]
    %v51 = vld [vmem:[#allocation2 + $0x98] sm:$0xff]
    %v52 = vld [vmem:[#allocation2 + $0xa0] sm:$0xff]
    %v53 = vld [vmem:[#allocation2 + $0xa8] sm:$0xff]
    %v54 = vld [vmem:[#allocation2 + $0xb0] sm:$0xff]
    %v55 = vld [vmem:[#allocation2 + $0xb8] sm:$0xff]
    %v56 = vld [vmem:[#allocation2 + $0xc0] sm:$0xff]
    %v57 = vld [vmem:[#allocation2 + $0xc8] sm:$0xff]
    %v58 = vld [vmem:[#allocation2 + $0xd0] sm:$0xff]
    %v59 = vld [vmem:[#allocation2 + $0xd8] sm:$0xff]
    %v60 = vld [vmem:[#allocation2 + $0xe0] sm:$0xff]
    %v61 = vld [vmem:[#allocation2 + $0xe8] sm:$0xff]
    %v62 = vld [vmem:[#allocation2 + $0xf0] sm:$0xff]
    %v63 = vld [vmem:[#allocation2 + $0xf8] sm:$0xff]
    %v64 = vld [vmem:[#allocation2 + $0x100] sm:$0xff]
    %v65 = vld [vmem:[#allocation2 + $0x108] sm:$0xff]
    %v66 = vld [vmem:[#allocation2 + $0x110] sm:$0xff]
    %v67 = vld [vmem:[#allocation2 + $0x118] sm:$0xff]
    %v68 = vld [vmem:[#allocation2 + $0x120] sm:$0xff]
    %v69 = vld [vmem:[#allocation2 + $0x128] sm:$0xff]
    %v70 = vld [vmem:[#allocation2 + $0x130] sm:$0xff]
    %v71 = vld [vmem:[#allocation2 + $0x138] sm:$0xff]
    %v72 = vld [vmem:[#allocation2 + $0x140] sm:$0xff]
    %v73 = vld [vmem:[#allocation2 + $0x148] sm:$0xff]
    %v74 = vld [vmem:[#allocation2 + $0x150] sm:$0xff]
    %v75 = vld [vmem:[#allocation2 + $0x158] sm:$0xff]
    %v76 = vld [vmem:[#allocation2 + $0x160] sm:$0xff]
    %v77 = vld [vmem:[#allocation2 + $0x168] sm:$0xff]
    %v78 = vld [vmem:[#allocation2 + $0x170] sm:$0xff]
    %v79 = vld [vmem:[#allocation2 + $0x178] sm:$0xff]
    %v80 = vld [vmem:[#allocation2 + $0x180] sm:$0xff]
    %v81 = vld [vmem:[#allocation2 + $0x188] sm:$0xff]
    %v82 = vld [vmem:[#allocation2 + $0x190] sm:$0xff]
    %v83 = vld [vmem:[#allocation2 + $0x198] sm:$0xff]
    %v84 = vld [vmem:[#allocation2 + $0x1a0] sm:$0xff]
    %v85 = vld [vmem:[#allocation2 + $0x1a8] sm:$0xff]
    %v86 = vld [vmem:[#allocation2 + $0x1b0] sm:$0xff]
    %v87 = vld [vmem:[#allocation2 + $0x1b8] sm:$0xff]
    %v88 = vld [vmem:[#allocation2 + $0x1c0] sm:$0xff]
    %v89 = vld [vmem:[#allocation2 + $0x1c8] sm:$0xff]
    %v90 = vld [vmem:[#allocation2 + $0x1d0] sm:$0xff]
    %v91 = vld [vmem:[#allocation2 + $0x1d8] sm:$0xff]
    %v92 = vld [vmem:[#allocation2 + $0x1e0] sm:$0xff]
    %v93 = vld [vmem:[#allocation2 + $0x1e8] sm:$0xff]
    %v94 = vld [vmem:[#allocation2 + $0x1f0] sm:$0xff]
    %v95 = vld [vmem:[#allocation2 + $0x1f8] sm:$0xff]
    %v96 = vld [vmem:[%s2] sm:$0xf]
    %v98 = vlaneseq
    %v99 = vshrl.u32 %v98, 7
    %v100 = vsub.s32 0, %v99
    %v101 = vrot.slane %v96, %v100
    %v102 = vlaneseq
    %v103 = vshrl.u32 %v102, 7
    %v104 = vsub.s32 1, %v103
    %v105 = vrot.slane %v96, %v104
    %v106 = vlaneseq
    %v107 = vshrl.u32 %v106, 7
    %v108 = vsub.s32 2, %v107
    %v109 = vrot.slane %v96, %v108
    %v110 = vlaneseq
    %v111 = vshrl.u32 %v110, 7
    %v112 = vsub.s32 3, %v111
    %v113 = vrot.slane %v96, %v112
    %118 = vmatprep.subr.mxu0 %v33
    %119 = vmatpush1.msra.mxu0 %v32
    %120 = vmatprep.subr.mxu0 %v37
    %121 = vmatpush1.msra.mxu0 %v36
    %122 = vmatprep.subr.mxu0 %v41
    %123 = vmatpush1.msra.mxu0 %v40
    %124 = vmatprep.subr.mxu0 %v45
    %125 = vmatpush1.msra.mxu0 %v44
    %126 = vmatprep.subr.mxu0 %v49
    %127 = vmatpush1.msra.mxu0 %v48
    %128 = vmatprep.subr.mxu0 %v53
    %129 = vmatpush1.msra.mxu0 %v52
    %130 = vmatprep.subr.mxu0 %v57
    %131 = vmatpush1.msra.mxu0 %v56
    %132 = vmatprep.subr.mxu0 %v61
    %133 = vmatpush1.msra.mxu0 %v60
    %134 = vmatprep.subr.mxu0 %v65
    %135 = vmatpush1.msra.mxu0 %v64
    %136 = vmatprep.subr.mxu0 %v69
    %137 = vmatpush1.msra.mxu0 %v68
    %138 = vmatprep.subr.mxu0 %v73
    %139 = vmatpush1.msra.mxu0 %v72
    %140 = vmatprep.subr.mxu0 %v77
    %141 = vmatpush1.msra.mxu0 %v76
    %142 = vmatprep.subr.mxu0 %v81
    %143 = vmatpush1.msra.mxu0 %v80
    %144 = vmatprep.subr.mxu0 %v85
    %145 = vmatpush1.msra.mxu0 %v84
    %146 = vmatprep.subr.mxu0 %v89
    %147 = vmatpush1.msra.mxu0 %v88
    %148 = vmatprep.subr.mxu0 %v93
    %149 = vmatpush1.msra.mxu0 %v92
    %150 = vmatprep.subr.mxu0 0.0
    %151 = vmatpush1.msra.mxu0 0.0
    %152 = vmatprep.subr.mxu0 0.0
    %153 = vmatpush1.msra.mxu0 0.0
    %154 = vmatprep.subr.mxu0 0.0
    %155 = vmatpush1.msra.mxu0 0.0
    %156 = vmatprep.subr.mxu0 0.0
    %157 = vmatpush1.msra.mxu0 0.0
    %158 = vmatprep.subr.mxu0 0.0
    %159 = vmatpush1.msra.mxu0 0.0
    %160 = vmatprep.subr.mxu0 0.0
    %161 = vmatpush1.msra.mxu0 0.0
    %162 = vmatprep.subr.mxu0 0.0
    %163 = vmatpush1.msra.mxu0 0.0
    %164 = vmatprep.subr.mxu0 0.0
    %165 = vmatpush1.msra.mxu0 0.0
    %166 = vmatprep.subr.mxu0 0.0
    %167 = vmatpush1.msra.mxu0 0.0
    %168 = vmatprep.subr.mxu0 0.0
    %169 = vmatpush1.msra.mxu0 0.0
    %170 = vmatprep.subr.mxu0 0.0
    %171 = vmatpush1.msra.mxu0 0.0
    %172 = vmatprep.subr.mxu0 0.0
    %173 = vmatpush1.msra.mxu0 0.0
    %174 = vmatprep.subr.mxu0 0.0
    %175 = vmatpush1.msra.mxu0 0.0
    %176 = vmatprep.subr.mxu0 0.0
    %177 = vmatpush1.msra.mxu0 0.0
    %178 = vmatprep.subr.mxu0 0.0
    %179 = vmatpush1.msra.mxu0 0.0
    %180 = vmatprep.subr.mxu0 0.0
    %181 = vmatpush1.msra.mxu0 0.0
    %182 = vmatprep.mubr.f32.mxu0 0.0
    %183 = vmatmul.mubr.f32.gmra.mrb[0].mxu0 %v28
    %v184 = vpop.f32.mrb[0].mxu0
    %v185 = vadd.f32 %v101, %v184
    %v186 = vpop.f32.mrb[0].mxu0
    %v187 = vadd.f32 %v105, %v186
    %188 = vmatprep.mubr.f32.mxu0 0.0
    %189 = vmatmul.mubr.f32.gmra.mrb[0].mxu0 %v29
    %v190 = vpop.f32.mrb[0].mxu0
    %v191 = vadd.f32 %v101, %v190
    %v192 = vpop.f32.mrb[0].mxu0
    %v193 = vadd.f32 %v105, %v192
    %194 = vmatprep.mubr.f32.mxu0 0.0
    %195 = vmatmul.mubr.f32.gmra.mrb[0].mxu0 %v30
    %v196 = vpop.f32.mrb[0].mxu0
    %v197 = vadd.f32 %v101, %v196
    %v198 = vpop.f32.mrb[0].mxu0
    %v199 = vadd.f32 %v105, %v198
    %200 = vmatprep.mubr.f32.mxu0 0.0
    %201 = vmatmul.mubr.f32.gmra.mrb[0].mxu0 %v31
    %v202 = vpop.f32.mrb[0].mxu0
    %v203 = vadd.f32 %v101, %v202
    %v204 = vpop.f32.mrb[0].mxu0
    %v205 = vadd.f32 %v105, %v204
    %206 = vdwg.mxu0
    %207 = vmatprep.subr.mxu0 %v35
    %208 = vmatpush1.msra.mxu0 %v34
    %209 = vmatprep.subr.mxu0 %v39
    %210 = vmatpush1.msra.mxu0 %v38
    %211 = vmatprep.subr.mxu0 %v43
    %212 = vmatpush1.msra.mxu0 %v42
    %213 = vmatprep.subr.mxu0 %v47
    %214 = vmatpush1.msra.mxu0 %v46
    %215 = vmatprep.subr.mxu0 %v51
    %216 = vmatpush1.msra.mxu0 %v50
    %217 = vmatprep.subr.mxu0 %v55
    %218 = vmatpush1.msra.mxu0 %v54
    %219 = vmatprep.subr.mxu0 %v59
    %220 = vmatpush1.msra.mxu0 %v58
    %221 = vmatprep.subr.mxu0 %v63
    %222 = vmatpush1.msra.mxu0 %v62
    %223 = vmatprep.subr.mxu0 %v67
    %224 = vmatpush1.msra.mxu0 %v66
    %225 = vmatprep.subr.mxu0 %v71
    %226 = vmatpush1.msra.mxu0 %v70
    %227 = vmatprep.subr.mxu0 %v75
    %228 = vmatpush1.msra.mxu0 %v74
    %229 = vmatprep.subr.mxu0 %v79
    %230 = vmatpush1.msra.mxu0 %v78
    %231 = vmatprep.subr.mxu0 %v83
    %232 = vmatpush1.msra.mxu0 %v82
    %233 = vmatprep.subr.mxu0 %v87
    %234 = vmatpush1.msra.mxu0 %v86
    %235 = vmatprep.subr.mxu0 %v91
    %236 = vmatpush1.msra.mxu0 %v90
    %237 = vmatprep.subr.mxu0 %v95
    %238 = vmatpush1.msra.mxu0 %v94
    %239 = vmatprep.subr.mxu0 0.0
    %240 = vmatpush1.msra.mxu0 0.0
    %241 = vmatprep.subr.mxu0 0.0
    %242 = vmatpush1.msra.mxu0 0.0
    %243 = vmatprep.subr.mxu0 0.0
    %244 = vmatpush1.msra.mxu0 0.0
    %245 = vmatprep.subr.mxu0 0.0
    %246 = vmatpush1.msra.mxu0 0.0
    %247 = vmatprep.subr.mxu0 0.0
    %248 = vmatpush1.msra.mxu0 0.0
    %249 = vmatprep.subr.mxu0 0.0
    %250 = vmatpush1.msra.mxu0 0.0
    %251 = vmatprep.subr.mxu0 0.0
    %252 = vmatpush1.msra.mxu0 0.0
    %253 = vmatprep.subr.mxu0 0.0
    %254 = vmatpush1.msra.mxu0 0.0
    %255 = vmatprep.subr.mxu0 0.0
    %256 = vmatpush1.msra.mxu0 0.0
    %257 = vmatprep.subr.mxu0 0.0
    %258 = vmatpush1.msra.mxu0 0.0
    %259 = vmatprep.subr.mxu0 0.0
    %260 = vmatpush1.msra.mxu0 0.0
    %261 = vmatprep.subr.mxu0 0.0
    %262 = vmatpush1.msra.mxu0 0.0
    %263 = vmatprep.subr.mxu0 0.0
    %264 = vmatpush1.msra.mxu0 0.0
    %265 = vmatprep.subr.mxu0 0.0
    %266 = vmatpush1.msra.mxu0 0.0
    %267 = vmatprep.subr.mxu0 0.0
    %268 = vmatpush1.msra.mxu0 0.0
    %269 = vmatprep.subr.mxu0 0.0
    %270 = vmatpush1.msra.mxu0 0.0
    %271 = vmatprep.mubr.f32.mxu0 0.0
    %272 = vmatmul.mubr.f32.gmra.mrb[0].mxu0 %v28
    %v273 = vpop.f32.mrb[0].mxu0
    %v274 = vadd.f32 %v109, %v273
    %v275 = vpop.f32.mrb[0].mxu0
    %v276 = vadd.f32 %v113, %v275
    %277 = vmatprep.mubr.f32.mxu0 0.0
    %278 = vmatmul.mubr.f32.gmra.mrb[0].mxu0 %v29
    %v279 = vpop.f32.mrb[0].mxu0
    %v280 = vadd.f32 %v109, %v279
    %v281 = vpop.f32.mrb[0].mxu0
    %v282 = vadd.f32 %v113, %v281
    %283 = vmatprep.mubr.f32.mxu0 0.0
    %284 = vmatmul.mubr.f32.gmra.mrb[0].mxu0 %v30
    %v285 = vpop.f32.mrb[0].mxu0
    %v286 = vadd.f32 %v109, %v285
    %v287 = vpop.f32.mrb[0].mxu0
    %v288 = vadd.f32 %v113, %v287
    %289 = vmatprep.mubr.f32.mxu0 0.0
    %290 = vmatmul.mubr.f32.gmra.mrb[0].mxu0 %v31
    %v291 = vpop.f32.mrb[0].mxu0
    %v292 = vadd.f32 %v109, %v291
    %v293 = vpop.f32.mrb[0].mxu0
    %v294 = vadd.f32 %v113, %v293
    %295 = vdwg.mxu0
    %296 = vst [vmem:[%s3] sm:$0xff] %v185
    %297 = vst [vmem:[%s3 + $0x8] sm:$0xff] %v187
    %298 = vst [vmem:[%s3 + $0x10] sm:$0xff] %v274
    %299 = vst [vmem:[%s3 + $0x18] sm:$0xff] %v276
    %300 = vst [vmem:[%s3 + $0x20] sm:$0xff] %v191
    %301 = vst [vmem:[%s3 + $0x28] sm:$0xff] %v193
    %302 = vst [vmem:[%s3 + $0x30] sm:$0xff] %v280
    %303 = vst [vmem:[%s3 + $0x38] sm:$0xff] %v282
    %304 = vst [vmem:[%s3 + $0x40] sm:$0xff] %v197
    %305 = vst [vmem:[%s3 + $0x48] sm:$0xff] %v199
    %306 = vst [vmem:[%s3 + $0x50] sm:$0xff] %v286
    %307 = vst [vmem:[%s3 + $0x58] sm:$0xff] %v288
    %308 = vst [vmem:[%s3 + $0x60] sm:$0xff] %v203
    %309 = vst [vmem:[%s3 + $0x68] sm:$0xff] %v205
    %310 = vst [vmem:[%s3 + $0x70] sm:$0xff] %v292
    %311 = vst [vmem:[%s3 + $0x78] sm:$0xff] %v294
    // Predicated region
    $region18: #{lstm_language_model_forward.3} parent=1 // pred_check
      _
    $region19: #{lstm_language_model_forward.3} parent=1 // pred_check_branch
      %313 = sbr.rel (0) target = $region21
    $region20: #{lstm_language_model_forward.3} parent=1 // pred_region
      _
    $region21: #{lstm_language_model_forward.3} parent=1 // pred_fallthru
      _
    // Predicated region
    $region22: #{lstm_language_model_forward.3} parent=1 // pred_check
      _
    $region23: #{lstm_language_model_forward.3} parent=1 // pred_check_branch
      %315 = sbr.rel (0) target = $region25
    $region24: #{lstm_language_model_forward.3} parent=1 // pred_region
      _
    $region25: #{lstm_language_model_forward.3} parent=1 // pred_fallthru
      _
    %316 = vsyncpa [#allocation3], 1

// kernel: lstm_language_model_forward.5
$region0: #{lstm_language_model_forward.5}
  #allocation0 [shape = 'u32[]', space=smem, size = 0x4, offset = 0x4, fixed_abs, tag = 'smem constant byte address 0x4 - core index']
  #allocation1 [shape = 'u32[144,128]{1,0:T(1,128)}', space=vmem, size = 0x12000, scoped, tag = 'internal scratch']
  %s0 = inlined_call_operand.vmem [shape: f32[32,128], index: 0, kind: input, shape index: {}]
  %s1 = inlined_call_operand.vmem [shape: f32[128,128], index: 1, kind: input, shape index: {}]
  %s2 = inlined_call_operand.vmem [shape: f32[1,128], index: 2, kind: input, shape index: {}]
  %s3 = inlined_call_operand.vmem [shape: f32[32,128], index: 3, kind: output, shape index: {}]
  %s4 = sld [smem:[#allocation0]]
  $region22: #{lstm_language_model_forward.5} parent=0
    _
  %s6 = ssub.s32 1, %s4
  %s7 = scalar_select 0, %s6, %s4
  // Predicated region
  $region2: #{lstm_language_model_forward.5} parent=0 // pred_check
    _
  $region3: #{lstm_language_model_forward.5} parent=0 // pred_check_branch
    %9 = sbr.rel (0) target = $region5
  $region4: #{lstm_language_model_forward.5} parent=0 // pred_region
    _
  $region5: #{lstm_language_model_forward.5} parent=0 // pred_fallthru
    _
  // Predicated region
  $region6: #{lstm_language_model_forward.5} parent=0 // pred_check
    _
  $region7: #{lstm_language_model_forward.5} parent=0 // pred_check_branch
    %11 = sbr.rel (0) target = $region9
  $region8: #{lstm_language_model_forward.5} parent=0 // pred_region
    _
  $region9: #{lstm_language_model_forward.5} parent=0 // pred_fallthru
    _
  // Predicated region
  $region10: #{lstm_language_model_forward.5} parent=0 // pred_check
    _
  $region11: #{lstm_language_model_forward.5} parent=0 // pred_check_branch
    %13 = sbr.rel (0) target = $region13
  $region12: #{lstm_language_model_forward.5} parent=0 // pred_region
    _
  $region13: #{lstm_language_model_forward.5} parent=0 // pred_fallthru
    _
  %v14 = vld [vmem:[%s0] sm:$0xff]
  %v15 = vld [vmem:[%s0 + $0x8] sm:$0xff]
  %v16 = vld [vmem:[%s0 + $0x10] sm:$0xff]
  %v17 = vld [vmem:[%s0 + $0x18] sm:$0xff]
  %v18 = vld [vmem:[%s1] sm:$0xff]
  %v19 = vld [vmem:[%s1 + $0x8] sm:$0xff]
  %v20 = vld [vmem:[%s1 + $0x10] sm:$0xff]
  %v21 = vld [vmem:[%s1 + $0x18] sm:$0xff]
  %v22 = vld [vmem:[%s1 + $0x20] sm:$0xff]
  %v23 = vld [vmem:[%s1 + $0x28] sm:$0xff]
  %v24 = vld [vmem:[%s1 + $0x30] sm:$0xff]
  %v25 = vld [vmem:[%s1 + $0x38] sm:$0xff]
  %v26 = vld [vmem:[%s1 + $0x40] sm:$0xff]
  %v27 = vld [vmem:[%s1 + $0x48] sm:$0xff]
  %v28 = vld [vmem:[%s1 + $0x50] sm:$0xff]
  %v29 = vld [vmem:[%s1 + $0x58] sm:$0xff]
  %v30 = vld [vmem:[%s1 + $0x60] sm:$0xff]
  %v31 = vld [vmem:[%s1 + $0x68] sm:$0xff]
  %v32 = vld [vmem:[%s1 + $0x70] sm:$0xff]
  %v33 = vld [vmem:[%s1 + $0x78] sm:$0xff]
  %v34 = vld [vmem:[%s2] sm:$0x1]
  %v36 = vlaneseq
  %v37 = vshrl.u32 %v36, 7
  %v38 = vsub.s32 0, %v37
  %v39 = vrot.slane %v34, %v38
  %41 = vmatprep.subr.mxu0 0.0
  %42 = vmatpush1.msra.mxu0 %v18
  %43 = vmatprep.subr.mxu0 0.0
  %44 = vmatpush1.msra.mxu0 %v19
  %45 = vmatprep.subr.mxu0 0.0
  %46 = vmatpush1.msra.mxu0 %v20
  %47 = vmatprep.subr.mxu0 0.0
  %48 = vmatpush1.msra.mxu0 %v21
  %49 = vmatprep.subr.mxu0 0.0
  %50 = vmatpush1.msra.mxu0 %v22
  %51 = vmatprep.subr.mxu0 0.0
  %52 = vmatpush1.msra.mxu0 %v23
  %53 = vmatprep.subr.mxu0 0.0
  %54 = vmatpush1.msra.mxu0 %v24
  %55 = vmatprep.subr.mxu0 0.0
  %56 = vmatpush1.msra.mxu0 %v25
  %57 = vmatprep.subr.mxu0 0.0
  %58 = vmatpush1.msra.mxu0 %v26
  %59 = vmatprep.subr.mxu0 0.0
  %60 = vmatpush1.msra.mxu0 %v27
  %61 = vmatprep.subr.mxu0 0.0
  %62 = vmatpush1.msra.mxu0 %v28
  %63 = vmatprep.subr.mxu0 0.0
  %64 = vmatpush1.msra.mxu0 %v29
  %65 = vmatprep.subr.mxu0 0.0
  %66 = vmatpush1.msra.mxu0 %v30
  %67 = vmatprep.subr.mxu0 0.0
  %68 = vmatpush1.msra.mxu0 %v31
  %69 = vmatprep.subr.mxu0 0.0
  %70 = vmatpush1.msra.mxu0 %v32
  %71 = vmatprep.subr.mxu0 0.0
  %72 = vmatpush1.msra.mxu0 %v33
  %73 = vmatprep.subr.mxu0 0.0
  %74 = vmatpush1.msra.mxu0 0.0
  %75 = vmatprep.subr.mxu0 0.0
  %76 = vmatpush1.msra.mxu0 0.0
  %77 = vmatprep.subr.mxu0 0.0
  %78 = vmatpush1.msra.mxu0 0.0
  %79 = vmatprep.subr.mxu0 0.0
  %80 = vmatpush1.msra.mxu0 0.0
  %81 = vmatprep.subr.mxu0 0.0
  %82 = vmatpush1.msra.mxu0 0.0
  %83 = vmatprep.subr.mxu0 0.0
  %84 = vmatpush1.msra.mxu0 0.0
  %85 = vmatprep.subr.mxu0 0.0
  %86 = vmatpush1.msra.mxu0 0.0
  %87 = vmatprep.subr.mxu0 0.0
  %88 = vmatpush1.msra.mxu0 0.0
  %89 = vmatprep.subr.mxu0 0.0
  %90 = vmatpush1.msra.mxu0 0.0
  %91 = vmatprep.subr.mxu0 0.0
  %92 = vmatpush1.msra.mxu0 0.0
  %93 = vmatprep.subr.mxu0 0.0
  %94 = vmatpush1.msra.mxu0 0.0
  %95 = vmatprep.subr.mxu0 0.0
  %96 = vmatpush1.msra.mxu0 0.0
  %97 = vmatprep.subr.mxu0 0.0
  %98 = vmatpush1.msra.mxu0 0.0
  %99 = vmatprep.subr.mxu0 0.0
  %100 = vmatpush1.msra.mxu0 0.0
  %101 = vmatprep.subr.mxu0 0.0
  %102 = vmatpush1.msra.mxu0 0.0
  %103 = vmatprep.subr.mxu0 0.0
  %104 = vmatpush1.msra.mxu0 0.0
  %105 = vmatprep.mubr.f32.mxu0 0.0
  %106 = vmatmul.mubr.f32.gmra.mrb[0].mxu0 %v14
  %v107 = vpop.f32.mrb[0].mxu0
  %v108 = vadd.f32 %v39, %v107
  %v109 = vpop.f32.mrb[0].mxu0
  %110 = vmatprep.mubr.f32.mxu0 0.0
  %111 = vmatmul.mubr.f32.gmra.mrb[0].mxu0 %v15
  %v112 = vpop.f32.mrb[0].mxu0
  %v113 = vadd.f32 %v39, %v112
  %v114 = vpop.f32.mrb[0].mxu0
  %115 = vmatprep.mubr.f32.mxu0 0.0
  %116 = vmatmul.mubr.f32.gmra.mrb[0].mxu0 %v16
  %v117 = vpop.f32.mrb[0].mxu0
  %v118 = vadd.f32 %v39, %v117
  %v119 = vpop.f32.mrb[0].mxu0
  %120 = vmatprep.mubr.f32.mxu0 0.0
  %121 = vmatmul.mubr.f32.gmra.mrb[0].mxu0 %v17
  %v122 = vpop.f32.mrb[0].mxu0
  %v123 = vadd.f32 %v39, %v122
  %v124 = vpop.f32.mrb[0].mxu0
  %125 = vdwg.mxu0
  %126 = vst [vmem:[%s3] sm:$0xff] %v108
  %127 = vst [vmem:[%s3 + $0x8] sm:$0xff] %v113
  %128 = vst [vmem:[%s3 + $0x10] sm:$0xff] %v118
  %129 = vst [vmem:[%s3 + $0x18] sm:$0xff] %v123
  // Predicated region
  $region14: #{lstm_language_model_forward.5} parent=0 // pred_check
    _
  $region15: #{lstm_language_model_forward.5} parent=0 // pred_check_branch
    %131 = sbr.rel (0) target = $region17
  $region16: #{lstm_language_model_forward.5} parent=0 // pred_region
    _
  $region17: #{lstm_language_model_forward.5} parent=0 // pred_fallthru
    _
  // Predicated region
  $region18: #{lstm_language_model_forward.5} parent=0 // pred_check
    _
  $region19: #{lstm_language_model_forward.5} parent=0 // pred_check_branch
    %133 = sbr.rel (0) target = $region21
  $region20: #{lstm_language_model_forward.5} parent=0 // pred_region
    _
  $region21: #{lstm_language_model_forward.5} parent=0 // pred_fallthru
    _

// kernel: lstm_language_model_forward.4
$region0: #{lstm_language_model_forward.4}
  #allocation0 [shape = 'u32[]', space=smem, size = 0x4, offset = 0x4, fixed_abs, tag = 'smem constant byte address 0x4 - core index']
  #allocation1 [shape = 'u32[144,128]{1,0:T(1,128)}', space=vmem, size = 0x12000, scoped, tag = 'internal scratch']
  %s0 = inlined_call_operand.vmem [shape: f32[8,8,512], index: 0, kind: input, shape index: {}]
  %s1 = inlined_call_operand.vmem [shape: f32[128,512], index: 1, kind: input, shape index: {}]
  %s2 = inlined_call_operand.vmem [shape: f32[128,512], index: 2, kind: input, shape index: {}]
  %s3 = inlined_call_operand.vmem [shape: f32[128,512], index: 3, kind: input, shape index: {}]
  %s4 = inlined_call_operand.vmem [shape: f32[1,512], index: 4, kind: input, shape index: {}]
  %s5 = inlined_call_operand.vmem [shape: f32[2,8,128], index: 5, kind: input, shape index: {}, may-alias: {5,8}]
  %s6 = inlined_call_operand.vmem [shape: f32[2,8,128], index: 6, kind: input, shape index: {}, may-alias: {6,9}]
  %s7 = inlined_call_operand.vmem [shape: f32[8,8,128], index: 7, kind: output, shape index: {0}]
  %s8 = inlined_call_operand.vmem [shape: f32[2,8,128], index: 8, kind: output, shape index: {1}, may-alias: {5,8}]
  %s9 = inlined_call_operand.vmem [shape: f32[2,8,128], index: 9, kind: output, shape index: {2}, may-alias: {6,9}]
  %10 = xla_tuple %s7, %s8, %s9
  %s11 = sld [smem:[#allocation0]]
  $region58: #{lstm_language_model_forward.4} parent=0
    _
  %s13 = ssub.s32 1, %s11
  %s14 = scalar_select 0, %s13, %s11
  // Predicated region
  $region2: #{lstm_language_model_forward.4} parent=0 // pred_check
    _
  $region3: #{lstm_language_model_forward.4} parent=0 // pred_check_branch
    %16 = sbr.rel (0) target = $region5
  $region4: #{lstm_language_model_forward.4} parent=0 // pred_region
    _
  $region5: #{lstm_language_model_forward.4} parent=0 // pred_fallthru
    _
  // Predicated region
  $region6: #{lstm_language_model_forward.4} parent=0 // pred_check
    _
  $region7: #{lstm_language_model_forward.4} parent=0 // pred_check_branch
    %18 = sbr.rel (0) target = $region9
  $region8: #{lstm_language_model_forward.4} parent=0 // pred_region
    _
  $region9: #{lstm_language_model_forward.4} parent=0 // pred_fallthru
    _
  // Predicated region
  $region10: #{lstm_language_model_forward.4} parent=0 // pred_check
    _
  $region11: #{lstm_language_model_forward.4} parent=0 // pred_check_branch
    %20 = sbr.rel (0) target = $region13
  $region12: #{lstm_language_model_forward.4} parent=0 // pred_region
    _
  $region13: #{lstm_language_model_forward.4} parent=0 // pred_fallthru
    _
  // Predicated region
  $region14: #{lstm_language_model_forward.4} parent=0 // pred_check
    _
  $region15: #{lstm_language_model_forward.4} parent=0 // pred_check_branch
    %22 = sbr.rel (0) target = $region17
  $region16: #{lstm_language_model_forward.4} parent=0 // pred_region
    _
  $region17: #{lstm_language_model_forward.4} parent=0 // pred_fallthru
    _
  // Predicated region
  $region18: #{lstm_language_model_forward.4} parent=0 // pred_check
    _
  $region19: #{lstm_language_model_forward.4} parent=0 // pred_check_branch
    %24 = sbr.rel (0) target = $region21
  $region20: #{lstm_language_model_forward.4} parent=0 // pred_region
    _
  $region21: #{lstm_language_model_forward.4} parent=0 // pred_fallthru
    _
  // Predicated region
  $region22: #{lstm_language_model_forward.4} parent=0 // pred_check
    _
  $region23: #{lstm_language_model_forward.4} parent=0 // pred_check_branch
    %26 = sbr.rel (0) target = $region25
  $region24: #{lstm_language_model_forward.4} parent=0 // pred_region
    _
  $region25: #{lstm_language_model_forward.4} parent=0 // pred_fallthru
    _
  // Predicated region
  $region26: #{lstm_language_model_forward.4} parent=0 // pred_check
    _
  $region27: #{lstm_language_model_forward.4} parent=0 // pred_check_branch
    %28 = sbr.rel (0) target = $region29
  $region28: #{lstm_language_model_forward.4} parent=0 // pred_region
    _
  $region29: #{lstm_language_model_forward.4} parent=0 // pred_fallthru
    _
  %p29 = scmp.eq.s32.totalorder 0, 0
  // Predicated region
  $region30: #{lstm_language_model_forward.4} parent=0 // pred_check
    %p30 = pneg %p29
  $region31: #{lstm_language_model_forward.4} parent=0 // pred_check_branch
    %32 = sbr.rel (%p30) target = $region33
  $region32: #{lstm_language_model_forward.4} parent=0 // pred_region
    %v33 = vld [vmem:[%s5] sm:$0xff]
    %v34 = vld [vmem:[%s5 + $0x8] sm:$0xff]
    %35 = vst [vmem:[%s8] sm:$0xff] %v33
    %36 = vst [vmem:[%s8 + $0x8] sm:$0xff] %v34
    %v37 = vld [vmem:[%s6] sm:$0xff]
    %v38 = vld [vmem:[%s6 + $0x8] sm:$0xff]
    %39 = vst [vmem:[%s9] sm:$0xff] %v37
    %40 = vst [vmem:[%s9 + $0x8] sm:$0xff] %v38
  $region33: #{lstm_language_model_forward.4} parent=0 // pred_fallthru
    _
  %v41 = vld [vmem:[%s1] sm:$0xff]
  %v42 = vld [vmem:[%s1 + $0x8] sm:$0xff]
  %v43 = vld [vmem:[%s1 + $0x10] sm:$0xff]
  %v44 = vld [vmem:[%s1 + $0x18] sm:$0xff]
  %v45 = vld [vmem:[%s1 + $0x20] sm:$0xff]
  %v46 = vld [vmem:[%s1 + $0x28] sm:$0xff]
  %v47 = vld [vmem:[%s1 + $0x30] sm:$0xff]
  %v48 = vld [vmem:[%s1 + $0x38] sm:$0xff]
  %v49 = vld [vmem:[%s1 + $0x40] sm:$0xff]
  %v50 = vld [vmem:[%s1 + $0x48] sm:$0xff]
  %v51 = vld [vmem:[%s1 + $0x50] sm:$0xff]
  %v52 = vld [vmem:[%s1 + $0x58] sm:$0xff]
  %v53 = vld [vmem:[%s1 + $0x60] sm:$0xff]
  %v54 = vld [vmem:[%s1 + $0x68] sm:$0xff]
  %v55 = vld [vmem:[%s1 + $0x70] sm:$0xff]
  %v56 = vld [vmem:[%s1 + $0x78] sm:$0xff]
  %v57 = vld [vmem:[%s1 + $0x80] sm:$0xff]
  %v58 = vld [vmem:[%s1 + $0x88] sm:$0xff]
  %v59 = vld [vmem:[%s1 + $0x90] sm:$0xff]
  %v60 = vld [vmem:[%s1 + $0x98] sm:$0xff]
  %v61 = vld [vmem:[%s1 + $0xa0] sm:$0xff]
  %v62 = vld [vmem:[%s1 + $0xa8] sm:$0xff]
  %v63 = vld [vmem:[%s1 + $0xb0] sm:$0xff]
  %v64 = vld [vmem:[%s1 + $0xb8] sm:$0xff]
  %v65 = vld [vmem:[%s1 + $0xc0] sm:$0xff]
  %v66 = vld [vmem:[%s1 + $0xc8] sm:$0xff]
  %v67 = vld [vmem:[%s1 + $0xd0] sm:$0xff]
  %v68 = vld [vmem:[%s1 + $0xd8] sm:$0xff]
  %v69 = vld [vmem:[%s1 + $0xe0] sm:$0xff]
  %v70 = vld [vmem:[%s1 + $0xe8] sm:$0xff]
  %v71 = vld [vmem:[%s1 + $0xf0] sm:$0xff]
  %v72 = vld [vmem:[%s1 + $0xf8] sm:$0xff]
  %v73 = vld [vmem:[%s1 + $0x100] sm:$0xff]
  %v74 = vld [vmem:[%s1 + $0x108] sm:$0xff]
  %v75 = vld [vmem:[%s1 + $0x110] sm:$0xff]
  %v76 = vld [vmem:[%s1 + $0x118] sm:$0xff]
  %v77 = vld [vmem:[%s1 + $0x120] sm:$0xff]
  %v78 = vld [vmem:[%s1 + $0x128] sm:$0xff]
  %v79 = vld [vmem:[%s1 + $0x130] sm:$0xff]
  %v80 = vld [vmem:[%s1 + $0x138] sm:$0xff]
  %v81 = vld [vmem:[%s1 + $0x140] sm:$0xff]
  %v82 = vld [vmem:[%s1 + $0x148] sm:$0xff]
  %v83 = vld [vmem:[%s1 + $0x150] sm:$0xff]
  %v84 = vld [vmem:[%s1 + $0x158] sm:$0xff]
  %v85 = vld [vmem:[%s1 + $0x160] sm:$0xff]
  %v86 = vld [vmem:[%s1 + $0x168] sm:$0xff]
  %v87 = vld [vmem:[%s1 + $0x170] sm:$0xff]
  %v88 = vld [vmem:[%s1 + $0x178] sm:$0xff]
  %v89 = vld [vmem:[%s1 + $0x180] sm:$0xff]
  %v90 = vld [vmem:[%s1 + $0x188] sm:$0xff]
  %v91 = vld [vmem:[%s1 + $0x190] sm:$0xff]
  %v92 = vld [vmem:[%s1 + $0x198] sm:$0xff]
  %v93 = vld [vmem:[%s1 + $0x1a0] sm:$0xff]
  %v94 = vld [vmem:[%s1 + $0x1a8] sm:$0xff]
  %v95 = vld [vmem:[%s1 + $0x1b0] sm:$0xff]
  %v96 = vld [vmem:[%s1 + $0x1b8] sm:$0xff]
  %v97 = vld [vmem:[%s1 + $0x1c0] sm:$0xff]
  %v98 = vld [vmem:[%s1 + $0x1c8] sm:$0xff]
  %v99 = vld [vmem:[%s1 + $0x1d0] sm:$0xff]
  %v100 = vld [vmem:[%s1 + $0x1d8] sm:$0xff]
  %v101 = vld [vmem:[%s1 + $0x1e0] sm:$0xff]
  %v102 = vld [vmem:[%s1 + $0x1e8] sm:$0xff]
  %v103 = vld [vmem:[%s1 + $0x1f0] sm:$0xff]
  %v104 = vld [vmem:[%s1 + $0x1f8] sm:$0xff]
  %v105 = vld [vmem:[%s2] sm:$0xff]
  %v106 = vld [vmem:[%s2 + $0x8] sm:$0xff]
  %v107 = vld [vmem:[%s2 + $0x10] sm:$0xff]
  %v108 = vld [vmem:[%s2 + $0x18] sm:$0xff]
  %v109 = vld [vmem:[%s2 + $0x20] sm:$0xff]
  %v110 = vld [vmem:[%s2 + $0x28] sm:$0xff]
  %v111 = vld [vmem:[%s2 + $0x30] sm:$0xff]
  %v112 = vld [vmem:[%s2 + $0x38] sm:$0xff]
  %v113 = vld [vmem:[%s2 + $0x40] sm:$0xff]
  %v114 = vld [vmem:[%s2 + $0x48] sm:$0xff]
  %v115 = vld [vmem:[%s2 + $0x50] sm:$0xff]
  %v116 = vld [vmem:[%s2 + $0x58] sm:$0xff]
  %v117 = vld [vmem:[%s2 + $0x60] sm:$0xff]
  %v118 = vld [vmem:[%s2 + $0x68] sm:$0xff]
  %v119 = vld [vmem:[%s2 + $0x70] sm:$0xff]
  %v120 = vld [vmem:[%s2 + $0x78] sm:$0xff]
  %v121 = vld [vmem:[%s2 + $0x80] sm:$0xff]
  %v122 = vld [vmem:[%s2 + $0x88] sm:$0xff]
  %v123 = vld [vmem:[%s2 + $0x90] sm:$0xff]
  %v124 = vld [vmem:[%s2 + $0x98] sm:$0xff]
  %v125 = vld [vmem:[%s2 + $0xa0] sm:$0xff]
  %v126 = vld [vmem:[%s2 + $0xa8] sm:$0xff]
  %v127 = vld [vmem:[%s2 + $0xb0] sm:$0xff]
  %v128 = vld [vmem:[%s2 + $0xb8] sm:$0xff]
  %v129 = vld [vmem:[%s2 + $0xc0] sm:$0xff]
  %v130 = vld [vmem:[%s2 + $0xc8] sm:$0xff]
  %v131 = vld [vmem:[%s2 + $0xd0] sm:$0xff]
  %v132 = vld [vmem:[%s2 + $0xd8] sm:$0xff]
  %v133 = vld [vmem:[%s2 + $0xe0] sm:$0xff]
  %v134 = vld [vmem:[%s2 + $0xe8] sm:$0xff]
  %v135 = vld [vmem:[%s2 + $0xf0] sm:$0xff]
  %v136 = vld [vmem:[%s2 + $0xf8] sm:$0xff]
  %v137 = vld [vmem:[%s2 + $0x100] sm:$0xff]
  %v138 = vld [vmem:[%s2 + $0x108] sm:$0xff]
  %v139 = vld [vmem:[%s2 + $0x110] sm:$0xff]
  %v140 = vld [vmem:[%s2 + $0x118] sm:$0xff]
  %v141 = vld [vmem:[%s2 + $0x120] sm:$0xff]
  %v142 = vld [vmem:[%s2 + $0x128] sm:$0xff]
  %v143 = vld [vmem:[%s2 + $0x130] sm:$0xff]
  %v144 = vld [vmem:[%s2 + $0x138] sm:$0xff]
  %v145 = vld [vmem:[%s2 + $0x140] sm:$0xff]
  %v146 = vld [vmem:[%s2 + $0x148] sm:$0xff]
  %v147 = vld [vmem:[%s2 + $0x150] sm:$0xff]
  %v148 = vld [vmem:[%s2 + $0x158] sm:$0xff]
  %v149 = vld [vmem:[%s2 + $0x160] sm:$0xff]
  %v150 = vld [vmem:[%s2 + $0x168] sm:$0xff]
  %v151 = vld [vmem:[%s2 + $0x170] sm:$0xff]
  %v152 = vld [vmem:[%s2 + $0x178] sm:$0xff]
  %v153 = vld [vmem:[%s2 + $0x180] sm:$0xff]
  %v154 = vld [vmem:[%s2 + $0x188] sm:$0xff]
  %v155 = vld [vmem:[%s2 + $0x190] sm:$0xff]
  %v156 = vld [vmem:[%s2 + $0x198] sm:$0xff]
  %v157 = vld [vmem:[%s2 + $0x1a0] sm:$0xff]
  %v158 = vld [vmem:[%s2 + $0x1a8] sm:$0xff]
  %v159 = vld [vmem:[%s2 + $0x1b0] sm:$0xff]
  %v160 = vld [vmem:[%s2 + $0x1b8] sm:$0xff]
  %v161 = vld [vmem:[%s2 + $0x1c0] sm:$0xff]
  %v162 = vld [vmem:[%s2 + $0x1c8] sm:$0xff]
  %v163 = vld [vmem:[%s2 + $0x1d0] sm:$0xff]
  %v164 = vld [vmem:[%s2 + $0x1d8] sm:$0xff]
  %v165 = vld [vmem:[%s2 + $0x1e0] sm:$0xff]
  %v166 = vld [vmem:[%s2 + $0x1e8] sm:$0xff]
  %v167 = vld [vmem:[%s2 + $0x1f0] sm:$0xff]
  %v168 = vld [vmem:[%s2 + $0x1f8] sm:$0xff]
  %v169 = vld [vmem:[%s3] sm:$0xff]
  %v170 = vld [vmem:[%s3 + $0x8] sm:$0xff]
  %v171 = vld [vmem:[%s3 + $0x10] sm:$0xff]
  %v172 = vld [vmem:[%s3 + $0x18] sm:$0xff]
  %v173 = vld [vmem:[%s3 + $0x20] sm:$0xff]
  %v174 = vld [vmem:[%s3 + $0x28] sm:$0xff]
  %v175 = vld [vmem:[%s3 + $0x30] sm:$0xff]
  %v176 = vld [vmem:[%s3 + $0x38] sm:$0xff]
  %v177 = vld [vmem:[%s3 + $0x40] sm:$0xff]
  %v178 = vld [vmem:[%s3 + $0x48] sm:$0xff]
  %v179 = vld [vmem:[%s3 + $0x50] sm:$0xff]
  %v180 = vld [vmem:[%s3 + $0x58] sm:$0xff]
  %v181 = vld [vmem:[%s3 + $0x60] sm:$0xff]
  %v182 = vld [vmem:[%s3 + $0x68] sm:$0xff]
  %v183 = vld [vmem:[%s3 + $0x70] sm:$0xff]
  %v184 = vld [vmem:[%s3 + $0x78] sm:$0xff]
  %v185 = vld [vmem:[%s3 + $0x80] sm:$0xff]
  %v186 = vld [vmem:[%s3 + $0x88] sm:$0xff]
  %v187 = vld [vmem:[%s3 + $0x90] sm:$0xff]
  %v188 = vld [vmem:[%s3 + $0x98] sm:$0xff]
  %v189 = vld [vmem:[%s3 + $0xa0] sm:$0xff]
  %v190 = vld [vmem:[%s3 + $0xa8] sm:$0xff]
  %v191 = vld [vmem:[%s3 + $0xb0] sm:$0xff]
  %v192 = vld [vmem:[%s3 + $0xb8] sm:$0xff]
  %v193 = vld [vmem:[%s3 + $0xc0] sm:$0xff]
  %v194 = vld [vmem:[%s3 + $0xc8] sm:$0xff]
  %v195 = vld [vmem:[%s3 + $0xd0] sm:$0xff]
  %v196 = vld [vmem:[%s3 + $0xd8] sm:$0xff]
  %v197 = vld [vmem:[%s3 + $0xe0] sm:$0xff]
  %v198 = vld [vmem:[%s3 + $0xe8] sm:$0xff]
  %v199 = vld [vmem:[%s3 + $0xf0] sm:$0xff]
  %v200 = vld [vmem:[%s3 + $0xf8] sm:$0xff]
  %v201 = vld [vmem:[%s3 + $0x100] sm:$0xff]
  %v202 = vld [vmem:[%s3 + $0x108] sm:$0xff]
  %v203 = vld [vmem:[%s3 + $0x110] sm:$0xff]
  %v204 = vld [vmem:[%s3 + $0x118] sm:$0xff]
  %v205 = vld [vmem:[%s3 + $0x120] sm:$0xff]
  %v206 = vld [vmem:[%s3 + $0x128] sm:$0xff]
  %v207 = vld [vmem:[%s3 + $0x130] sm:$0xff]
  %v208 = vld [vmem:[%s3 + $0x138] sm:$0xff]
  %v209 = vld [vmem:[%s3 + $0x140] sm:$0xff]
  %v210 = vld [vmem:[%s3 + $0x148] sm:$0xff]
  %v211 = vld [vmem:[%s3 + $0x150] sm:$0xff]
  %v212 = vld [vmem:[%s3 + $0x158] sm:$0xff]
  %v213 = vld [vmem:[%s3 + $0x160] sm:$0xff]
  %v214 = vld [vmem:[%s3 + $0x168] sm:$0xff]
  %v215 = vld [vmem:[%s3 + $0x170] sm:$0xff]
  %v216 = vld [vmem:[%s3 + $0x178] sm:$0xff]
  %v217 = vld [vmem:[%s3 + $0x180] sm:$0xff]
  %v218 = vld [vmem:[%s3 + $0x188] sm:$0xff]
  %v219 = vld [vmem:[%s3 + $0x190] sm:$0xff]
  %v220 = vld [vmem:[%s3 + $0x198] sm:$0xff]
  %v221 = vld [vmem:[%s3 + $0x1a0] sm:$0xff]
  %v222 = vld [vmem:[%s3 + $0x1a8] sm:$0xff]
  %v223 = vld [vmem:[%s3 + $0x1b0] sm:$0xff]
  %v224 = vld [vmem:[%s3 + $0x1b8] sm:$0xff]
  %v225 = vld [vmem:[%s3 + $0x1c0] sm:$0xff]
  %v226 = vld [vmem:[%s3 + $0x1c8] sm:$0xff]
  %v227 = vld [vmem:[%s3 + $0x1d0] sm:$0xff]
  %v228 = vld [vmem:[%s3 + $0x1d8] sm:$0xff]
  %v229 = vld [vmem:[%s3 + $0x1e0] sm:$0xff]
  %v230 = vld [vmem:[%s3 + $0x1e8] sm:$0xff]
  %v231 = vld [vmem:[%s3 + $0x1f0] sm:$0xff]
  %v232 = vld [vmem:[%s3 + $0x1f8] sm:$0xff]
  %v233 = vld [vmem:[%s4] sm:$0xf]
  %v234 = vld [vmem:[%s0] sm:$0xff]
  %v235 = vld [vmem:[%s0 + $0x8] sm:$0xff]
  %v236 = vld [vmem:[%s0 + $0x10] sm:$0xff]
  %v237 = vld [vmem:[%s0 + $0x18] sm:$0xff]
  %v238 = vld [vmem:[%s8] sm:$0xff]
  %239 = vmatprep.subr.mxu0 %v42
  %240 = vmatpush1.msra.mxu0 %v41
  %241 = vmatprep.subr.mxu0 %v46
  %242 = vmatpush1.msra.mxu0 %v45
  %243 = vmatprep.subr.mxu0 %v50
  %244 = vmatpush1.msra.mxu0 %v49
  %245 = vmatprep.subr.mxu0 %v54
  %246 = vmatpush1.msra.mxu0 %v53
  %247 = vmatprep.subr.mxu0 %v58
  %248 = vmatpush1.msra.mxu0 %v57
  %249 = vmatprep.subr.mxu0 %v62
  %250 = vmatpush1.msra.mxu0 %v61
  %251 = vmatprep.subr.mxu0 %v66
  %252 = vmatpush1.msra.mxu0 %v65
  %253 = vmatprep.subr.mxu0 %v70
  %254 = vmatpush1.msra.mxu0 %v69
  %255 = vmatprep.subr.mxu0 %v74
  %256 = vmatpush1.msra.mxu0 %v73
  %257 = vmatprep.subr.mxu0 %v78
  %258 = vmatpush1.msra.mxu0 %v77
  %259 = vmatprep.subr.mxu0 %v82
  %260 = vmatpush1.msra.mxu0 %v81
  %261 = vmatprep.subr.mxu0 %v86
  %262 = vmatpush1.msra.mxu0 %v85
  %263 = vmatprep.subr.mxu0 %v90
  %264 = vmatpush1.msra.mxu0 %v89
  %265 = vmatprep.subr.mxu0 %v94
  %266 = vmatpush1.msra.mxu0 %v93
  %267 = vmatprep.subr.mxu0 %v98
  %268 = vmatpush1.msra.mxu0 %v97
  %269 = vmatprep.subr.mxu0 %v102
  %270 = vmatpush1.msra.mxu0 %v101
  %271 = vmatprep.subr.mxu0 0.0
  %272 = vmatpush1.msra.mxu0 0.0
  %273 = vmatprep.subr.mxu0 0.0
  %274 = vmatpush1.msra.mxu0 0.0
  %275 = vmatprep.subr.mxu0 0.0
  %276 = vmatpush1.msra.mxu0 0.0
  %277 = vmatprep.subr.mxu0 0.0
  %278 = vmatpush1.msra.mxu0 0.0
  %279 = vmatprep.subr.mxu0 0.0
  %280 = vmatpush1.msra.mxu0 0.0
  %281 = vmatprep.subr.mxu0 0.0
  %282 = vmatpush1.msra.mxu0 0.0
  %283 = vmatprep.subr.mxu0 0.0
  %284 = vmatpush1.msra.mxu0 0.0
  %285 = vmatprep.subr.mxu0 0.0
  %286 = vmatpush1.msra.mxu0 0.0
  %287 = vmatprep.subr.mxu0 0.0
  %288 = vmatpush1.msra.mxu0 0.0
  %289 = vmatprep.subr.mxu0 0.0
  %290 = vmatpush1.msra.mxu0 0.0
  %291 = vmatprep.subr.mxu0 0.0
  %292 = vmatpush1.msra.mxu0 0.0
  %293 = vmatprep.subr.mxu0 0.0
  %294 = vmatpush1.msra.mxu0 0.0
  %295 = vmatprep.subr.mxu0 0.0
  %296 = vmatpush1.msra.mxu0 0.0
  %297 = vmatprep.subr.mxu0 0.0
  %298 = vmatpush1.msra.mxu0 0.0
  %299 = vmatprep.subr.mxu0 0.0
  %300 = vmatpush1.msra.mxu0 0.0
  %301 = vmatprep.subr.mxu0 0.0
  %302 = vmatpush1.msra.mxu0 0.0
  %303 = vmatprep.mubr.f32.mxu0 0.0
  %304 = vmatmul.mubr.f32.gmra.mrb[0].mxu0 %v238
  %v305 = vpop.f32.mrb[0].mxu0
  %v306 = vadd.f32 0.0, %v305
  %v307 = vpop.f32.mrb[0].mxu0
  %v308 = vadd.f32 0.0, %v307
  %309 = vdwg.mxu0
  %310 = vmatprep.subr.mxu0 %v44
  %311 = vmatpush1.msra.mxu0 %v43
  %312 = vmatprep.subr.mxu0 %v48
  %313 = vmatpush1.msra.mxu0 %v47
  %314 = vmatprep.subr.mxu0 %v52
  %315 = vmatpush1.msra.mxu0 %v51
  %316 = vmatprep.subr.mxu0 %v56
  %317 = vmatpush1.msra.mxu0 %v55
  %318 = vmatprep.subr.mxu0 %v60
  %319 = vmatpush1.msra.mxu0 %v59
  %320 = vmatprep.subr.mxu0 %v64
  %321 = vmatpush1.msra.mxu0 %v63
  %322 = vmatprep.subr.mxu0 %v68
  %323 = vmatpush1.msra.mxu0 %v67
  %324 = vmatprep.subr.mxu0 %v72
  %325 = vmatpush1.msra.mxu0 %v71
  %326 = vmatprep.subr.mxu0 %v76
  %327 = vmatpush1.msra.mxu0 %v75
  %328 = vmatprep.subr.mxu0 %v80
  %329 = vmatpush1.msra.mxu0 %v79
  %330 = vmatprep.subr.mxu0 %v84
  %331 = vmatpush1.msra.mxu0 %v83
  %332 = vmatprep.subr.mxu0 %v88
  %333 = vmatpush1.msra.mxu0 %v87
  %334 = vmatprep.subr.mxu0 %v92
  %335 = vmatpush1.msra.mxu0 %v91
  %336 = vmatprep.subr.mxu0 %v96
  %337 = vmatpush1.msra.mxu0 %v95
  %338 = vmatprep.subr.mxu0 %v100
  %339 = vmatpush1.msra.mxu0 %v99
  %340 = vmatprep.subr.mxu0 %v104
  %341 = vmatpush1.msra.mxu0 %v103
  %342 = vmatprep.subr.mxu0 0.0
  %343 = vmatpush1.msra.mxu0 0.0
  %344 = vmatprep.subr.mxu0 0.0
  %345 = vmatpush1.msra.mxu0 0.0
  %346 = vmatprep.subr.mxu0 0.0
  %347 = vmatpush1.msra.mxu0 0.0
  %348 = vmatprep.subr.mxu0 0.0
  %349 = vmatpush1.msra.mxu0 0.0
  %350 = vmatprep.subr.mxu0 0.0
  %351 = vmatpush1.msra.mxu0 0.0
  %352 = vmatprep.subr.mxu0 0.0
  %353 = vmatpush1.msra.mxu0 0.0
  %354 = vmatprep.subr.mxu0 0.0
  %355 = vmatpush1.msra.mxu0 0.0
  %356 = vmatprep.subr.mxu0 0.0
  %357 = vmatpush1.msra.mxu0 0.0
  %358 = vmatprep.subr.mxu0 0.0
  %359 = vmatpush1.msra.mxu0 0.0
  %360 = vmatprep.subr.mxu0 0.0
  %361 = vmatpush1.msra.mxu0 0.0
  %362 = vmatprep.subr.mxu0 0.0
  %363 = vmatpush1.msra.mxu0 0.0
  %364 = vmatprep.subr.mxu0 0.0
  %365 = vmatpush1.msra.mxu0 0.0
  %366 = vmatprep.subr.mxu0 0.0
  %367 = vmatpush1.msra.mxu0 0.0
  %368 = vmatprep.subr.mxu0 0.0
  %369 = vmatpush1.msra.mxu0 0.0
  %370 = vmatprep.subr.mxu0 0.0
  %371 = vmatpush1.msra.mxu0 0.0
  %372 = vmatprep.subr.mxu0 0.0
  %373 = vmatpush1.msra.mxu0 0.0
  %374 = vmatprep.mubr.f32.mxu0 0.0
  %375 = vmatmul.mubr.f32.gmra.mrb[0].mxu0 %v238
  %v376 = vpop.f32.mrb[0].mxu0
  %v377 = vadd.f32 0.0, %v376
  %v378 = vpop.f32.mrb[0].mxu0
  %v379 = vadd.f32 0.0, %v378
  %380 = vdwg.mxu0
  %v381 = vadd.f32 %v234, %v306
  %v382 = vadd.f32 %v235, %v308
  %v383 = vadd.f32 %v236, %v377
  %v384 = vadd.f32 %v237, %v379
  %v385 = vld [vmem:[%s9] sm:$0xff]
  %v386 = vxor.u32 %v381, 2147483648
  %v387 = vxor.u32 %v382, 2147483648
  %v388 = vxor.u32 %v383, 2147483648
  %v389 = vmul.f32 %v386, 1.442695
  %v390 = vpow.pop %v389
  %v391 = vmul.f32 %v387, 1.442695
  %v392 = vpow.pop %v391
  %v393 = vmul.f32 %v388, 1.442695
  %v394 = vpow.pop %v393
  %v395 = vadd.f32 %v390, 1.0
  %v396 = vadd.f32 %v392, 1.0
  %v397 = vadd.f32 %v394, 1.0
  %v398 = vrcp.pop %v395
  %v399 = vmul.f32 1.0, %v398
  %v400 = vrcp.pop %v396
  %v401 = vmul.f32 1.0, %v400
  %v402 = vrcp.pop %v397
  %v403 = vmul.f32 1.0, %v402
  %v404 = vtanh.pop %v384
  %v405 = vmul.f32 %v401, %v385
  %v406 = vmul.f32 %v399, %v404
  %v407 = vadd.f32 %v405, %v406
  %v408 = vtanh.pop %v407
  %v409 = vmul.f32 %v403, %v408
  %410 = vst [vmem:[%s8] sm:$0xff] %v409
  %411 = vst [vmem:[%s9] sm:$0xff] %v407
  %s412 = scalar_lea.vmem %s8, 8
  %v413 = vld [vmem:[%s412] sm:$0xff]
  %414 = vmatprep.subr.mxu0 %v170
  %415 = vmatpush1.msra.mxu0 %v169
  %416 = vmatprep.subr.mxu0 %v174
  %417 = vmatpush1.msra.mxu0 %v173
  %418 = vmatprep.subr.mxu0 %v178
  %419 = vmatpush1.msra.mxu0 %v177
  %420 = vmatprep.subr.mxu0 %v182
  %421 = vmatpush1.msra.mxu0 %v181
  %422 = vmatprep.subr.mxu0 %v186
  %423 = vmatpush1.msra.mxu0 %v185
  %424 = vmatprep.subr.mxu0 %v190
  %425 = vmatpush1.msra.mxu0 %v189
  %426 = vmatprep.subr.mxu0 %v194
  %427 = vmatpush1.msra.mxu0 %v193
  %428 = vmatprep.subr.mxu0 %v198
  %429 = vmatpush1.msra.mxu0 %v197
  %430 = vmatprep.subr.mxu0 %v202
  %431 = vmatpush1.msra.mxu0 %v201
  %432 = vmatprep.subr.mxu0 %v206
  %433 = vmatpush1.msra.mxu0 %v205
  %434 = vmatprep.subr.mxu0 %v210
  %435 = vmatpush1.msra.mxu0 %v209
  %436 = vmatprep.subr.mxu0 %v214
  %437 = vmatpush1.msra.mxu0 %v213
  %438 = vmatprep.subr.mxu0 %v218
  %439 = vmatpush1.msra.mxu0 %v217
  %440 = vmatprep.subr.mxu0 %v222
  %441 = vmatpush1.msra.mxu0 %v221
  %442 = vmatprep.subr.mxu0 %v226
  %443 = vmatpush1.msra.mxu0 %v225
  %444 = vmatprep.subr.mxu0 %v230
  %445 = vmatpush1.msra.mxu0 %v229
  %446 = vmatprep.subr.mxu0 0.0
  %447 = vmatpush1.msra.mxu0 0.0
  %448 = vmatprep.subr.mxu0 0.0
  %449 = vmatpush1.msra.mxu0 0.0
  %450 = vmatprep.subr.mxu0 0.0
  %451 = vmatpush1.msra.mxu0 0.0
  %452 = vmatprep.subr.mxu0 0.0
  %453 = vmatpush1.msra.mxu0 0.0
  %454 = vmatprep.subr.mxu0 0.0
  %455 = vmatpush1.msra.mxu0 0.0
  %456 = vmatprep.subr.mxu0 0.0
  %457 = vmatpush1.msra.mxu0 0.0
  %458 = vmatprep.subr.mxu0 0.0
  %459 = vmatpush1.msra.mxu0 0.0
  %460 = vmatprep.subr.mxu0 0.0
  %461 = vmatpush1.msra.mxu0 0.0
  %462 = vmatprep.subr.mxu0 0.0
  %463 = vmatpush1.msra.mxu0 0.0
  %464 = vmatprep.subr.mxu0 0.0
  %465 = vmatpush1.msra.mxu0 0.0
  %466 = vmatprep.subr.mxu0 0.0
  %467 = vmatpush1.msra.mxu0 0.0
  %468 = vmatprep.subr.mxu0 0.0
  %469 = vmatpush1.msra.mxu0 0.0
  %470 = vmatprep.subr.mxu0 0.0
  %471 = vmatpush1.msra.mxu0 0.0
  %472 = vmatprep.subr.mxu0 0.0
  %473 = vmatpush1.msra.mxu0 0.0
  %474 = vmatprep.subr.mxu0 0.0
  %475 = vmatpush1.msra.mxu0 0.0
  %476 = vmatprep.subr.mxu0 0.0
  %477 = vmatpush1.msra.mxu0 0.0
  %478 = vmatprep.mubr.f32.mxu0 0.0
  %479 = vmatmul.mubr.f32.gmra.mrb[0].mxu0 %v413
  %v480 = vpop.f32.mrb[0].mxu0
  %v481 = vadd.f32 0.0, %v480
  %v482 = vpop.f32.mrb[0].mxu0
  %v483 = vadd.f32 0.0, %v482
  %484 = vdwg.mxu0
  %485 = vmatprep.subr.mxu0 %v172
  %486 = vmatpush1.msra.mxu0 %v171
  %487 = vmatprep.subr.mxu0 %v176
  %488 = vmatpush1.msra.mxu0 %v175
  %489 = vmatprep.subr.mxu0 %v180
  %490 = vmatpush1.msra.mxu0 %v179
  %491 = vmatprep.subr.mxu0 %v184
  %492 = vmatpush1.msra.mxu0 %v183
  %493 = vmatprep.subr.mxu0 %v188
  %494 = vmatpush1.msra.mxu0 %v187
  %495 = vmatprep.subr.mxu0 %v192
  %496 = vmatpush1.msra.mxu0 %v191
  %497 = vmatprep.subr.mxu0 %v196
  %498 = vmatpush1.msra.mxu0 %v195
  %499 = vmatprep.subr.mxu0 %v200
  %500 = vmatpush1.msra.mxu0 %v199
  %501 = vmatprep.subr.mxu0 %v204
  %502 = vmatpush1.msra.mxu0 %v203
  %503 = vmatprep.subr.mxu0 %v208
  %504 = vmatpush1.msra.mxu0 %v207
  %505 = vmatprep.subr.mxu0 %v212
  %506 = vmatpush1.msra.mxu0 %v211
  %507 = vmatprep.subr.mxu0 %v216
  %508 = vmatpush1.msra.mxu0 %v215
  %509 = vmatprep.subr.mxu0 %v220
  %510 = vmatpush1.msra.mxu0 %v219
  %511 = vmatprep.subr.mxu0 %v224
  %512 = vmatpush1.msra.mxu0 %v223
  %513 = vmatprep.subr.mxu0 %v228
  %514 = vmatpush1.msra.mxu0 %v227
  %515 = vmatprep.subr.mxu0 %v232
  %516 = vmatpush1.msra.mxu0 %v231
  %517 = vmatprep.subr.mxu0 0.0
  %518 = vmatpush1.msra.mxu0 0.0
  %519 = vmatprep.subr.mxu0 0.0
  %520 = vmatpush1.msra.mxu0 0.0
  %521 = vmatprep.subr.mxu0 0.0
  %522 = vmatpush1.msra.mxu0 0.0
  %523 = vmatprep.subr.mxu0 0.0
  %524 = vmatpush1.msra.mxu0 0.0
  %525 = vmatprep.subr.mxu0 0.0
  %526 = vmatpush1.msra.mxu0 0.0
  %527 = vmatprep.subr.mxu0 0.0
  %528 = vmatpush1.msra.mxu0 0.0
  %529 = vmatprep.subr.mxu0 0.0
  %530 = vmatpush1.msra.mxu0 0.0
  %531 = vmatprep.subr.mxu0 0.0
  %532 = vmatpush1.msra.mxu0 0.0
  %533 = vmatprep.subr.mxu0 0.0
  %534 = vmatpush1.msra.mxu0 0.0
  %535 = vmatprep.subr.mxu0 0.0
  %536 = vmatpush1.msra.mxu0 0.0
  %537 = vmatprep.subr.mxu0 0.0
  %538 = vmatpush1.msra.mxu0 0.0
  %539 = vmatprep.subr.mxu0 0.0
  %540 = vmatpush1.msra.mxu0 0.0
  %541 = vmatprep.subr.mxu0 0.0
  %542 = vmatpush1.msra.mxu0 0.0
  %543 = vmatprep.subr.mxu0 0.0
  %544 = vmatpush1.msra.mxu0 0.0
  %545 = vmatprep.subr.mxu0 0.0
  %546 = vmatpush1.msra.mxu0 0.0
  %547 = vmatprep.subr.mxu0 0.0
  %548 = vmatpush1.msra.mxu0 0.0
  %549 = vmatprep.mubr.f32.mxu0 0.0
  %550 = vmatmul.mubr.f32.gmra.mrb[0].mxu0 %v413
  %v551 = vpop.f32.mrb[0].mxu0
  %v552 = vadd.f32 0.0, %v551
  %v553 = vpop.f32.mrb[0].mxu0
  %v554 = vadd.f32 0.0, %v553
  %555 = vdwg.mxu0
  %556 = vmatprep.subr.mxu0 %v106
  %557 = vmatpush1.msra.mxu0 %v105
  %558 = vmatprep.subr.mxu0 %v110
  %559 = vmatpush1.msra.mxu0 %v109
  %560 = vmatprep.subr.mxu0 %v114
  %561 = vmatpush1.msra.mxu0 %v113
  %562 = vmatprep.subr.mxu0 %v118
  %563 = vmatpush1.msra.mxu0 %v117
  %564 = vmatprep.subr.mxu0 %v122
  %565 = vmatpush1.msra.mxu0 %v121
  %566 = vmatprep.subr.mxu0 %v126
  %567 = vmatpush1.msra.mxu0 %v125
  %568 = vmatprep.subr.mxu0 %v130
  %569 = vmatpush1.msra.mxu0 %v129
  %570 = vmatprep.subr.mxu0 %v134
  %571 = vmatpush1.msra.mxu0 %v133
  %572 = vmatprep.subr.mxu0 %v138
  %573 = vmatpush1.msra.mxu0 %v137
  %574 = vmatprep.subr.mxu0 %v142
  %575 = vmatpush1.msra.mxu0 %v141
  %576 = vmatprep.subr.mxu0 %v146
  %577 = vmatpush1.msra.mxu0 %v145
  %578 = vmatprep.subr.mxu0 %v150
  %579 = vmatpush1.msra.mxu0 %v149
  %580 = vmatprep.subr.mxu0 %v154
  %581 = vmatpush1.msra.mxu0 %v153
  %582 = vmatprep.subr.mxu0 %v158
  %583 = vmatpush1.msra.mxu0 %v157
  %584 = vmatprep.subr.mxu0 %v162
  %585 = vmatpush1.msra.mxu0 %v161
  %586 = vmatprep.subr.mxu0 %v166
  %587 = vmatpush1.msra.mxu0 %v165
  %588 = vmatprep.subr.mxu0 0.0
  %589 = vmatpush1.msra.mxu0 0.0
  %590 = vmatprep.subr.mxu0 0.0
  %591 = vmatpush1.msra.mxu0 0.0
  %592 = vmatprep.subr.mxu0 0.0
  %593 = vmatpush1.msra.mxu0 0.0
  %594 = vmatprep.subr.mxu0 0.0
  %595 = vmatpush1.msra.mxu0 0.0
  %596 = vmatprep.subr.mxu0 0.0
  %597 = vmatpush1.msra.mxu0 0.0
  %598 = vmatprep.subr.mxu0 0.0
  %599 = vmatpush1.msra.mxu0 0.0
  %600 = vmatprep.subr.mxu0 0.0
  %601 = vmatpush1.msra.mxu0 0.0
  %602 = vmatprep.subr.mxu0 0.0
  %603 = vmatpush1.msra.mxu0 0.0
  %604 = vmatprep.subr.mxu0 0.0
  %605 = vmatpush1.msra.mxu0 0.0
  %606 = vmatprep.subr.mxu0 0.0
  %607 = vmatpush1.msra.mxu0 0.0
  %608 = vmatprep.subr.mxu0 0.0
  %609 = vmatpush1.msra.mxu0 0.0
  %610 = vmatprep.subr.mxu0 0.0
  %611 = vmatpush1.msra.mxu0 0.0
  %612 = vmatprep.subr.mxu0 0.0
  %613 = vmatpush1.msra.mxu0 0.0
  %614 = vmatprep.subr.mxu0 0.0
  %615 = vmatpush1.msra.mxu0 0.0
  %616 = vmatprep.subr.mxu0 0.0
  %617 = vmatpush1.msra.mxu0 0.0
  %618 = vmatprep.subr.mxu0 0.0
  %619 = vmatpush1.msra.mxu0 0.0
  %620 = vmatprep.mubr.f32.mxu0 0.0
  %621 = vmatmul.mubr.f32.gmra.mrb[0].mxu0 %v409
  %v622 = vpop.f32.mrb[0].mxu0
  %v623 = vadd.f32 %v481, %v622
  %v624 = vpop.f32.mrb[0].mxu0
  %v625 = vadd.f32 %v483, %v624
  %626 = vdwg.mxu0
  %627 = vmatprep.subr.mxu0 %v108
  %628 = vmatpush1.msra.mxu0 %v107
  %629 = vmatprep.subr.mxu0 %v112
  %630 = vmatpush1.msra.mxu0 %v111
  %631 = vmatprep.subr.mxu0 %v116
  %632 = vmatpush1.msra.mxu0 %v115
  %633 = vmatprep.subr.mxu0 %v120
  %634 = vmatpush1.msra.mxu0 %v119
  %635 = vmatprep.subr.mxu0 %v124
  %636 = vmatpush1.msra.mxu0 %v123
  %637 = vmatprep.subr.mxu0 %v128
  %638 = vmatpush1.msra.mxu0 %v127
  %639 = vmatprep.subr.mxu0 %v132
  %640 = vmatpush1.msra.mxu0 %v131
  %641 = vmatprep.subr.mxu0 %v136
  %642 = vmatpush1.msra.mxu0 %v135
  %643 = vmatprep.subr.mxu0 %v140
  %644 = vmatpush1.msra.mxu0 %v139
  %645 = vmatprep.subr.mxu0 %v144
  %646 = vmatpush1.msra.mxu0 %v143
  %647 = vmatprep.subr.mxu0 %v148
  %648 = vmatpush1.msra.mxu0 %v147
  %649 = vmatprep.subr.mxu0 %v152
  %650 = vmatpush1.msra.mxu0 %v151
  %651 = vmatprep.subr.mxu0 %v156
  %652 = vmatpush1.msra.mxu0 %v155
  %653 = vmatprep.subr.mxu0 %v160
  %654 = vmatpush1.msra.mxu0 %v159
  %655 = vmatprep.subr.mxu0 %v164
  %656 = vmatpush1.msra.mxu0 %v163
  %657 = vmatprep.subr.mxu0 %v168
  %658 = vmatpush1.msra.mxu0 %v167
  %659 = vmatprep.subr.mxu0 0.0
  %660 = vmatpush1.msra.mxu0 0.0
  %661 = vmatprep.subr.mxu0 0.0
  %662 = vmatpush1.msra.mxu0 0.0
  %663 = vmatprep.subr.mxu0 0.0
  %664 = vmatpush1.msra.mxu0 0.0
  %665 = vmatprep.subr.mxu0 0.0
  %666 = vmatpush1.msra.mxu0 0.0
  %667 = vmatprep.subr.mxu0 0.0
  %668 = vmatpush1.msra.mxu0 0.0
  %669 = vmatprep.subr.mxu0 0.0
  %670 = vmatpush1.msra.mxu0 0.0
  %671 = vmatprep.subr.mxu0 0.0
  %672 = vmatpush1.msra.mxu0 0.0
  %673 = vmatprep.subr.mxu0 0.0
  %674 = vmatpush1.msra.mxu0 0.0
  %675 = vmatprep.subr.mxu0 0.0
  %676 = vmatpush1.msra.mxu0 0.0
  %677 = vmatprep.subr.mxu0 0.0
  %678 = vmatpush1.msra.mxu0 0.0
  %679 = vmatprep.subr.mxu0 0.0
  %680 = vmatpush1.msra.mxu0 0.0
  %681 = vmatprep.subr.mxu0 0.0
  %682 = vmatpush1.msra.mxu0 0.0
  %683 = vmatprep.subr.mxu0 0.0
  %684 = vmatpush1.msra.mxu0 0.0
  %685 = vmatprep.subr.mxu0 0.0
  %686 = vmatpush1.msra.mxu0 0.0
  %687 = vmatprep.subr.mxu0 0.0
  %688 = vmatpush1.msra.mxu0 0.0
  %689 = vmatprep.subr.mxu0 0.0
  %690 = vmatpush1.msra.mxu0 0.0
  %691 = vmatprep.mubr.f32.mxu0 0.0
  %692 = vmatmul.mubr.f32.gmra.mrb[0].mxu0 %v409
  %v693 = vpop.f32.mrb[0].mxu0
  %v694 = vadd.f32 %v552, %v693
  %v695 = vpop.f32.mrb[0].mxu0
  %v696 = vadd.f32 %v554, %v695
  %697 = vdwg.mxu0
  %v699 = vlaneseq
  %v700 = vshrl.u32 %v699, 7
  %v701 = vsub.s32 0, %v700
  %v702 = vrot.slane %v233, %v701
  %v703 = vlaneseq
  %v704 = vshrl.u32 %v703, 7
  %v705 = vsub.s32 1, %v704
  %v706 = vrot.slane %v233, %v705
  %v707 = vlaneseq
  %v708 = vshrl.u32 %v707, 7
  %v709 = vsub.s32 2, %v708
  %v710 = vrot.slane %v233, %v709
  %v711 = vlaneseq
  %v712 = vshrl.u32 %v711, 7
  %v713 = vsub.s32 3, %v712
  %v714 = vrot.slane %v233, %v713
  %v719 = vadd.f32 %v623, %v702
  %v720 = vadd.f32 %v625, %v706
  %v721 = vadd.f32 %v694, %v710
  %v722 = vadd.f32 %v696, %v714
  %s723 = scalar_lea.vmem %s9, 8
  %v724 = vld [vmem:[%s723] sm:$0xff]
  %v725 = vxor.u32 %v719, 2147483648
  %v726 = vxor.u32 %v720, 2147483648
  %v727 = vxor.u32 %v721, 2147483648
  %v728 = vmul.f32 %v725, 1.442695
  %v729 = vpow.pop %v728
  %v730 = vmul.f32 %v726, 1.442695
  %v731 = vpow.pop %v730
  %v732 = vmul.f32 %v727, 1.442695
  %v733 = vpow.pop %v732
  %v734 = vadd.f32 %v729, 1.0
  %v735 = vadd.f32 %v731, 1.0
  %v736 = vadd.f32 %v733, 1.0
  %v737 = vrcp.pop %v734
  %v738 = vmul.f32 1.0, %v737
  %v739 = vrcp.pop %v735
  %v740 = vmul.f32 1.0, %v739
  %v741 = vrcp.pop %v736
  %v742 = vmul.f32 1.0, %v741
  %v743 = vtanh.pop %v722
  %v744 = vmul.f32 %v740, %v724
  %v745 = vmul.f32 %v738, %v743
  %v746 = vadd.f32 %v744, %v745
  %v747 = vtanh.pop %v746
  %v748 = vmul.f32 %v742, %v747
  %749 = vst [vmem:[%s412] sm:$0xff] %v748
  %750 = vst [vmem:[%s723] sm:$0xff] %v746
  %751 = vst [vmem:[%s7] sm:$0xff] %v748
  %s752 = scalar_lea.vmem %s0, 32
  %v753 = vld [vmem:[%s752] sm:$0xff]
  %v754 = vld [vmem:[%s752 + $0x8] sm:$0xff]
  %v755 = vld [vmem:[%s752 + $0x10] sm:$0xff]
  %v756 = vld [vmem:[%s752 + $0x18] sm:$0xff]
  %v757 = vld [vmem:[%s8] sm:$0xff]
  %758 = vmatprep.subr.mxu0 %v42
  %759 = vmatpush1.msra.mxu0 %v41
  %760 = vmatprep.subr.mxu0 %v46
  %761 = vmatpush1.msra.mxu0 %v45
  %762 = vmatprep.subr.mxu0 %v50
  %763 = vmatpush1.msra.mxu0 %v49
  %764 = vmatprep.subr.mxu0 %v54
  %765 = vmatpush1.msra.mxu0 %v53
  %766 = vmatprep.subr.mxu0 %v58
  %767 = vmatpush1.msra.mxu0 %v57
  %768 = vmatprep.subr.mxu0 %v62
  %769 = vmatpush1.msra.mxu0 %v61
  %770 = vmatprep.subr.mxu0 %v66
  %771 = vmatpush1.msra.mxu0 %v65
  %772 = vmatprep.subr.mxu0 %v70
  %773 = vmatpush1.msra.mxu0 %v69
  %774 = vmatprep.subr.mxu0 %v74
  %775 = vmatpush1.msra.mxu0 %v73
  %776 = vmatprep.subr.mxu0 %v78
  %777 = vmatpush1.msra.mxu0 %v77
  %778 = vmatprep.subr.mxu0 %v82
  %779 = vmatpush1.msra.mxu0 %v81
  %780 = vmatprep.subr.mxu0 %v86
  %781 = vmatpush1.msra.mxu0 %v85
  %782 = vmatprep.subr.mxu0 %v90
  %783 = vmatpush1.msra.mxu0 %v89
  %784 = vmatprep.subr.mxu0 %v94
  %785 = vmatpush1.msra.mxu0 %v93
  %786 = vmatprep.subr.mxu0 %v98
  %787 = vmatpush1.msra.mxu0 %v97
  %788 = vmatprep.subr.mxu0 %v102
  %789 = vmatpush1.msra.mxu0 %v101
  %790 = vmatprep.subr.mxu0 0.0
  %791 = vmatpush1.msra.mxu0 0.0
  %792 = vmatprep.subr.mxu0 0.0
  %793 = vmatpush1.msra.mxu0 0.0
  %794 = vmatprep.subr.mxu0 0.0
  %795 = vmatpush1.msra.mxu0 0.0
  %796 = vmatprep.subr.mxu0 0.0
  %797 = vmatpush1.msra.mxu0 0.0
  %798 = vmatprep.subr.mxu0 0.0
  %799 = vmatpush1.msra.mxu0 0.0
  %800 = vmatprep.subr.mxu0 0.0
  %801 = vmatpush1.msra.mxu0 0.0
  %802 = vmatprep.subr.mxu0 0.0
  %803 = vmatpush1.msra.mxu0 0.0
  %804 = vmatprep.subr.mxu0 0.0
  %805 = vmatpush1.msra.mxu0 0.0
  %806 = vmatprep.subr.mxu0 0.0
  %807 = vmatpush1.msra.mxu0 0.0
  %808 = vmatprep.subr.mxu0 0.0
  %809 = vmatpush1.msra.mxu0 0.0
  %810 = vmatprep.subr.mxu0 0.0
  %811 = vmatpush1.msra.mxu0 0.0
  %812 = vmatprep.subr.mxu0 0.0
  %813 = vmatpush1.msra.mxu0 0.0
  %814 = vmatprep.subr.mxu0 0.0
  %815 = vmatpush1.msra.mxu0 0.0
  %816 = vmatprep.subr.mxu0 0.0
  %817 = vmatpush1.msra.mxu0 0.0
  %818 = vmatprep.subr.mxu0 0.0
  %819 = vmatpush1.msra.mxu0 0.0
  %820 = vmatprep.subr.mxu0 0.0
  %821 = vmatpush1.msra.mxu0 0.0
  %822 = vmatprep.mubr.f32.mxu0 0.0
  %823 = vmatmul.mubr.f32.gmra.mrb[0].mxu0 %v757
  %v824 = vpop.f32.mrb[0].mxu0
  %v825 = vadd.f32 0.0, %v824
  %v826 = vpop.f32.mrb[0].mxu0
  %v827 = vadd.f32 0.0, %v826
  %828 = vdwg.mxu0
  %829 = vmatprep.subr.mxu0 %v44
  %830 = vmatpush1.msra.mxu0 %v43
  %831 = vmatprep.subr.mxu0 %v48
  %832 = vmatpush1.msra.mxu0 %v47
  %833 = vmatprep.subr.mxu0 %v52
  %834 = vmatpush1.msra.mxu0 %v51
  %835 = vmatprep.subr.mxu0 %v56
  %836 = vmatpush1.msra.mxu0 %v55
  %837 = vmatprep.subr.mxu0 %v60
  %838 = vmatpush1.msra.mxu0 %v59
  %839 = vmatprep.subr.mxu0 %v64
  %840 = vmatpush1.msra.mxu0 %v63
  %841 = vmatprep.subr.mxu0 %v68
  %842 = vmatpush1.msra.mxu0 %v67
  %843 = vmatprep.subr.mxu0 %v72
  %844 = vmatpush1.msra.mxu0 %v71
  %845 = vmatprep.subr.mxu0 %v76
  %846 = vmatpush1.msra.mxu0 %v75
  %847 = vmatprep.subr.mxu0 %v80
  %848 = vmatpush1.msra.mxu0 %v79
  %849 = vmatprep.subr.mxu0 %v84
  %850 = vmatpush1.msra.mxu0 %v83
  %851 = vmatprep.subr.mxu0 %v88
  %852 = vmatpush1.msra.mxu0 %v87
  %853 = vmatprep.subr.mxu0 %v92
  %854 = vmatpush1.msra.mxu0 %v91
  %855 = vmatprep.subr.mxu0 %v96
  %856 = vmatpush1.msra.mxu0 %v95
  %857 = vmatprep.subr.mxu0 %v100
  %858 = vmatpush1.msra.mxu0 %v99
  %859 = vmatprep.subr.mxu0 %v104
  %860 = vmatpush1.msra.mxu0 %v103
  %861 = vmatprep.subr.mxu0 0.0
  %862 = vmatpush1.msra.mxu0 0.0
  %863 = vmatprep.subr.mxu0 0.0
  %864 = vmatpush1.msra.mxu0 0.0
  %865 = vmatprep.subr.mxu0 0.0
  %866 = vmatpush1.msra.mxu0 0.0
  %867 = vmatprep.subr.mxu0 0.0
  %868 = vmatpush1.msra.mxu0 0.0
  %869 = vmatprep.subr.mxu0 0.0
  %870 = vmatpush1.msra.mxu0 0.0
  %871 = vmatprep.subr.mxu0 0.0
  %872 = vmatpush1.msra.mxu0 0.0
  %873 = vmatprep.subr.mxu0 0.0
  %874 = vmatpush1.msra.mxu0 0.0
  %875 = vmatprep.subr.mxu0 0.0
  %876 = vmatpush1.msra.mxu0 0.0
  %877 = vmatprep.subr.mxu0 0.0
  %878 = vmatpush1.msra.mxu0 0.0
  %879 = vmatprep.subr.mxu0 0.0
  %880 = vmatpush1.msra.mxu0 0.0
  %881 = vmatprep.subr.mxu0 0.0
  %882 = vmatpush1.msra.mxu0 0.0
  %883 = vmatprep.subr.mxu0 0.0
  %884 = vmatpush1.msra.mxu0 0.0
  %885 = vmatprep.subr.mxu0 0.0
  %886 = vmatpush1.msra.mxu0 0.0
  %887 = vmatprep.subr.mxu0 0.0
  %888 = vmatpush1.msra.mxu0 0.0
  %889 = vmatprep.subr.mxu0 0.0
  %890 = vmatpush1.msra.mxu0 0.0
  %891 = vmatprep.subr.mxu0 0.0
  %892 = vmatpush1.msra.mxu0 0.0
  %893 = vmatprep.mubr.f32.mxu0 0.0
  %894 = vmatmul.mubr.f32.gmra.mrb[0].mxu0 %v757
  %v895 = vpop.f32.mrb[0].mxu0
  %v896 = vadd.f32 0.0, %v895
  %v897 = vpop.f32.mrb[0].mxu0
  %v898 = vadd.f32 0.0, %v897
  %899 = vdwg.mxu0
  %v900 = vadd.f32 %v753, %v825
  %v901 = vadd.f32 %v754, %v827
  %v902 = vadd.f32 %v755, %v896
  %v903 = vadd.f32 %v756, %v898
  %v904 = vld [vmem:[%s9] sm:$0xff]
  %v905 = vxor.u32 %v900, 2147483648
  %v906 = vxor.u32 %v901, 2147483648
  %v907 = vxor.u32 %v902, 2147483648
  %v908 = vmul.f32 %v905, 1.442695
  %v909 = vpow.pop %v908
  %v910 = vmul.f32 %v906, 1.442695
  %v911 = vpow.pop %v910
  %v912 = vmul.f32 %v907, 1.442695
  %v913 = vpow.pop %v912
  %v914 = vadd.f32 %v909, 1.0
  %v915 = vadd.f32 %v911, 1.0
  %v916 = vadd.f32 %v913, 1.0
  %v917 = vrcp.pop %v914
  %v918 = vmul.f32 1.0, %v917
  %v919 = vrcp.pop %v915
  %v920 = vmul.f32 1.0, %v919
  %v921 = vrcp.pop %v916
  %v922 = vmul.f32 1.0, %v921
  %v923 = vtanh.pop %v903
  %v924 = vmul.f32 %v920, %v904
  %v925 = vmul.f32 %v918, %v923
  %v926 = vadd.f32 %v924, %v925
  %v927 = vtanh.pop %v926
  %v928 = vmul.f32 %v922, %v927
  %929 = vst [vmem:[%s8] sm:$0xff] %v928
  %930 = vst [vmem:[%s9] sm:$0xff] %v926
  %v931 = vld [vmem:[%s412] sm:$0xff]
  %932 = vmatprep.subr.mxu0 %v170
  %933 = vmatpush1.msra.mxu0 %v169
  %934 = vmatprep.subr.mxu0 %v174
  %935 = vmatpush1.msra.mxu0 %v173
  %936 = vmatprep.subr.mxu0 %v178
  %937 = vmatpush1.msra.mxu0 %v177
  %938 = vmatprep.subr.mxu0 %v182
  %939 = vmatpush1.msra.mxu0 %v181
  %940 = vmatprep.subr.mxu0 %v186
  %941 = vmatpush1.msra.mxu0 %v185
  %942 = vmatprep.subr.mxu0 %v190
  %943 = vmatpush1.msra.mxu0 %v189
  %944 = vmatprep.subr.mxu0 %v194
  %945 = vmatpush1.msra.mxu0 %v193
  %946 = vmatprep.subr.mxu0 %v198
  %947 = vmatpush1.msra.mxu0 %v197
  %948 = vmatprep.subr.mxu0 %v202
  %949 = vmatpush1.msra.mxu0 %v201
  %950 = vmatprep.subr.mxu0 %v206
  %951 = vmatpush1.msra.mxu0 %v205
  %952 = vmatprep.subr.mxu0 %v210
  %953 = vmatpush1.msra.mxu0 %v209
  %954 = vmatprep.subr.mxu0 %v214
  %955 = vmatpush1.msra.mxu0 %v213
  %956 = vmatprep.subr.mxu0 %v218
  %957 = vmatpush1.msra.mxu0 %v217
  %958 = vmatprep.subr.mxu0 %v222
  %959 = vmatpush1.msra.mxu0 %v221
  %960 = vmatprep.subr.mxu0 %v226
  %961 = vmatpush1.msra.mxu0 %v225
  %962 = vmatprep.subr.mxu0 %v230
  %963 = vmatpush1.msra.mxu0 %v229
  %964 = vmatprep.subr.mxu0 0.0
  %965 = vmatpush1.msra.mxu0 0.0
  %966 = vmatprep.subr.mxu0 0.0
  %967 = vmatpush1.msra.mxu0 0.0
  %968 = vmatprep.subr.mxu0 0.0
  %969 = vmatpush1.msra.mxu0 0.0
  %970 = vmatprep.subr.mxu0 0.0
  %971 = vmatpush1.msra.mxu0 0.0
  %972 = vmatprep.subr.mxu0 0.0
  %973 = vmatpush1.msra.mxu0 0.0
  %974 = vmatprep.subr.mxu0 0.0
  %975 = vmatpush1.msra.mxu0 0.0
  %976 = vmatprep.subr.mxu0 0.0
  %977 = vmatpush1.msra.mxu0 0.0
  %978 = vmatprep.subr.mxu0 0.0
  %979 = vmatpush1.msra.mxu0 0.0
  %980 = vmatprep.subr.mxu0 0.0
  %981 = vmatpush1.msra.mxu0 0.0
  %982 = vmatprep.subr.mxu0 0.0
  %983 = vmatpush1.msra.mxu0 0.0
  %984 = vmatprep.subr.mxu0 0.0
  %985 = vmatpush1.msra.mxu0 0.0
  %986 = vmatprep.subr.mxu0 0.0
  %987 = vmatpush1.msra.mxu0 0.0
  %988 = vmatprep.subr.mxu0 0.0
  %989 = vmatpush1.msra.mxu0 0.0
  %990 = vmatprep.subr.mxu0 0.0
  %991 = vmatpush1.msra.mxu0 0.0
  %992 = vmatprep.subr.mxu0 0.0
  %993 = vmatpush1.msra.mxu0 0.0
  %994 = vmatprep.subr.mxu0 0.0
  %995 = vmatpush1.msra.mxu0 0.0
  %996 = vmatprep.mubr.f32.mxu0 0.0
  %997 = vmatmul.mubr.f32.gmra.mrb[0].mxu0 %v931
  %v998 = vpop.f32.mrb[0].mxu0
  %v999 = vadd.f32 0.0, %v998
  %v1000 = vpop.f32.mrb[0].mxu0
  %v1001 = vadd.f32 0.0, %v1000
  %1002 = vdwg.mxu0
  %1003 = vmatprep.subr.mxu0 %v172
  %1004 = vmatpush1.msra.mxu0 %v171
  %1005 = vmatprep.subr.mxu0 %v176
  %1006 = vmatpush1.msra.mxu0 %v175
  %1007 = vmatprep.subr.mxu0 %v180
  %1008 = vmatpush1.msra.mxu0 %v179
  %1009 = vmatprep.subr.mxu0 %v184
  %1010 = vmatpush1.msra.mxu0 %v183
  %1011 = vmatprep.subr.mxu0 %v188
  %1012 = vmatpush1.msra.mxu0 %v187
  %1013 = vmatprep.subr.mxu0 %v192
  %1014 = vmatpush1.msra.mxu0 %v191
  %1015 = vmatprep.subr.mxu0 %v196
  %1016 = vmatpush1.msra.mxu0 %v195
  %1017 = vmatprep.subr.mxu0 %v200
  %1018 = vmatpush1.msra.mxu0 %v199
  %1019 = vmatprep.subr.mxu0 %v204
  %1020 = vmatpush1.msra.mxu0 %v203
  %1021 = vmatprep.subr.mxu0 %v208
  %1022 = vmatpush1.msra.mxu0 %v207
  %1023 = vmatprep.subr.mxu0 %v212
  %1024 = vmatpush1.msra.mxu0 %v211
  %1025 = vmatprep.subr.mxu0 %v216
  %1026 = vmatpush1.msra.mxu0 %v215
  %1027 = vmatprep.subr.mxu0 %v220
  %1028 = vmatpush1.msra.mxu0 %v219
  %1029 = vmatprep.subr.mxu0 %v224
  %1030 = vmatpush1.msra.mxu0 %v223
  %1031 = vmatprep.subr.mxu0 %v228
  %1032 = vmatpush1.msra.mxu0 %v227
  %1033 = vmatprep.subr.mxu0 %v232
  %1034 = vmatpush1.msra.mxu0 %v231
  %1035 = vmatprep.subr.mxu0 0.0
  %1036 = vmatpush1.msra.mxu0 0.0
  %1037 = vmatprep.subr.mxu0 0.0
  %1038 = vmatpush1.msra.mxu0 0.0
  %1039 = vmatprep.subr.mxu0 0.0
  %1040 = vmatpush1.msra.mxu0 0.0
  %1041 = vmatprep.subr.mxu0 0.0
  %1042 = vmatpush1.msra.mxu0 0.0
  %1043 = vmatprep.subr.mxu0 0.0
  %1044 = vmatpush1.msra.mxu0 0.0
  %1045 = vmatprep.subr.mxu0 0.0
  %1046 = vmatpush1.msra.mxu0 0.0
  %1047 = vmatprep.subr.mxu0 0.0
  %1048 = vmatpush1.msra.mxu0 0.0
  %1049 = vmatprep.subr.mxu0 0.0
  %1050 = vmatpush1.msra.mxu0 0.0
  %1051 = vmatprep.subr.mxu0 0.0
  %1052 = vmatpush1.msra.mxu0 0.0
  %1053 = vmatprep.subr.mxu0 0.0
  %1054 = vmatpush1.msra.mxu0 0.0
  %1055 = vmatprep.subr.mxu0 0.0
  %1056 = vmatpush1.msra.mxu0 0.0
  %1057 = vmatprep.subr.mxu0 0.0
  %1058 = vmatpush1.msra.mxu0 0.0
  %1059 = vmatprep.subr.mxu0 0.0
  %1060 = vmatpush1.msra.mxu0 0.0
  %1061 = vmatprep.subr.mxu0 0.0
  %1062 = vmatpush1.msra.mxu0 0.0
  %1063 = vmatprep.subr.mxu0 0.0
  %1064 = vmatpush1.msra.mxu0 0.0
  %1065 = vmatprep.subr.mxu0 0.0
  %1066 = vmatpush1.msra.mxu0 0.0
  %1067 = vmatprep.mubr.f32.mxu0 0.0
  %1068 = vmatmul.mubr.f32.gmra.mrb[0].mxu0 %v931
  %v1069 = vpop.f32.mrb[0].mxu0
  %v1070 = vadd.f32 0.0, %v1069
  %v1071 = vpop.f32.mrb[0].mxu0
  %v1072 = vadd.f32 0.0, %v1071
  %1073 = vdwg.mxu0
  %1074 = vmatprep.subr.mxu0 %v106
  %1075 = vmatpush1.msra.mxu0 %v105
  %1076 = vmatprep.subr.mxu0 %v110
  %1077 = vmatpush1.msra.mxu0 %v109
  %1078 = vmatprep.subr.mxu0 %v114
  %1079 = vmatpush1.msra.mxu0 %v113
  %1080 = vmatprep.subr.mxu0 %v118
  %1081 = vmatpush1.msra.mxu0 %v117
  %1082 = vmatprep.subr.mxu0 %v122
  %1083 = vmatpush1.msra.mxu0 %v121
  %1084 = vmatprep.subr.mxu0 %v126
  %1085 = vmatpush1.msra.mxu0 %v125
  %1086 = vmatprep.subr.mxu0 %v130
  %1087 = vmatpush1.msra.mxu0 %v129
  %1088 = vmatprep.subr.mxu0 %v134
  %1089 = vmatpush1.msra.mxu0 %v133
  %1090 = vmatprep.subr.mxu0 %v138
  %1091 = vmatpush1.msra.mxu0 %v137
  %1092 = vmatprep.subr.mxu0 %v142
  %1093 = vmatpush1.msra.mxu0 %v141
  %1094 = vmatprep.subr.mxu0 %v146
  %1095 = vmatpush1.msra.mxu0 %v145
  %1096 = vmatprep.subr.mxu0 %v150
  %1097 = vmatpush1.msra.mxu0 %v149
  %1098 = vmatprep.subr.mxu0 %v154
  %1099 = vmatpush1.msra.mxu0 %v153
  %1100 = vmatprep.subr.mxu0 %v158
  %1101 = vmatpush1.msra.mxu0 %v157
  %1102 = vmatprep.subr.mxu0 %v162
  %1103 = vmatpush1.msra.mxu0 %v161
  %1104 = vmatprep.subr.mxu0 %v166
  %1105 = vmatpush1.msra.mxu0 %v165
  %1106 = vmatprep.subr.mxu0 0.0
  %1107 = vmatpush1.msra.mxu0 0.0
  %1108 = vmatprep.subr.mxu0 0.0
  %1109 = vmatpush1.msra.mxu0 0.0
  %1110 = vmatprep.subr.mxu0 0.0
  %1111 = vmatpush1.msra.mxu0 0.0
  %1112 = vmatprep.subr.mxu0 0.0
  %1113 = vmatpush1.msra.mxu0 0.0
  %1114 = vmatprep.subr.mxu0 0.0
  %1115 = vmatpush1.msra.mxu0 0.0
  %1116 = vmatprep.subr.mxu0 0.0
  %1117 = vmatpush1.msra.mxu0 0.0
  %1118 = vmatprep.subr.mxu0 0.0
  %1119 = vmatpush1.msra.mxu0 0.0
  %1120 = vmatprep.subr.mxu0 0.0
  %1121 = vmatpush1.msra.mxu0 0.0
  %1122 = vmatprep.subr.mxu0 0.0
  %1123 = vmatpush1.msra.mxu0 0.0
  %1124 = vmatprep.subr.mxu0 0.0
  %1125 = vmatpush1.msra.mxu0 0.0
  %1126 = vmatprep.subr.mxu0 0.0
  %1127 = vmatpush1.msra.mxu0 0.0
  %1128 = vmatprep.subr.mxu0 0.0
  %1129 = vmatpush1.msra.mxu0 0.0
  %1130 = vmatprep.subr.mxu0 0.0
  %1131 = vmatpush1.msra.mxu0 0.0
  %1132 = vmatprep.subr.mxu0 0.0
  %1133 = vmatpush1.msra.mxu0 0.0
  %1134 = vmatprep.subr.mxu0 0.0
  %1135 = vmatpush1.msra.mxu0 0.0
  %1136 = vmatprep.subr.mxu0 0.0
  %1137 = vmatpush1.msra.mxu0 0.0
  %1138 = vmatprep.mubr.f32.mxu0 0.0
  %1139 = vmatmul.mubr.f32.gmra.mrb[0].mxu0 %v928
  %v1140 = vpop.f32.mrb[0].mxu0
  %v1141 = vadd.f32 %v999, %v1140
  %v1142 = vpop.f32.mrb[0].mxu0
  %v1143 = vadd.f32 %v1001, %v1142
  %1144 = vdwg.mxu0
  %1145 = vmatprep.subr.mxu0 %v108
  %1146 = vmatpush1.msra.mxu0 %v107
  %1147 = vmatprep.subr.mxu0 %v112
  %1148 = vmatpush1.msra.mxu0 %v111
  %1149 = vmatprep.subr.mxu0 %v116
  %1150 = vmatpush1.msra.mxu0 %v115
  %1151 = vmatprep.subr.mxu0 %v120
  %1152 = vmatpush1.msra.mxu0 %v119
  %1153 = vmatprep.subr.mxu0 %v124
  %1154 = vmatpush1.msra.mxu0 %v123
  %1155 = vmatprep.subr.mxu0 %v128
  %1156 = vmatpush1.msra.mxu0 %v127
  %1157 = vmatprep.subr.mxu0 %v132
  %1158 = vmatpush1.msra.mxu0 %v131
  %1159 = vmatprep.subr.mxu0 %v136
  %1160 = vmatpush1.msra.mxu0 %v135
  %1161 = vmatprep.subr.mxu0 %v140
  %1162 = vmatpush1.msra.mxu0 %v139
  %1163 = vmatprep.subr.mxu0 %v144
  %1164 = vmatpush1.msra.mxu0 %v143
  %1165 = vmatprep.subr.mxu0 %v148
  %1166 = vmatpush1.msra.mxu0 %v147
  %1167 = vmatprep.subr.mxu0 %v152
  %1168 = vmatpush1.msra.mxu0 %v151
  %1169 = vmatprep.subr.mxu0 %v156
  %1170 = vmatpush1.msra.mxu0 %v155
  %1171 = vmatprep.subr.mxu0 %v160
  %1172 = vmatpush1.msra.mxu0 %v159
  %1173 = vmatprep.subr.mxu0 %v164
  %1174 = vmatpush1.msra.mxu0 %v163
  %1175 = vmatprep.subr.mxu0 %v168
  %1176 = vmatpush1.msra.mxu0 %v167
  %1177 = vmatprep.subr.mxu0 0.0
  %1178 = vmatpush1.msra.mxu0 0.0
  %1179 = vmatprep.subr.mxu0 0.0
  %1180 = vmatpush1.msra.mxu0 0.0
  %1181 = vmatprep.subr.mxu0 0.0
  %1182 = vmatpush1.msra.mxu0 0.0
  %1183 = vmatprep.subr.mxu0 0.0
  %1184 = vmatpush1.msra.mxu0 0.0
  %1185 = vmatprep.subr.mxu0 0.0
  %1186 = vmatpush1.msra.mxu0 0.0
  %1187 = vmatprep.subr.mxu0 0.0
  %1188 = vmatpush1.msra.mxu0 0.0
  %1189 = vmatprep.subr.mxu0 0.0
  %1190 = vmatpush1.msra.mxu0 0.0
  %1191 = vmatprep.subr.mxu0 0.0
  %1192 = vmatpush1.msra.mxu0 0.0
  %1193 = vmatprep.subr.mxu0 0.0
  %1194 = vmatpush1.msra.mxu0 0.0
  %1195 = vmatprep.subr.mxu0 0.0
  %1196 = vmatpush1.msra.mxu0 0.0
  %1197 = vmatprep.subr.mxu0 0.0
  %1198 = vmatpush1.msra.mxu0 0.0
  %1199 = vmatprep.subr.mxu0 0.0
  %1200 = vmatpush1.msra.mxu0 0.0
  %1201 = vmatprep.subr.mxu0 0.0
  %1202 = vmatpush1.msra.mxu0 0.0
  %1203 = vmatprep.subr.mxu0 0.0
  %1204 = vmatpush1.msra.mxu0 0.0
  %1205 = vmatprep.subr.mxu0 0.0
  %1206 = vmatpush1.msra.mxu0 0.0
  %1207 = vmatprep.subr.mxu0 0.0
  %1208 = vmatpush1.msra.mxu0 0.0
  %1209 = vmatprep.mubr.f32.mxu0 0.0
  %1210 = vmatmul.mubr.f32.gmra.mrb[0].mxu0 %v928
  %v1211 = vpop.f32.mrb[0].mxu0
  %v1212 = vadd.f32 %v1070, %v1211
  %v1213 = vpop.f32.mrb[0].mxu0
  %v1214 = vadd.f32 %v1072, %v1213
  %1215 = vdwg.mxu0
  %v1216 = vadd.f32 %v1141, %v702
  %v1217 = vadd.f32 %v1143, %v706
  %v1218 = vadd.f32 %v1212, %v710
  %v1219 = vadd.f32 %v1214, %v714
  %v1220 = vld [vmem:[%s723] sm:$0xff]
  %v1221 = vxor.u32 %v1216, 2147483648
  %v1222 = vxor.u32 %v1217, 2147483648
  %v1223 = vxor.u32 %v1218, 2147483648
  %v1224 = vmul.f32 %v1221, 1.442695
  %v1225 = vpow.pop %v1224
  %v1226 = vmul.f32 %v1222, 1.442695
  %v1227 = vpow.pop %v1226
  %v1228 = vmul.f32 %v1223, 1.442695
  %v1229 = vpow.pop %v1228
  %v1230 = vadd.f32 %v1225, 1.0
  %v1231 = vadd.f32 %v1227, 1.0
  %v1232 = vadd.f32 %v1229, 1.0
  %v1233 = vrcp.pop %v1230
  %v1234 = vmul.f32 1.0, %v1233
  %v1235 = vrcp.pop %v1231
  %v1236 = vmul.f32 1.0, %v1235
  %v1237 = vrcp.pop %v1232
  %v1238 = vmul.f32 1.0, %v1237
  %v1239 = vtanh.pop %v1219
  %v1240 = vmul.f32 %v1236, %v1220
  %v1241 = vmul.f32 %v1234, %v1239
  %v1242 = vadd.f32 %v1240, %v1241
  %v1243 = vtanh.pop %v1242
  %v1244 = vmul.f32 %v1238, %v1243
  %1245 = vst [vmem:[%s412] sm:$0xff] %v1244
  %1246 = vst [vmem:[%s723] sm:$0xff] %v1242
  %s1247 = scalar_lea.vmem %s7, 8
  %1248 = vst [vmem:[%s1247] sm:$0xff] %v1244
  %s1249 = scalar_lea.vmem %s0, 64
  %v1250 = vld [vmem:[%s1249] sm:$0xff]
  %v1251 = vld [vmem:[%s1249 + $0x8] sm:$0xff]
  %v1252 = vld [vmem:[%s1249 + $0x10] sm:$0xff]
  %v1253 = vld [vmem:[%s1249 + $0x18] sm:$0xff]
  %v1254 = vld [vmem:[%s8] sm:$0xff]
  %1255 = vmatprep.subr.mxu0 %v42
  %1256 = vmatpush1.msra.mxu0 %v41
  %1257 = vmatprep.subr.mxu0 %v46
  %1258 = vmatpush1.msra.mxu0 %v45
  %1259 = vmatprep.subr.mxu0 %v50
  %1260 = vmatpush1.msra.mxu0 %v49
  %1261 = vmatprep.subr.mxu0 %v54
  %1262 = vmatpush1.msra.mxu0 %v53
  %1263 = vmatprep.subr.mxu0 %v58
  %1264 = vmatpush1.msra.mxu0 %v57
  %1265 = vmatprep.subr.mxu0 %v62
  %1266 = vmatpush1.msra.mxu0 %v61
  %1267 = vmatprep.subr.mxu0 %v66
  %1268 = vmatpush1.msra.mxu0 %v65
  %1269 = vmatprep.subr.mxu0 %v70
  %1270 = vmatpush1.msra.mxu0 %v69
  %1271 = vmatprep.subr.mxu0 %v74
  %1272 = vmatpush1.msra.mxu0 %v73
  %1273 = vmatprep.subr.mxu0 %v78
  %1274 = vmatpush1.msra.mxu0 %v77
  %1275 = vmatprep.subr.mxu0 %v82
  %1276 = vmatpush1.msra.mxu0 %v81
  %1277 = vmatprep.subr.mxu0 %v86
  %1278 = vmatpush1.msra.mxu0 %v85
  %1279 = vmatprep.subr.mxu0 %v90
  %1280 = vmatpush1.msra.mxu0 %v89
  %1281 = vmatprep.subr.mxu0 %v94
  %1282 = vmatpush1.msra.mxu0 %v93
  %1283 = vmatprep.subr.mxu0 %v98
  %1284 = vmatpush1.msra.mxu0 %v97
  %1285 = vmatprep.subr.mxu0 %v102
  %1286 = vmatpush1.msra.mxu0 %v101
  %1287 = vmatprep.subr.mxu0 0.0
  %1288 = vmatpush1.msra.mxu0 0.0
  %1289 = vmatprep.subr.mxu0 0.0
  %1290 = vmatpush1.msra.mxu0 0.0
  %1291 = vmatprep.subr.mxu0 0.0
  %1292 = vmatpush1.msra.mxu0 0.0
  %1293 = vmatprep.subr.mxu0 0.0
  %1294 = vmatpush1.msra.mxu0 0.0
  %1295 = vmatprep.subr.mxu0 0.0
  %1296 = vmatpush1.msra.mxu0 0.0
  %1297 = vmatprep.subr.mxu0 0.0
  %1298 = vmatpush1.msra.mxu0 0.0
  %1299 = vmatprep.subr.mxu0 0.0
  %1300 = vmatpush1.msra.mxu0 0.0
  %1301 = vmatprep.subr.mxu0 0.0
  %1302 = vmatpush1.msra.mxu0 0.0
  %1303 = vmatprep.subr.mxu0 0.0
  %1304 = vmatpush1.msra.mxu0 0.0
  %1305 = vmatprep.subr.mxu0 0.0
  %1306 = vmatpush1.msra.mxu0 0.0
  %1307 = vmatprep.subr.mxu0 0.0
  %1308 = vmatpush1.msra.mxu0 0.0
  %1309 = vmatprep.subr.mxu0 0.0
  %1310 = vmatpush1.msra.mxu0 0.0
  %1311 = vmatprep.subr.mxu0 0.0
  %1312 = vmatpush1.msra.mxu0 0.0
  %1313 = vmatprep.subr.mxu0 0.0
  %1314 = vmatpush1.msra.mxu0 0.0
  %1315 = vmatprep.subr.mxu0 0.0
  %1316 = vmatpush1.msra.mxu0 0.0
  %1317 = vmatprep.subr.mxu0 0.0
  %1318 = vmatpush1.msra.mxu0 0.0
  %1319 = vmatprep.mubr.f32.mxu0 0.0
  %1320 = vmatmul.mubr.f32.gmra.mrb[0].mxu0 %v1254
  %v1321 = vpop.f32.mrb[0].mxu0
  %v1322 = vadd.f32 0.0, %v1321
  %v1323 = vpop.f32.mrb[0].mxu0
  %v1324 = vadd.f32 0.0, %v1323
  %1325 = vdwg.mxu0
  %1326 = vmatprep.subr.mxu0 %v44
  %1327 = vmatpush1.msra.mxu0 %v43
  %1328 = vmatprep.subr.mxu0 %v48
  %1329 = vmatpush1.msra.mxu0 %v47
  %1330 = vmatprep.subr.mxu0 %v52
  %1331 = vmatpush1.msra.mxu0 %v51
  %1332 = vmatprep.subr.mxu0 %v56
  %1333 = vmatpush1.msra.mxu0 %v55
  %1334 = vmatprep.subr.mxu0 %v60
  %1335 = vmatpush1.msra.mxu0 %v59
  %1336 = vmatprep.subr.mxu0 %v64
  %1337 = vmatpush1.msra.mxu0 %v63
  %1338 = vmatprep.subr.mxu0 %v68
  %1339 = vmatpush1.msra.mxu0 %v67
  %1340 = vmatprep.subr.mxu0 %v72
  %1341 = vmatpush1.msra.mxu0 %v71
  %1342 = vmatprep.subr.mxu0 %v76
  %1343 = vmatpush1.msra.mxu0 %v75
  %1344 = vmatprep.subr.mxu0 %v80
  %1345 = vmatpush1.msra.mxu0 %v79
  %1346 = vmatprep.subr.mxu0 %v84
  %1347 = vmatpush1.msra.mxu0 %v83
  %1348 = vmatprep.subr.mxu0 %v88
  %1349 = vmatpush1.msra.mxu0 %v87
  %1350 = vmatprep.subr.mxu0 %v92
  %1351 = vmatpush1.msra.mxu0 %v91
  %1352 = vmatprep.subr.mxu0 %v96
  %1353 = vmatpush1.msra.mxu0 %v95
  %1354 = vmatprep.subr.mxu0 %v100
  %1355 = vmatpush1.msra.mxu0 %v99
  %1356 = vmatprep.subr.mxu0 %v104
  %1357 = vmatpush1.msra.mxu0 %v103
  %1358 = vmatprep.subr.mxu0 0.0
  %1359 = vmatpush1.msra.mxu0 0.0
  %1360 = vmatprep.subr.mxu0 0.0
  %1361 = vmatpush1.msra.mxu0 0.0
  %1362 = vmatprep.subr.mxu0 0.0
  %1363 = vmatpush1.msra.mxu0 0.0
  %1364 = vmatprep.subr.mxu0 0.0
  %1365 = vmatpush1.msra.mxu0 0.0
  %1366 = vmatprep.subr.mxu0 0.0
  %1367 = vmatpush1.msra.mxu0 0.0
  %1368 = vmatprep.subr.mxu0 0.0
  %1369 = vmatpush1.msra.mxu0 0.0
  %1370 = vmatprep.subr.mxu0 0.0
  %1371 = vmatpush1.msra.mxu0 0.0
  %1372 = vmatprep.subr.mxu0 0.0
  %1373 = vmatpush1.msra.mxu0 0.0
  %1374 = vmatprep.subr.mxu0 0.0
  %1375 = vmatpush1.msra.mxu0 0.0
  %1376 = vmatprep.subr.mxu0 0.0
  %1377 = vmatpush1.msra.mxu0 0.0
  %1378 = vmatprep.subr.mxu0 0.0
  %1379 = vmatpush1.msra.mxu0 0.0
  %1380 = vmatprep.subr.mxu0 0.0
  %1381 = vmatpush1.msra.mxu0 0.0
  %1382 = vmatprep.subr.mxu0 0.0
  %1383 = vmatpush1.msra.mxu0 0.0
  %1384 = vmatprep.subr.mxu0 0.0
  %1385 = vmatpush1.msra.mxu0 0.0
  %1386 = vmatprep.subr.mxu0 0.0
  %1387 = vmatpush1.msra.mxu0 0.0
  %1388 = vmatprep.subr.mxu0 0.0
  %1389 = vmatpush1.msra.mxu0 0.0
  %1390 = vmatprep.mubr.f32.mxu0 0.0
  %1391 = vmatmul.mubr.f32.gmra.mrb[0].mxu0 %v1254
  %v1392 = vpop.f32.mrb[0].mxu0
  %v1393 = vadd.f32 0.0, %v1392
  %v1394 = vpop.f32.mrb[0].mxu0
  %v1395 = vadd.f32 0.0, %v1394
  %1396 = vdwg.mxu0
  %v1397 = vadd.f32 %v1250, %v1322
  %v1398 = vadd.f32 %v1251, %v1324
  %v1399 = vadd.f32 %v1252, %v1393
  %v1400 = vadd.f32 %v1253, %v1395
  %v1401 = vld [vmem:[%s9] sm:$0xff]
  %v1402 = vxor.u32 %v1397, 2147483648
  %v1403 = vxor.u32 %v1398, 2147483648
  %v1404 = vxor.u32 %v1399, 2147483648
  %v1405 = vmul.f32 %v1402, 1.442695
  %v1406 = vpow.pop %v1405
  %v1407 = vmul.f32 %v1403, 1.442695
  %v1408 = vpow.pop %v1407
  %v1409 = vmul.f32 %v1404, 1.442695
  %v1410 = vpow.pop %v1409
  %v1411 = vadd.f32 %v1406, 1.0
  %v1412 = vadd.f32 %v1408, 1.0
  %v1413 = vadd.f32 %v1410, 1.0
  %v1414 = vrcp.pop %v1411
  %v1415 = vmul.f32 1.0, %v1414
  %v1416 = vrcp.pop %v1412
  %v1417 = vmul.f32 1.0, %v1416
  %v1418 = vrcp.pop %v1413
  %v1419 = vmul.f32 1.0, %v1418
  %v1420 = vtanh.pop %v1400
  %v1421 = vmul.f32 %v1417, %v1401
  %v1422 = vmul.f32 %v1415, %v1420
  %v1423 = vadd.f32 %v1421, %v1422
  %v1424 = vtanh.pop %v1423
  %v1425 = vmul.f32 %v1419, %v1424
  %1426 = vst [vmem:[%s8] sm:$0xff] %v1425
  %1427 = vst [vmem:[%s9] sm:$0xff] %v1423
  %v1428 = vld [vmem:[%s412] sm:$0xff]
  %1429 = vmatprep.subr.mxu0 %v170
  %1430 = vmatpush1.msra.mxu0 %v169
  %1431 = vmatprep.subr.mxu0 %v174
  %1432 = vmatpush1.msra.mxu0 %v173
  %1433 = vmatprep.subr.mxu0 %v178
  %1434 = vmatpush1.msra.mxu0 %v177
  %1435 = vmatprep.subr.mxu0 %v182
  %1436 = vmatpush1.msra.mxu0 %v181
  %1437 = vmatprep.subr.mxu0 %v186
  %1438 = vmatpush1.msra.mxu0 %v185
  %1439 = vmatprep.subr.mxu0 %v190
  %1440 = vmatpush1.msra.mxu0 %v189
  %1441 = vmatprep.subr.mxu0 %v194
  %1442 = vmatpush1.msra.mxu0 %v193
  %1443 = vmatprep.subr.mxu0 %v198
  %1444 = vmatpush1.msra.mxu0 %v197
  %1445 = vmatprep.subr.mxu0 %v202
  %1446 = vmatpush1.msra.mxu0 %v201
  %1447 = vmatprep.subr.mxu0 %v206
  %1448 = vmatpush1.msra.mxu0 %v205
  %1449 = vmatprep.subr.mxu0 %v210
  %1450 = vmatpush1.msra.mxu0 %v209
  %1451 = vmatprep.subr.mxu0 %v214
  %1452 = vmatpush1.msra.mxu0 %v213
  %1453 = vmatprep.subr.mxu0 %v218
  %1454 = vmatpush1.msra.mxu0 %v217
  %1455 = vmatprep.subr.mxu0 %v222
  %1456 = vmatpush1.msra.mxu0 %v221
  %1457 = vmatprep.subr.mxu0 %v226
  %1458 = vmatpush1.msra.mxu0 %v225
  %1459 = vmatprep.subr.mxu0 %v230
  %1460 = vmatpush1.msra.mxu0 %v229
  %1461 = vmatprep.subr.mxu0 0.0
  %1462 = vmatpush1.msra.mxu0 0.0
  %1463 = vmatprep.subr.mxu0 0.0
  %1464 = vmatpush1.msra.mxu0 0.0
  %1465 = vmatprep.subr.mxu0 0.0
  %1466 = vmatpush1.msra.mxu0 0.0
  %1467 = vmatprep.subr.mxu0 0.0
  %1468 = vmatpush1.msra.mxu0 0.0
  %1469 = vmatprep.subr.mxu0 0.0
  %1470 = vmatpush1.msra.mxu0 0.0
  %1471 = vmatprep.subr.mxu0 0.0
  %1472 = vmatpush1.msra.mxu0 0.0
  %1473 = vmatprep.subr.mxu0 0.0
  %1474 = vmatpush1.msra.mxu0 0.0
  %1475 = vmatprep.subr.mxu0 0.0
  %1476 = vmatpush1.msra.mxu0 0.0
  %1477 = vmatprep.subr.mxu0 0.0
  %1478 = vmatpush1.msra.mxu0 0.0
  %1479 = vmatprep.subr.mxu0 0.0
  %1480 = vmatpush1.msra.mxu0 0.0
  %1481 = vmatprep.subr.mxu0 0.0
  %1482 = vmatpush1.msra.mxu0 0.0
  %1483 = vmatprep.subr.mxu0 0.0
  %1484 = vmatpush1.msra.mxu0 0.0
  %1485 = vmatprep.subr.mxu0 0.0
  %1486 = vmatpush1.msra.mxu0 0.0
  %1487 = vmatprep.subr.mxu0 0.0
  %1488 = vmatpush1.msra.mxu0 0.0
  %1489 = vmatprep.subr.mxu0 0.0
  %1490 = vmatpush1.msra.mxu0 0.0
  %1491 = vmatprep.subr.mxu0 0.0
  %1492 = vmatpush1.msra.mxu0 0.0
  %1493 = vmatprep.mubr.f32.mxu0 0.0
  %1494 = vmatmul.mubr.f32.gmra.mrb[0].mxu0 %v1428
  %v1495 = vpop.f32.mrb[0].mxu0
  %v1496 = vadd.f32 0.0, %v1495
  %v1497 = vpop.f32.mrb[0].mxu0
  %v1498 = vadd.f32 0.0, %v1497
  %1499 = vdwg.mxu0
  %1500 = vmatprep.subr.mxu0 %v172
  %1501 = vmatpush1.msra.mxu0 %v171
  %1502 = vmatprep.subr.mxu0 %v176
  %1503 = vmatpush1.msra.mxu0 %v175
  %1504 = vmatprep.subr.mxu0 %v180
  %1505 = vmatpush1.msra.mxu0 %v179
  %1506 = vmatprep.subr.mxu0 %v184
  %1507 = vmatpush1.msra.mxu0 %v183
  %1508 = vmatprep.subr.mxu0 %v188
  %1509 = vmatpush1.msra.mxu0 %v187
  %1510 = vmatprep.subr.mxu0 %v192
  %1511 = vmatpush1.msra.mxu0 %v191
  %1512 = vmatprep.subr.mxu0 %v196
  %1513 = vmatpush1.msra.mxu0 %v195
  %1514 = vmatprep.subr.mxu0 %v200
  %1515 = vmatpush1.msra.mxu0 %v199
  %1516 = vmatprep.subr.mxu0 %v204
  %1517 = vmatpush1.msra.mxu0 %v203
  %1518 = vmatprep.subr.mxu0 %v208
  %1519 = vmatpush1.msra.mxu0 %v207
  %1520 = vmatprep.subr.mxu0 %v212
  %1521 = vmatpush1.msra.mxu0 %v211
  %1522 = vmatprep.subr.mxu0 %v216
  %1523 = vmatpush1.msra.mxu0 %v215
  %1524 = vmatprep.subr.mxu0 %v220
  %1525 = vmatpush1.msra.mxu0 %v219
  %1526 = vmatprep.subr.mxu0 %v224
  %1527 = vmatpush1.msra.mxu0 %v223
  %1528 = vmatprep.subr.mxu0 %v228
  %1529 = vmatpush1.msra.mxu0 %v227
  %1530 = vmatprep.subr.mxu0 %v232
  %1531 = vmatpush1.msra.mxu0 %v231
  %1532 = vmatprep.subr.mxu0 0.0
  %1533 = vmatpush1.msra.mxu0 0.0
  %1534 = vmatprep.subr.mxu0 0.0
  %1535 = vmatpush1.msra.mxu0 0.0
  %1536 = vmatprep.subr.mxu0 0.0
  %1537 = vmatpush1.msra.mxu0 0.0
  %1538 = vmatprep.subr.mxu0 0.0
  %1539 = vmatpush1.msra.mxu0 0.0
  %1540 = vmatprep.subr.mxu0 0.0
  %1541 = vmatpush1.msra.mxu0 0.0
  %1542 = vmatprep.subr.mxu0 0.0
  %1543 = vmatpush1.msra.mxu0 0.0
  %1544 = vmatprep.subr.mxu0 0.0
  %1545 = vmatpush1.msra.mxu0 0.0
  %1546 = vmatprep.subr.mxu0 0.0
  %1547 = vmatpush1.msra.mxu0 0.0
  %1548 = vmatprep.subr.mxu0 0.0
  %1549 = vmatpush1.msra.mxu0 0.0
  %1550 = vmatprep.subr.mxu0 0.0
  %1551 = vmatpush1.msra.mxu0 0.0
  %1552 = vmatprep.subr.mxu0 0.0
  %1553 = vmatpush1.msra.mxu0 0.0
  %1554 = vmatprep.subr.mxu0 0.0
  %1555 = vmatpush1.msra.mxu0 0.0
  %1556 = vmatprep.subr.mxu0 0.0
  %1557 = vmatpush1.msra.mxu0 0.0
  %1558 = vmatprep.subr.mxu0 0.0
  %1559 = vmatpush1.msra.mxu0 0.0
  %1560 = vmatprep.subr.mxu0 0.0
  %1561 = vmatpush1.msra.mxu0 0.0
  %1562 = vmatprep.subr.mxu0 0.0
  %1563 = vmatpush1.msra.mxu0 0.0
  %1564 = vmatprep.mubr.f32.mxu0 0.0
  %1565 = vmatmul.mubr.f32.gmra.mrb[0].mxu0 %v1428
  %v1566 = vpop.f32.mrb[0].mxu0
  %v1567 = vadd.f32 0.0, %v1566
  %v1568 = vpop.f32.mrb[0].mxu0
  %v1569 = vadd.f32 0.0, %v1568
  %1570 = vdwg.mxu0
  %1571 = vmatprep.subr.mxu0 %v106
  %1572 = vmatpush1.msra.mxu0 %v105
  %1573 = vmatprep.subr.mxu0 %v110
  %1574 = vmatpush1.msra.mxu0 %v109
  %1575 = vmatprep.subr.mxu0 %v114
  %1576 = vmatpush1.msra.mxu0 %v113
  %1577 = vmatprep.subr.mxu0 %v118
  %1578 = vmatpush1.msra.mxu0 %v117
  %1579 = vmatprep.subr.mxu0 %v122
  %1580 = vmatpush1.msra.mxu0 %v121
  %1581 = vmatprep.subr.mxu0 %v126
  %1582 = vmatpush1.msra.mxu0 %v125
  %1583 = vmatprep.subr.mxu0 %v130
  %1584 = vmatpush1.msra.mxu0 %v129
  %1585 = vmatprep.subr.mxu0 %v134
  %1586 = vmatpush1.msra.mxu0 %v133
  %1587 = vmatprep.subr.mxu0 %v138
  %1588 = vmatpush1.msra.mxu0 %v137
  %1589 = vmatprep.subr.mxu0 %v142
  %1590 = vmatpush1.msra.mxu0 %v141
  %1591 = vmatprep.subr.mxu0 %v146
  %1592 = vmatpush1.msra.mxu0 %v145
  %1593 = vmatprep.subr.mxu0 %v150
  %1594 = vmatpush1.msra.mxu0 %v149
  %1595 = vmatprep.subr.mxu0 %v154
  %1596 = vmatpush1.msra.mxu0 %v153
  %1597 = vmatprep.subr.mxu0 %v158
  %1598 = vmatpush1.msra.mxu0 %v157
  %1599 = vmatprep.subr.mxu0 %v162
  %1600 = vmatpush1.msra.mxu0 %v161
  %1601 = vmatprep.subr.mxu0 %v166
  %1602 = vmatpush1.msra.mxu0 %v165
  %1603 = vmatprep.subr.mxu0 0.0
  %1604 = vmatpush1.msra.mxu0 0.0
  %1605 = vmatprep.subr.mxu0 0.0
  %1606 = vmatpush1.msra.mxu0 0.0
  %1607 = vmatprep.subr.mxu0 0.0
  %1608 = vmatpush1.msra.mxu0 0.0
  %1609 = vmatprep.subr.mxu0 0.0
  %1610 = vmatpush1.msra.mxu0 0.0
  %1611 = vmatprep.subr.mxu0 0.0
  %1612 = vmatpush1.msra.mxu0 0.0
  %1613 = vmatprep.subr.mxu0 0.0
  %1614 = vmatpush1.msra.mxu0 0.0
  %1615 = vmatprep.subr.mxu0 0.0
  %1616 = vmatpush1.msra.mxu0 0.0
  %1617 = vmatprep.subr.mxu0 0.0
  %1618 = vmatpush1.msra.mxu0 0.0
  %1619 = vmatprep.subr.mxu0 0.0
  %1620 = vmatpush1.msra.mxu0 0.0
  %1621 = vmatprep.subr.mxu0 0.0
  %1622 = vmatpush1.msra.mxu0 0.0
  %1623 = vmatprep.subr.mxu0 0.0
  %1624 = vmatpush1.msra.mxu0 0.0
  %1625 = vmatprep.subr.mxu0 0.0
  %1626 = vmatpush1.msra.mxu0 0.0
  %1627 = vmatprep.subr.mxu0 0.0
  %1628 = vmatpush1.msra.mxu0 0.0
  %1629 = vmatprep.subr.mxu0 0.0
  %1630 = vmatpush1.msra.mxu0 0.0
  %1631 = vmatprep.subr.mxu0 0.0
  %1632 = vmatpush1.msra.mxu0 0.0
  %1633 = vmatprep.subr.mxu0 0.0
  %1634 = vmatpush1.msra.mxu0 0.0
  %1635 = vmatprep.mubr.f32.mxu0 0.0
  %1636 = vmatmul.mubr.f32.gmra.mrb[0].mxu0 %v1425
  %v1637 = vpop.f32.mrb[0].mxu0
  %v1638 = vadd.f32 %v1496, %v1637
  %v1639 = vpop.f32.mrb[0].mxu0
  %v1640 = vadd.f32 %v1498, %v1639
  %1641 = vdwg.mxu0
  %1642 = vmatprep.subr.mxu0 %v108
  %1643 = vmatpush1.msra.mxu0 %v107
  %1644 = vmatprep.subr.mxu0 %v112
  %1645 = vmatpush1.msra.mxu0 %v111
  %1646 = vmatprep.subr.mxu0 %v116
  %1647 = vmatpush1.msra.mxu0 %v115
  %1648 = vmatprep.subr.mxu0 %v120
  %1649 = vmatpush1.msra.mxu0 %v119
  %1650 = vmatprep.subr.mxu0 %v124
  %1651 = vmatpush1.msra.mxu0 %v123
  %1652 = vmatprep.subr.mxu0 %v128
  %1653 = vmatpush1.msra.mxu0 %v127
  %1654 = vmatprep.subr.mxu0 %v132
  %1655 = vmatpush1.msra.mxu0 %v131
  %1656 = vmatprep.subr.mxu0 %v136
  %1657 = vmatpush1.msra.mxu0 %v135
  %1658 = vmatprep.subr.mxu0 %v140
  %1659 = vmatpush1.msra.mxu0 %v139
  %1660 = vmatprep.subr.mxu0 %v144
  %1661 = vmatpush1.msra.mxu0 %v143
  %1662 = vmatprep.subr.mxu0 %v148
  %1663 = vmatpush1.msra.mxu0 %v147
  %1664 = vmatprep.subr.mxu0 %v152
  %1665 = vmatpush1.msra.mxu0 %v151
  %1666 = vmatprep.subr.mxu0 %v156
  %1667 = vmatpush1.msra.mxu0 %v155
  %1668 = vmatprep.subr.mxu0 %v160
  %1669 = vmatpush1.msra.mxu0 %v159
  %1670 = vmatprep.subr.mxu0 %v164
  %1671 = vmatpush1.msra.mxu0 %v163
  %1672 = vmatprep.subr.mxu0 %v168
  %1673 = vmatpush1.msra.mxu0 %v167
  %1674 = vmatprep.subr.mxu0 0.0
  %1675 = vmatpush1.msra.mxu0 0.0
  %1676 = vmatprep.subr.mxu0 0.0
  %1677 = vmatpush1.msra.mxu0 0.0
  %1678 = vmatprep.subr.mxu0 0.0
  %1679 = vmatpush1.msra.mxu0 0.0
  %1680 = vmatprep.subr.mxu0 0.0
  %1681 = vmatpush1.msra.mxu0 0.0
  %1682 = vmatprep.subr.mxu0 0.0
  %1683 = vmatpush1.msra.mxu0 0.0
  %1684 = vmatprep.subr.mxu0 0.0
  %1685 = vmatpush1.msra.mxu0 0.0
  %1686 = vmatprep.subr.mxu0 0.0
  %1687 = vmatpush1.msra.mxu0 0.0
  %1688 = vmatprep.subr.mxu0 0.0
  %1689 = vmatpush1.msra.mxu0 0.0
  %1690 = vmatprep.subr.mxu0 0.0
  %1691 = vmatpush1.msra.mxu0 0.0
  %1692 = vmatprep.subr.mxu0 0.0
  %1693 = vmatpush1.msra.mxu0 0.0
  %1694 = vmatprep.subr.mxu0 0.0
  %1695 = vmatpush1.msra.mxu0 0.0
  %1696 = vmatprep.subr.mxu0 0.0
  %1697 = vmatpush1.msra.mxu0 0.0
  %1698 = vmatprep.subr.mxu0 0.0
  %1699 = vmatpush1.msra.mxu0 0.0
  %1700 = vmatprep.subr.mxu0 0.0
  %1701 = vmatpush1.msra.mxu0 0.0
  %1702 = vmatprep.subr.mxu0 0.0
  %1703 = vmatpush1.msra.mxu0 0.0
  %1704 = vmatprep.subr.mxu0 0.0
  %1705 = vmatpush1.msra.mxu0 0.0
  %1706 = vmatprep.mubr.f32.mxu0 0.0
  %1707 = vmatmul.mubr.f32.gmra.mrb[0].mxu0 %v1425
  %v1708 = vpop.f32.mrb[0].mxu0
  %v1709 = vadd.f32 %v1567, %v1708
  %v1710 = vpop.f32.mrb[0].mxu0
  %v1711 = vadd.f32 %v1569, %v1710
  %1712 = vdwg.mxu0
  %v1713 = vadd.f32 %v1638, %v702
  %v1714 = vadd.f32 %v1640, %v706
  %v1715 = vadd.f32 %v1709, %v710
  %v1716 = vadd.f32 %v1711, %v714
  %v1717 = vld [vmem:[%s723] sm:$0xff]
  %v1718 = vxor.u32 %v1713, 2147483648
  %v1719 = vxor.u32 %v1714, 2147483648
  %v1720 = vxor.u32 %v1715, 2147483648
  %v1721 = vmul.f32 %v1718, 1.442695
  %v1722 = vpow.pop %v1721
  %v1723 = vmul.f32 %v1719, 1.442695
  %v1724 = vpow.pop %v1723
  %v1725 = vmul.f32 %v1720, 1.442695
  %v1726 = vpow.pop %v1725
  %v1727 = vadd.f32 %v1722, 1.0
  %v1728 = vadd.f32 %v1724, 1.0
  %v1729 = vadd.f32 %v1726, 1.0
  %v1730 = vrcp.pop %v1727
  %v1731 = vmul.f32 1.0, %v1730
  %v1732 = vrcp.pop %v1728
  %v1733 = vmul.f32 1.0, %v1732
  %v1734 = vrcp.pop %v1729
  %v1735 = vmul.f32 1.0, %v1734
  %v1736 = vtanh.pop %v1716
  %v1737 = vmul.f32 %v1733, %v1717
  %v1738 = vmul.f32 %v1731, %v1736
  %v1739 = vadd.f32 %v1737, %v1738
  %v1740 = vtanh.pop %v1739
  %v1741 = vmul.f32 %v1735, %v1740
  %1742 = vst [vmem:[%s412] sm:$0xff] %v1741
  %1743 = vst [vmem:[%s723] sm:$0xff] %v1739
  %s1744 = scalar_lea.vmem %s7, 16
  %1745 = vst [vmem:[%s1744] sm:$0xff] %v1741
  %s1746 = scalar_lea.vmem %s0, 96
  %v1747 = vld [vmem:[%s1746] sm:$0xff]
  %v1748 = vld [vmem:[%s1746 + $0x8] sm:$0xff]
  %v1749 = vld [vmem:[%s1746 + $0x10] sm:$0xff]
  %v1750 = vld [vmem:[%s1746 + $0x18] sm:$0xff]
  %v1751 = vld [vmem:[%s8] sm:$0xff]
  %1752 = vmatprep.subr.mxu0 %v42
  %1753 = vmatpush1.msra.mxu0 %v41
  %1754 = vmatprep.subr.mxu0 %v46
  %1755 = vmatpush1.msra.mxu0 %v45
  %1756 = vmatprep.subr.mxu0 %v50
  %1757 = vmatpush1.msra.mxu0 %v49
  %1758 = vmatprep.subr.mxu0 %v54
  %1759 = vmatpush1.msra.mxu0 %v53
  %1760 = vmatprep.subr.mxu0 %v58
  %1761 = vmatpush1.msra.mxu0 %v57
  %1762 = vmatprep.subr.mxu0 %v62
  %1763 = vmatpush1.msra.mxu0 %v61
  %1764 = vmatprep.subr.mxu0 %v66
  %1765 = vmatpush1.msra.mxu0 %v65
  %1766 = vmatprep.subr.mxu0 %v70
  %1767 = vmatpush1.msra.mxu0 %v69
  %1768 = vmatprep.subr.mxu0 %v74
  %1769 = vmatpush1.msra.mxu0 %v73
  %1770 = vmatprep.subr.mxu0 %v78
  %1771 = vmatpush1.msra.mxu0 %v77
  %1772 = vmatprep.subr.mxu0 %v82
  %1773 = vmatpush1.msra.mxu0 %v81
  %1774 = vmatprep.subr.mxu0 %v86
  %1775 = vmatpush1.msra.mxu0 %v85
  %1776 = vmatprep.subr.mxu0 %v90
  %1777 = vmatpush1.msra.mxu0 %v89
  %1778 = vmatprep.subr.mxu0 %v94
  %1779 = vmatpush1.msra.mxu0 %v93
  %1780 = vmatprep.subr.mxu0 %v98
  %1781 = vmatpush1.msra.mxu0 %v97
  %1782 = vmatprep.subr.mxu0 %v102
  %1783 = vmatpush1.msra.mxu0 %v101
  %1784 = vmatprep.subr.mxu0 0.0
  %1785 = vmatpush1.msra.mxu0 0.0
  %1786 = vmatprep.subr.mxu0 0.0
  %1787 = vmatpush1.msra.mxu0 0.0
  %1788 = vmatprep.subr.mxu0 0.0
  %1789 = vmatpush1.msra.mxu0 0.0
  %1790 = vmatprep.subr.mxu0 0.0
  %1791 = vmatpush1.msra.mxu0 0.0
  %1792 = vmatprep.subr.mxu0 0.0
  %1793 = vmatpush1.msra.mxu0 0.0
  %1794 = vmatprep.subr.mxu0 0.0
  %1795 = vmatpush1.msra.mxu0 0.0
  %1796 = vmatprep.subr.mxu0 0.0
  %1797 = vmatpush1.msra.mxu0 0.0
  %1798 = vmatprep.subr.mxu0 0.0
  %1799 = vmatpush1.msra.mxu0 0.0
  %1800 = vmatprep.subr.mxu0 0.0
  %1801 = vmatpush1.msra.mxu0 0.0
  %1802 = vmatprep.subr.mxu0 0.0
  %1803 = vmatpush1.msra.mxu0 0.0
  %1804 = vmatprep.subr.mxu0 0.0
  %1805 = vmatpush1.msra.mxu0 0.0
  %1806 = vmatprep.subr.mxu0 0.0
  %1807 = vmatpush1.msra.mxu0 0.0
  %1808 = vmatprep.subr.mxu0 0.0
  %1809 = vmatpush1.msra.mxu0 0.0
  %1810 = vmatprep.subr.mxu0 0.0
  %1811 = vmatpush1.msra.mxu0 0.0
  %1812 = vmatprep.subr.mxu0 0.0
  %1813 = vmatpush1.msra.mxu0 0.0
  %1814 = vmatprep.subr.mxu0 0.0
  %1815 = vmatpush1.msra.mxu0 0.0
  %1816 = vmatprep.mubr.f32.mxu0 0.0
  %1817 = vmatmul.mubr.f32.gmra.mrb[0].mxu0 %v1751
  %v1818 = vpop.f32.mrb[0].mxu0
  %v1819 = vadd.f32 0.0, %v1818
  %v1820 = vpop.f32.mrb[0].mxu0
  %v1821 = vadd.f32 0.0, %v1820
  %1822 = vdwg.mxu0
  %1823 = vmatprep.subr.mxu0 %v44
  %1824 = vmatpush1.msra.mxu0 %v43
  %1825 = vmatprep.subr.mxu0 %v48
  %1826 = vmatpush1.msra.mxu0 %v47
  %1827 = vmatprep.subr.mxu0 %v52
  %1828 = vmatpush1.msra.mxu0 %v51
  %1829 = vmatprep.subr.mxu0 %v56
  %1830 = vmatpush1.msra.mxu0 %v55
  %1831 = vmatprep.subr.mxu0 %v60
  %1832 = vmatpush1.msra.mxu0 %v59
  %1833 = vmatprep.subr.mxu0 %v64
  %1834 = vmatpush1.msra.mxu0 %v63
  %1835 = vmatprep.subr.mxu0 %v68
  %1836 = vmatpush1.msra.mxu0 %v67
  %1837 = vmatprep.subr.mxu0 %v72
  %1838 = vmatpush1.msra.mxu0 %v71
  %1839 = vmatprep.subr.mxu0 %v76
  %1840 = vmatpush1.msra.mxu0 %v75
  %1841 = vmatprep.subr.mxu0 %v80
  %1842 = vmatpush1.msra.mxu0 %v79
  %1843 = vmatprep.subr.mxu0 %v84
  %1844 = vmatpush1.msra.mxu0 %v83
  %1845 = vmatprep.subr.mxu0 %v88
  %1846 = vmatpush1.msra.mxu0 %v87
  %1847 = vmatprep.subr.mxu0 %v92
  %1848 = vmatpush1.msra.mxu0 %v91
  %1849 = vmatprep.subr.mxu0 %v96
  %1850 = vmatpush1.msra.mxu0 %v95
  %1851 = vmatprep.subr.mxu0 %v100
  %1852 = vmatpush1.msra.mxu0 %v99
  %1853 = vmatprep.subr.mxu0 %v104
  %1854 = vmatpush1.msra.mxu0 %v103
  %1855 = vmatprep.subr.mxu0 0.0
  %1856 = vmatpush1.msra.mxu0 0.0
  %1857 = vmatprep.subr.mxu0 0.0
  %1858 = vmatpush1.msra.mxu0 0.0
  %1859 = vmatprep.subr.mxu0 0.0
  %1860 = vmatpush1.msra.mxu0 0.0
  %1861 = vmatprep.subr.mxu0 0.0
  %1862 = vmatpush1.msra.mxu0 0.0
  %1863 = vmatprep.subr.mxu0 0.0
  %1864 = vmatpush1.msra.mxu0 0.0
  %1865 = vmatprep.subr.mxu0 0.0
  %1866 = vmatpush1.msra.mxu0 0.0
  %1867 = vmatprep.subr.mxu0 0.0
  %1868 = vmatpush1.msra.mxu0 0.0
  %1869 = vmatprep.subr.mxu0 0.0
  %1870 = vmatpush1.msra.mxu0 0.0
  %1871 = vmatprep.subr.mxu0 0.0
  %1872 = vmatpush1.msra.mxu0 0.0
  %1873 = vmatprep.subr.mxu0 0.0
  %1874 = vmatpush1.msra.mxu0 0.0
  %1875 = vmatprep.subr.mxu0 0.0
  %1876 = vmatpush1.msra.mxu0 0.0
  %1877 = vmatprep.subr.mxu0 0.0
  %1878 = vmatpush1.msra.mxu0 0.0
  %1879 = vmatprep.subr.mxu0 0.0
  %1880 = vmatpush1.msra.mxu0 0.0
  %1881 = vmatprep.subr.mxu0 0.0
  %1882 = vmatpush1.msra.mxu0 0.0
  %1883 = vmatprep.subr.mxu0 0.0
  %1884 = vmatpush1.msra.mxu0 0.0
  %1885 = vmatprep.subr.mxu0 0.0
  %1886 = vmatpush1.msra.mxu0 0.0
  %1887 = vmatprep.mubr.f32.mxu0 0.0
  %1888 = vmatmul.mubr.f32.gmra.mrb[0].mxu0 %v1751
  %v1889 = vpop.f32.mrb[0].mxu0
  %v1890 = vadd.f32 0.0, %v1889
  %v1891 = vpop.f32.mrb[0].mxu0
  %v1892 = vadd.f32 0.0, %v1891
  %1893 = vdwg.mxu0
  %v1894 = vadd.f32 %v1747, %v1819
  %v1895 = vadd.f32 %v1748, %v1821
  %v1896 = vadd.f32 %v1749, %v1890
  %v1897 = vadd.f32 %v1750, %v1892
  %v1898 = vld [vmem:[%s9] sm:$0xff]
  %v1899 = vxor.u32 %v1894, 2147483648
  %v1900 = vxor.u32 %v1895, 2147483648
  %v1901 = vxor.u32 %v1896, 2147483648
  %v1902 = vmul.f32 %v1899, 1.442695
  %v1903 = vpow.pop %v1902
  %v1904 = vmul.f32 %v1900, 1.442695
  %v1905 = vpow.pop %v1904
  %v1906 = vmul.f32 %v1901, 1.442695
  %v1907 = vpow.pop %v1906
  %v1908 = vadd.f32 %v1903, 1.0
  %v1909 = vadd.f32 %v1905, 1.0
  %v1910 = vadd.f32 %v1907, 1.0
  %v1911 = vrcp.pop %v1908
  %v1912 = vmul.f32 1.0, %v1911
  %v1913 = vrcp.pop %v1909
  %v1914 = vmul.f32 1.0, %v1913
  %v1915 = vrcp.pop %v1910
  %v1916 = vmul.f32 1.0, %v1915
  %v1917 = vtanh.pop %v1897
  %v1918 = vmul.f32 %v1914, %v1898
  %v1919 = vmul.f32 %v1912, %v1917
  %v1920 = vadd.f32 %v1918, %v1919
  %v1921 = vtanh.pop %v1920
  %v1922 = vmul.f32 %v1916, %v1921
  %1923 = vst [vmem:[%s8] sm:$0xff] %v1922
  %1924 = vst [vmem:[%s9] sm:$0xff] %v1920
  %v1925 = vld [vmem:[%s412] sm:$0xff]
  %1926 = vmatprep.subr.mxu0 %v170
  %1927 = vmatpush1.msra.mxu0 %v169
  %1928 = vmatprep.subr.mxu0 %v174
  %1929 = vmatpush1.msra.mxu0 %v173
  %1930 = vmatprep.subr.mxu0 %v178
  %1931 = vmatpush1.msra.mxu0 %v177
  %1932 = vmatprep.subr.mxu0 %v182
  %1933 = vmatpush1.msra.mxu0 %v181
  %1934 = vmatprep.subr.mxu0 %v186
  %1935 = vmatpush1.msra.mxu0 %v185
  %1936 = vmatprep.subr.mxu0 %v190
  %1937 = vmatpush1.msra.mxu0 %v189
  %1938 = vmatprep.subr.mxu0 %v194
  %1939 = vmatpush1.msra.mxu0 %v193
  %1940 = vmatprep.subr.mxu0 %v198
  %1941 = vmatpush1.msra.mxu0 %v197
  %1942 = vmatprep.subr.mxu0 %v202
  %1943 = vmatpush1.msra.mxu0 %v201
  %1944 = vmatprep.subr.mxu0 %v206
  %1945 = vmatpush1.msra.mxu0 %v205
  %1946 = vmatprep.subr.mxu0 %v210
  %1947 = vmatpush1.msra.mxu0 %v209
  %1948 = vmatprep.subr.mxu0 %v214
  %1949 = vmatpush1.msra.mxu0 %v213
  %1950 = vmatprep.subr.mxu0 %v218
  %1951 = vmatpush1.msra.mxu0 %v217
  %1952 = vmatprep.subr.mxu0 %v222
  %1953 = vmatpush1.msra.mxu0 %v221
  %1954 = vmatprep.subr.mxu0 %v226
  %1955 = vmatpush1.msra.mxu0 %v225
  %1956 = vmatprep.subr.mxu0 %v230
  %1957 = vmatpush1.msra.mxu0 %v229
  %1958 = vmatprep.subr.mxu0 0.0
  %1959 = vmatpush1.msra.mxu0 0.0
  %1960 = vmatprep.subr.mxu0 0.0
  %1961 = vmatpush1.msra.mxu0 0.0
  %1962 = vmatprep.subr.mxu0 0.0
  %1963 = vmatpush1.msra.mxu0 0.0
  %1964 = vmatprep.subr.mxu0 0.0
  %1965 = vmatpush1.msra.mxu0 0.0
  %1966 = vmatprep.subr.mxu0 0.0
  %1967 = vmatpush1.msra.mxu0 0.0
  %1968 = vmatprep.subr.mxu0 0.0
  %1969 = vmatpush1.msra.mxu0 0.0
  %1970 = vmatprep.subr.mxu0 0.0
  %1971 = vmatpush1.msra.mxu0 0.0
  %1972 = vmatprep.subr.mxu0 0.0
  %1973 = vmatpush1.msra.mxu0 0.0
  %1974 = vmatprep.subr.mxu0 0.0
  %1975 = vmatpush1.msra.mxu0 0.0
  %1976 = vmatprep.subr.mxu0 0.0
  %1977 = vmatpush1.msra.mxu0 0.0
  %1978 = vmatprep.subr.mxu0 0.0
  %1979 = vmatpush1.msra.mxu0 0.0
  %1980 = vmatprep.subr.mxu0 0.0
  %1981 = vmatpush1.msra.mxu0 0.0
  %1982 = vmatprep.subr.mxu0 0.0
  %1983 = vmatpush1.msra.mxu0 0.0
  %1984 = vmatprep.subr.mxu0 0.0
  %1985 = vmatpush1.msra.mxu0 0.0
  %1986 = vmatprep.subr.mxu0 0.0
  %1987 = vmatpush1.msra.mxu0 0.0
  %1988 = vmatprep.subr.mxu0 0.0
  %1989 = vmatpush1.msra.mxu0 0.0
  %1990 = vmatprep.mubr.f32.mxu0 0.0
  %1991 = vmatmul.mubr.f32.gmra.mrb[0].mxu0 %v1925
  %v1992 = vpop.f32.mrb[0].mxu0
  %v1993 = vadd.f32 0.0, %v1992
  %v1994 = vpop.f32.mrb[0].mxu0
  %v1995 = vadd.f32 0.0, %v1994
  %1996 = vdwg.mxu0
  %1997 = vmatprep.subr.mxu0 %v172
  %1998 = vmatpush1.msra.mxu0 %v171
  %1999 = vmatprep.subr.mxu0 %v176
  %2000 = vmatpush1.msra.mxu0 %v175
  %2001 = vmatprep.subr.mxu0 %v180
  %2002 = vmatpush1.msra.mxu0 %v179
  %2003 = vmatprep.subr.mxu0 %v184
  %2004 = vmatpush1.msra.mxu0 %v183
  %2005 = vmatprep.subr.mxu0 %v188
  %2006 = vmatpush1.msra.mxu0 %v187
  %2007 = vmatprep.subr.mxu0 %v192
  %2008 = vmatpush1.msra.mxu0 %v191
  %2009 = vmatprep.subr.mxu0 %v196
  %2010 = vmatpush1.msra.mxu0 %v195
  %2011 = vmatprep.subr.mxu0 %v200
  %2012 = vmatpush1.msra.mxu0 %v199
  %2013 = vmatprep.subr.mxu0 %v204
  %2014 = vmatpush1.msra.mxu0 %v203
  %2015 = vmatprep.subr.mxu0 %v208
  %2016 = vmatpush1.msra.mxu0 %v207
  %2017 = vmatprep.subr.mxu0 %v212
  %2018 = vmatpush1.msra.mxu0 %v211
  %2019 = vmatprep.subr.mxu0 %v216
  %2020 = vmatpush1.msra.mxu0 %v215
  %2021 = vmatprep.subr.mxu0 %v220
  %2022 = vmatpush1.msra.mxu0 %v219
  %2023 = vmatprep.subr.mxu0 %v224
  %2024 = vmatpush1.msra.mxu0 %v223
  %2025 = vmatprep.subr.mxu0 %v228
  %2026 = vmatpush1.msra.mxu0 %v227
  %2027 = vmatprep.subr.mxu0 %v232
  %2028 = vmatpush1.msra.mxu0 %v231
  %2029 = vmatprep.subr.mxu0 0.0
  %2030 = vmatpush1.msra.mxu0 0.0
  %2031 = vmatprep.subr.mxu0 0.0
  %2032 = vmatpush1.msra.mxu0 0.0
  %2033 = vmatprep.subr.mxu0 0.0
  %2034 = vmatpush1.msra.mxu0 0.0
  %2035 = vmatprep.subr.mxu0 0.0
  %2036 = vmatpush1.msra.mxu0 0.0
  %2037 = vmatprep.subr.mxu0 0.0
  %2038 = vmatpush1.msra.mxu0 0.0
  %2039 = vmatprep.subr.mxu0 0.0
  %2040 = vmatpush1.msra.mxu0 0.0
  %2041 = vmatprep.subr.mxu0 0.0
  %2042 = vmatpush1.msra.mxu0 0.0
  %2043 = vmatprep.subr.mxu0 0.0
  %2044 = vmatpush1.msra.mxu0 0.0
  %2045 = vmatprep.subr.mxu0 0.0
  %2046 = vmatpush1.msra.mxu0 0.0
  %2047 = vmatprep.subr.mxu0 0.0
  %2048 = vmatpush1.msra.mxu0 0.0
  %2049 = vmatprep.subr.mxu0 0.0
  %2050 = vmatpush1.msra.mxu0 0.0
  %2051 = vmatprep.subr.mxu0 0.0
  %2052 = vmatpush1.msra.mxu0 0.0
  %2053 = vmatprep.subr.mxu0 0.0
  %2054 = vmatpush1.msra.mxu0 0.0
  %2055 = vmatprep.subr.mxu0 0.0
  %2056 = vmatpush1.msra.mxu0 0.0
  %2057 = vmatprep.subr.mxu0 0.0
  %2058 = vmatpush1.msra.mxu0 0.0
  %2059 = vmatprep.subr.mxu0 0.0
  %2060 = vmatpush1.msra.mxu0 0.0
  %2061 = vmatprep.mubr.f32.mxu0 0.0
  %2062 = vmatmul.mubr.f32.gmra.mrb[0].mxu0 %v1925
  %v2063 = vpop.f32.mrb[0].mxu0
  %v2064 = vadd.f32 0.0, %v2063
  %v2065 = vpop.f32.mrb[0].mxu0
  %v2066 = vadd.f32 0.0, %v2065
  %2067 = vdwg.mxu0
  %2068 = vmatprep.subr.mxu0 %v106
  %2069 = vmatpush1.msra.mxu0 %v105
  %2070 = vmatprep.subr.mxu0 %v110
  %2071 = vmatpush1.msra.mxu0 %v109
  %2072 = vmatprep.subr.mxu0 %v114
  %2073 = vmatpush1.msra.mxu0 %v113
  %2074 = vmatprep.subr.mxu0 %v118
  %2075 = vmatpush1.msra.mxu0 %v117
  %2076 = vmatprep.subr.mxu0 %v122
  %2077 = vmatpush1.msra.mxu0 %v121
  %2078 = vmatprep.subr.mxu0 %v126
  %2079 = vmatpush1.msra.mxu0 %v125
  %2080 = vmatprep.subr.mxu0 %v130
  %2081 = vmatpush1.msra.mxu0 %v129
  %2082 = vmatprep.subr.mxu0 %v134
  %2083 = vmatpush1.msra.mxu0 %v133
  %2084 = vmatprep.subr.mxu0 %v138
  %2085 = vmatpush1.msra.mxu0 %v137
  %2086 = vmatprep.subr.mxu0 %v142
  %2087 = vmatpush1.msra.mxu0 %v141
  %2088 = vmatprep.subr.mxu0 %v146
  %2089 = vmatpush1.msra.mxu0 %v145
  %2090 = vmatprep.subr.mxu0 %v150
  %2091 = vmatpush1.msra.mxu0 %v149
  %2092 = vmatprep.subr.mxu0 %v154
  %2093 = vmatpush1.msra.mxu0 %v153
  %2094 = vmatprep.subr.mxu0 %v158
  %2095 = vmatpush1.msra.mxu0 %v157
  %2096 = vmatprep.subr.mxu0 %v162
  %2097 = vmatpush1.msra.mxu0 %v161
  %2098 = vmatprep.subr.mxu0 %v166
  %2099 = vmatpush1.msra.mxu0 %v165
  %2100 = vmatprep.subr.mxu0 0.0
  %2101 = vmatpush1.msra.mxu0 0.0
  %2102 = vmatprep.subr.mxu0 0.0
  %2103 = vmatpush1.msra.mxu0 0.0
  %2104 = vmatprep.subr.mxu0 0.0
  %2105 = vmatpush1.msra.mxu0 0.0
  %2106 = vmatprep.subr.mxu0 0.0
  %2107 = vmatpush1.msra.mxu0 0.0
  %2108 = vmatprep.subr.mxu0 0.0
  %2109 = vmatpush1.msra.mxu0 0.0
  %2110 = vmatprep.subr.mxu0 0.0
  %2111 = vmatpush1.msra.mxu0 0.0
  %2112 = vmatprep.subr.mxu0 0.0
  %2113 = vmatpush1.msra.mxu0 0.0
  %2114 = vmatprep.subr.mxu0 0.0
  %2115 = vmatpush1.msra.mxu0 0.0
  %2116 = vmatprep.subr.mxu0 0.0
  %2117 = vmatpush1.msra.mxu0 0.0
  %2118 = vmatprep.subr.mxu0 0.0
  %2119 = vmatpush1.msra.mxu0 0.0
  %2120 = vmatprep.subr.mxu0 0.0
  %2121 = vmatpush1.msra.mxu0 0.0
  %2122 = vmatprep.subr.mxu0 0.0
  %2123 = vmatpush1.msra.mxu0 0.0
  %2124 = vmatprep.subr.mxu0 0.0
  %2125 = vmatpush1.msra.mxu0 0.0
  %2126 = vmatprep.subr.mxu0 0.0
  %2127 = vmatpush1.msra.mxu0 0.0
  %2128 = vmatprep.subr.mxu0 0.0
  %2129 = vmatpush1.msra.mxu0 0.0
  %2130 = vmatprep.subr.mxu0 0.0
  %2131 = vmatpush1.msra.mxu0 0.0
  %2132 = vmatprep.mubr.f32.mxu0 0.0
  %2133 = vmatmul.mubr.f32.gmra.mrb[0].mxu0 %v1922
  %v2134 = vpop.f32.mrb[0].mxu0
  %v2135 = vadd.f32 %v1993, %v2134
  %v2136 = vpop.f32.mrb[0].mxu0
  %v2137 = vadd.f32 %v1995, %v2136
  %2138 = vdwg.mxu0
  %2139 = vmatprep.subr.mxu0 %v108
  %2140 = vmatpush1.msra.mxu0 %v107
  %2141 = vmatprep.subr.mxu0 %v112
  %2142 = vmatpush1.msra.mxu0 %v111
  %2143 = vmatprep.subr.mxu0 %v116
  %2144 = vmatpush1.msra.mxu0 %v115
  %2145 = vmatprep.subr.mxu0 %v120
  %2146 = vmatpush1.msra.mxu0 %v119
  %2147 = vmatprep.subr.mxu0 %v124
  %2148 = vmatpush1.msra.mxu0 %v123
  %2149 = vmatprep.subr.mxu0 %v128
  %2150 = vmatpush1.msra.mxu0 %v127
  %2151 = vmatprep.subr.mxu0 %v132
  %2152 = vmatpush1.msra.mxu0 %v131
  %2153 = vmatprep.subr.mxu0 %v136
  %2154 = vmatpush1.msra.mxu0 %v135
  %2155 = vmatprep.subr.mxu0 %v140
  %2156 = vmatpush1.msra.mxu0 %v139
  %2157 = vmatprep.subr.mxu0 %v144
  %2158 = vmatpush1.msra.mxu0 %v143
  %2159 = vmatprep.subr.mxu0 %v148
  %2160 = vmatpush1.msra.mxu0 %v147
  %2161 = vmatprep.subr.mxu0 %v152
  %2162 = vmatpush1.msra.mxu0 %v151
  %2163 = vmatprep.subr.mxu0 %v156
  %2164 = vmatpush1.msra.mxu0 %v155
  %2165 = vmatprep.subr.mxu0 %v160
  %2166 = vmatpush1.msra.mxu0 %v159
  %2167 = vmatprep.subr.mxu0 %v164
  %2168 = vmatpush1.msra.mxu0 %v163
  %2169 = vmatprep.subr.mxu0 %v168
  %2170 = vmatpush1.msra.mxu0 %v167
  %2171 = vmatprep.subr.mxu0 0.0
  %2172 = vmatpush1.msra.mxu0 0.0
  %2173 = vmatprep.subr.mxu0 0.0
  %2174 = vmatpush1.msra.mxu0 0.0
  %2175 = vmatprep.subr.mxu0 0.0
  %2176 = vmatpush1.msra.mxu0 0.0
  %2177 = vmatprep.subr.mxu0 0.0
  %2178 = vmatpush1.msra.mxu0 0.0
  %2179 = vmatprep.subr.mxu0 0.0
  %2180 = vmatpush1.msra.mxu0 0.0
  %2181 = vmatprep.subr.mxu0 0.0
  %2182 = vmatpush1.msra.mxu0 0.0
  %2183 = vmatprep.subr.mxu0 0.0
  %2184 = vmatpush1.msra.mxu0 0.0
  %2185 = vmatprep.subr.mxu0 0.0
  %2186 = vmatpush1.msra.mxu0 0.0
  %2187 = vmatprep.subr.mxu0 0.0
  %2188 = vmatpush1.msra.mxu0 0.0
  %2189 = vmatprep.subr.mxu0 0.0
  %2190 = vmatpush1.msra.mxu0 0.0
  %2191 = vmatprep.subr.mxu0 0.0
  %2192 = vmatpush1.msra.mxu0 0.0
  %2193 = vmatprep.subr.mxu0 0.0
  %2194 = vmatpush1.msra.mxu0 0.0
  %2195 = vmatprep.subr.mxu0 0.0
  %2196 = vmatpush1.msra.mxu0 0.0
  %2197 = vmatprep.subr.mxu0 0.0
  %2198 = vmatpush1.msra.mxu0 0.0
  %2199 = vmatprep.subr.mxu0 0.0
  %2200 = vmatpush1.msra.mxu0 0.0
  %2201 = vmatprep.subr.mxu0 0.0
  %2202 = vmatpush1.msra.mxu0 0.0
  %2203 = vmatprep.mubr.f32.mxu0 0.0
  %2204 = vmatmul.mubr.f32.gmra.mrb[0].mxu0 %v1922
  %v2205 = vpop.f32.mrb[0].mxu0
  %v2206 = vadd.f32 %v2064, %v2205
  %v2207 = vpop.f32.mrb[0].mxu0
  %v2208 = vadd.f32 %v2066, %v2207
  %2209 = vdwg.mxu0
  %v2210 = vadd.f32 %v2135, %v702
  %v2211 = vadd.f32 %v2137, %v706
  %v2212 = vadd.f32 %v2206, %v710
  %v2213 = vadd.f32 %v2208, %v714
  %v2214 = vld [vmem:[%s723] sm:$0xff]
  %v2215 = vxor.u32 %v2210, 2147483648
  %v2216 = vxor.u32 %v2211, 2147483648
  %v2217 = vxor.u32 %v2212, 2147483648
  %v2218 = vmul.f32 %v2215, 1.442695
  %v2219 = vpow.pop %v2218
  %v2220 = vmul.f32 %v2216, 1.442695
  %v2221 = vpow.pop %v2220
  %v2222 = vmul.f32 %v2217, 1.442695
  %v2223 = vpow.pop %v2222
  %v2224 = vadd.f32 %v2219, 1.0
  %v2225 = vadd.f32 %v2221, 1.0
  %v2226 = vadd.f32 %v2223, 1.0
  %v2227 = vrcp.pop %v2224
  %v2228 = vmul.f32 1.0, %v2227
  %v2229 = vrcp.pop %v2225
  %v2230 = vmul.f32 1.0, %v2229
  %v2231 = vrcp.pop %v2226
  %v2232 = vmul.f32 1.0, %v2231
  %v2233 = vtanh.pop %v2213
  %v2234 = vmul.f32 %v2230, %v2214
  %v2235 = vmul.f32 %v2228, %v2233
  %v2236 = vadd.f32 %v2234, %v2235
  %v2237 = vtanh.pop %v2236
  %v2238 = vmul.f32 %v2232, %v2237
  %2239 = vst [vmem:[%s412] sm:$0xff] %v2238
  %2240 = vst [vmem:[%s723] sm:$0xff] %v2236
  %s2241 = scalar_lea.vmem %s7, 24
  %2242 = vst [vmem:[%s2241] sm:$0xff] %v2238
  %s2243 = scalar_lea.vmem %s0, 128
  %v2244 = vld [vmem:[%s2243] sm:$0xff]
  %v2245 = vld [vmem:[%s2243 + $0x8] sm:$0xff]
  %v2246 = vld [vmem:[%s2243 + $0x10] sm:$0xff]
  %v2247 = vld [vmem:[%s2243 + $0x18] sm:$0xff]
  %v2248 = vld [vmem:[%s8] sm:$0xff]
  %2249 = vmatprep.subr.mxu0 %v42
  %2250 = vmatpush1.msra.mxu0 %v41
  %2251 = vmatprep.subr.mxu0 %v46
  %2252 = vmatpush1.msra.mxu0 %v45
  %2253 = vmatprep.subr.mxu0 %v50
  %2254 = vmatpush1.msra.mxu0 %v49
  %2255 = vmatprep.subr.mxu0 %v54
  %2256 = vmatpush1.msra.mxu0 %v53
  %2257 = vmatprep.subr.mxu0 %v58
  %2258 = vmatpush1.msra.mxu0 %v57
  %2259 = vmatprep.subr.mxu0 %v62
  %2260 = vmatpush1.msra.mxu0 %v61
  %2261 = vmatprep.subr.mxu0 %v66
  %2262 = vmatpush1.msra.mxu0 %v65
  %2263 = vmatprep.subr.mxu0 %v70
  %2264 = vmatpush1.msra.mxu0 %v69
  %2265 = vmatprep.subr.mxu0 %v74
  %2266 = vmatpush1.msra.mxu0 %v73
  %2267 = vmatprep.subr.mxu0 %v78
  %2268 = vmatpush1.msra.mxu0 %v77
  %2269 = vmatprep.subr.mxu0 %v82
  %2270 = vmatpush1.msra.mxu0 %v81
  %2271 = vmatprep.subr.mxu0 %v86
  %2272 = vmatpush1.msra.mxu0 %v85
  %2273 = vmatprep.subr.mxu0 %v90
  %2274 = vmatpush1.msra.mxu0 %v89
  %2275 = vmatprep.subr.mxu0 %v94
  %2276 = vmatpush1.msra.mxu0 %v93
  %2277 = vmatprep.subr.mxu0 %v98
  %2278 = vmatpush1.msra.mxu0 %v97
  %2279 = vmatprep.subr.mxu0 %v102
  %2280 = vmatpush1.msra.mxu0 %v101
  %2281 = vmatprep.subr.mxu0 0.0
  %2282 = vmatpush1.msra.mxu0 0.0
  %2283 = vmatprep.subr.mxu0 0.0
  %2284 = vmatpush1.msra.mxu0 0.0
  %2285 = vmatprep.subr.mxu0 0.0
  %2286 = vmatpush1.msra.mxu0 0.0
  %2287 = vmatprep.subr.mxu0 0.0
  %2288 = vmatpush1.msra.mxu0 0.0
  %2289 = vmatprep.subr.mxu0 0.0
  %2290 = vmatpush1.msra.mxu0 0.0
  %2291 = vmatprep.subr.mxu0 0.0
  %2292 = vmatpush1.msra.mxu0 0.0
  %2293 = vmatprep.subr.mxu0 0.0
  %2294 = vmatpush1.msra.mxu0 0.0
  %2295 = vmatprep.subr.mxu0 0.0
  %2296 = vmatpush1.msra.mxu0 0.0
  %2297 = vmatprep.subr.mxu0 0.0
  %2298 = vmatpush1.msra.mxu0 0.0
  %2299 = vmatprep.subr.mxu0 0.0
  %2300 = vmatpush1.msra.mxu0 0.0
  %2301 = vmatprep.subr.mxu0 0.0
  %2302 = vmatpush1.msra.mxu0 0.0
  %2303 = vmatprep.subr.mxu0 0.0
  %2304 = vmatpush1.msra.mxu0 0.0
  %2305 = vmatprep.subr.mxu0 0.0
  %2306 = vmatpush1.msra.mxu0 0.0
  %2307 = vmatprep.subr.mxu0 0.0
  %2308 = vmatpush1.msra.mxu0 0.0
  %2309 = vmatprep.subr.mxu0 0.0
  %2310 = vmatpush1.msra.mxu0 0.0
  %2311 = vmatprep.subr.mxu0 0.0
  %2312 = vmatpush1.msra.mxu0 0.0
  %2313 = vmatprep.mubr.f32.mxu0 0.0
  %2314 = vmatmul.mubr.f32.gmra.mrb[0].mxu0 %v2248
  %v2315 = vpop.f32.mrb[0].mxu0
  %v2316 = vadd.f32 0.0, %v2315
  %v2317 = vpop.f32.mrb[0].mxu0
  %v2318 = vadd.f32 0.0, %v2317
  %2319 = vdwg.mxu0
  %2320 = vmatprep.subr.mxu0 %v44
  %2321 = vmatpush1.msra.mxu0 %v43
  %2322 = vmatprep.subr.mxu0 %v48
  %2323 = vmatpush1.msra.mxu0 %v47
  %2324 = vmatprep.subr.mxu0 %v52
  %2325 = vmatpush1.msra.mxu0 %v51
  %2326 = vmatprep.subr.mxu0 %v56
  %2327 = vmatpush1.msra.mxu0 %v55
  %2328 = vmatprep.subr.mxu0 %v60
  %2329 = vmatpush1.msra.mxu0 %v59
  %2330 = vmatprep.subr.mxu0 %v64
  %2331 = vmatpush1.msra.mxu0 %v63
  %2332 = vmatprep.subr.mxu0 %v68
  %2333 = vmatpush1.msra.mxu0 %v67
  %2334 = vmatprep.subr.mxu0 %v72
  %2335 = vmatpush1.msra.mxu0 %v71
  %2336 = vmatprep.subr.mxu0 %v76
  %2337 = vmatpush1.msra.mxu0 %v75
  %2338 = vmatprep.subr.mxu0 %v80
  %2339 = vmatpush1.msra.mxu0 %v79
  %2340 = vmatprep.subr.mxu0 %v84
  %2341 = vmatpush1.msra.mxu0 %v83
  %2342 = vmatprep.subr.mxu0 %v88
  %2343 = vmatpush1.msra.mxu0 %v87
  %2344 = vmatprep.subr.mxu0 %v92
  %2345 = vmatpush1.msra.mxu0 %v91
  %2346 = vmatprep.subr.mxu0 %v96
  %2347 = vmatpush1.msra.mxu0 %v95
  %2348 = vmatprep.subr.mxu0 %v100
  %2349 = vmatpush1.msra.mxu0 %v99
  %2350 = vmatprep.subr.mxu0 %v104
  %2351 = vmatpush1.msra.mxu0 %v103
  %2352 = vmatprep.subr.mxu0 0.0
  %2353 = vmatpush1.msra.mxu0 0.0
  %2354 = vmatprep.subr.mxu0 0.0
  %2355 = vmatpush1.msra.mxu0 0.0
  %2356 = vmatprep.subr.mxu0 0.0
  %2357 = vmatpush1.msra.mxu0 0.0
  %2358 = vmatprep.subr.mxu0 0.0
  %2359 = vmatpush1.msra.mxu0 0.0
  %2360 = vmatprep.subr.mxu0 0.0
  %2361 = vmatpush1.msra.mxu0 0.0
  %2362 = vmatprep.subr.mxu0 0.0
  %2363 = vmatpush1.msra.mxu0 0.0
  %2364 = vmatprep.subr.mxu0 0.0
  %2365 = vmatpush1.msra.mxu0 0.0
  %2366 = vmatprep.subr.mxu0 0.0
  %2367 = vmatpush1.msra.mxu0 0.0
  %2368 = vmatprep.subr.mxu0 0.0
  %2369 = vmatpush1.msra.mxu0 0.0
  %2370 = vmatprep.subr.mxu0 0.0
  %2371 = vmatpush1.msra.mxu0 0.0
  %2372 = vmatprep.subr.mxu0 0.0
  %2373 = vmatpush1.msra.mxu0 0.0
  %2374 = vmatprep.subr.mxu0 0.0
  %2375 = vmatpush1.msra.mxu0 0.0
  %2376 = vmatprep.subr.mxu0 0.0
  %2377 = vmatpush1.msra.mxu0 0.0
  %2378 = vmatprep.subr.mxu0 0.0
  %2379 = vmatpush1.msra.mxu0 0.0
  %2380 = vmatprep.subr.mxu0 0.0
  %2381 = vmatpush1.msra.mxu0 0.0
  %2382 = vmatprep.subr.mxu0 0.0
  %2383 = vmatpush1.msra.mxu0 0.0
  %2384 = vmatprep.mubr.f32.mxu0 0.0
  %2385 = vmatmul.mubr.f32.gmra.mrb[0].mxu0 %v2248
  %v2386 = vpop.f32.mrb[0].mxu0
  %v2387 = vadd.f32 0.0, %v2386
  %v2388 = vpop.f32.mrb[0].mxu0
  %v2389 = vadd.f32 0.0, %v2388
  %2390 = vdwg.mxu0
  %v2391 = vadd.f32 %v2244, %v2316
  %v2392 = vadd.f32 %v2245, %v2318
  %v2393 = vadd.f32 %v2246, %v2387
  %v2394 = vadd.f32 %v2247, %v2389
  %v2395 = vld [vmem:[%s9] sm:$0xff]
  %v2396 = vxor.u32 %v2391, 2147483648
  %v2397 = vxor.u32 %v2392, 2147483648
  %v2398 = vxor.u32 %v2393, 2147483648
  %v2399 = vmul.f32 %v2396, 1.442695
  %v2400 = vpow.pop %v2399
  %v2401 = vmul.f32 %v2397, 1.442695
  %v2402 = vpow.pop %v2401
  %v2403 = vmul.f32 %v2398, 1.442695
  %v2404 = vpow.pop %v2403
  %v2405 = vadd.f32 %v2400, 1.0
  %v2406 = vadd.f32 %v2402, 1.0
  %v2407 = vadd.f32 %v2404, 1.0
  %v2408 = vrcp.pop %v2405
  %v2409 = vmul.f32 1.0, %v2408
  %v2410 = vrcp.pop %v2406
  %v2411 = vmul.f32 1.0, %v2410
  %v2412 = vrcp.pop %v2407
  %v2413 = vmul.f32 1.0, %v2412
  %v2414 = vtanh.pop %v2394
  %v2415 = vmul.f32 %v2411, %v2395
  %v2416 = vmul.f32 %v2409, %v2414
  %v2417 = vadd.f32 %v2415, %v2416
  %v2418 = vtanh.pop %v2417
  %v2419 = vmul.f32 %v2413, %v2418
  %2420 = vst [vmem:[%s8] sm:$0xff] %v2419
  %2421 = vst [vmem:[%s9] sm:$0xff] %v2417
  %v2422 = vld [vmem:[%s412] sm:$0xff]
  %2423 = vmatprep.subr.mxu0 %v170
  %2424 = vmatpush1.msra.mxu0 %v169
  %2425 = vmatprep.subr.mxu0 %v174
  %2426 = vmatpush1.msra.mxu0 %v173
  %2427 = vmatprep.subr.mxu0 %v178
  %2428 = vmatpush1.msra.mxu0 %v177
  %2429 = vmatprep.subr.mxu0 %v182
  %2430 = vmatpush1.msra.mxu0 %v181
  %2431 = vmatprep.subr.mxu0 %v186
  %2432 = vmatpush1.msra.mxu0 %v185
  %2433 = vmatprep.subr.mxu0 %v190
  %2434 = vmatpush1.msra.mxu0 %v189
  %2435 = vmatprep.subr.mxu0 %v194
  %2436 = vmatpush1.msra.mxu0 %v193
  %2437 = vmatprep.subr.mxu0 %v198
  %2438 = vmatpush1.msra.mxu0 %v197
  %2439 = vmatprep.subr.mxu0 %v202
  %2440 = vmatpush1.msra.mxu0 %v201
  %2441 = vmatprep.subr.mxu0 %v206
  %2442 = vmatpush1.msra.mxu0 %v205
  %2443 = vmatprep.subr.mxu0 %v210
  %2444 = vmatpush1.msra.mxu0 %v209
  %2445 = vmatprep.subr.mxu0 %v214
  %2446 = vmatpush1.msra.mxu0 %v213
  %2447 = vmatprep.subr.mxu0 %v218
  %2448 = vmatpush1.msra.mxu0 %v217
  %2449 = vmatprep.subr.mxu0 %v222
  %2450 = vmatpush1.msra.mxu0 %v221
  %2451 = vmatprep.subr.mxu0 %v226
  %2452 = vmatpush1.msra.mxu0 %v225
  %2453 = vmatprep.subr.mxu0 %v230
  %2454 = vmatpush1.msra.mxu0 %v229
  %2455 = vmatprep.subr.mxu0 0.0
  %2456 = vmatpush1.msra.mxu0 0.0
  %2457 = vmatprep.subr.mxu0 0.0
  %2458 = vmatpush1.msra.mxu0 0.0
  %2459 = vmatprep.subr.mxu0 0.0
  %2460 = vmatpush1.msra.mxu0 0.0
  %2461 = vmatprep.subr.mxu0 0.0
  %2462 = vmatpush1.msra.mxu0 0.0
  %2463 = vmatprep.subr.mxu0 0.0
  %2464 = vmatpush1.msra.mxu0 0.0
  %2465 = vmatprep.subr.mxu0 0.0
  %2466 = vmatpush1.msra.mxu0 0.0
  %2467 = vmatprep.subr.mxu0 0.0
  %2468 = vmatpush1.msra.mxu0 0.0
  %2469 = vmatprep.subr.mxu0 0.0
  %2470 = vmatpush1.msra.mxu0 0.0
  %2471 = vmatprep.subr.mxu0 0.0
  %2472 = vmatpush1.msra.mxu0 0.0
  %2473 = vmatprep.subr.mxu0 0.0
  %2474 = vmatpush1.msra.mxu0 0.0
  %2475 = vmatprep.subr.mxu0 0.0
  %2476 = vmatpush1.msra.mxu0 0.0
  %2477 = vmatprep.subr.mxu0 0.0
  %2478 = vmatpush1.msra.mxu0 0.0
  %2479 = vmatprep.subr.mxu0 0.0
  %2480 = vmatpush1.msra.mxu0 0.0
  %2481 = vmatprep.subr.mxu0 0.0
  %2482 = vmatpush1.msra.mxu0 0.0
  %2483 = vmatprep.subr.mxu0 0.0
  %2484 = vmatpush1.msra.mxu0 0.0
  %2485 = vmatprep.subr.mxu0 0.0
  %2486 = vmatpush1.msra.mxu0 0.0
  %2487 = vmatprep.mubr.f32.mxu0 0.0
  %2488 = vmatmul.mubr.f32.gmra.mrb[0].mxu0 %v2422
  %v2489 = vpop.f32.mrb[0].mxu0
  %v2490 = vadd.f32 0.0, %v2489
  %v2491 = vpop.f32.mrb[0].mxu0
  %v2492 = vadd.f32 0.0, %v2491
  %2493 = vdwg.mxu0
  %2494 = vmatprep.subr.mxu0 %v172
  %2495 = vmatpush1.msra.mxu0 %v171
  %2496 = vmatprep.subr.mxu0 %v176
  %2497 = vmatpush1.msra.mxu0 %v175
  %2498 = vmatprep.subr.mxu0 %v180
  %2499 = vmatpush1.msra.mxu0 %v179
  %2500 = vmatprep.subr.mxu0 %v184
  %2501 = vmatpush1.msra.mxu0 %v183
  %2502 = vmatprep.subr.mxu0 %v188
  %2503 = vmatpush1.msra.mxu0 %v187
  %2504 = vmatprep.subr.mxu0 %v192
  %2505 = vmatpush1.msra.mxu0 %v191
  %2506 = vmatprep.subr.mxu0 %v196
  %2507 = vmatpush1.msra.mxu0 %v195
  %2508 = vmatprep.subr.mxu0 %v200
  %2509 = vmatpush1.msra.mxu0 %v199
  %2510 = vmatprep.subr.mxu0 %v204
  %2511 = vmatpush1.msra.mxu0 %v203
  %2512 = vmatprep.subr.mxu0 %v208
  %2513 = vmatpush1.msra.mxu0 %v207
  %2514 = vmatprep.subr.mxu0 %v212
  %2515 = vmatpush1.msra.mxu0 %v211
  %2516 = vmatprep.subr.mxu0 %v216
  %2517 = vmatpush1.msra.mxu0 %v215
  %2518 = vmatprep.subr.mxu0 %v220
  %2519 = vmatpush1.msra.mxu0 %v219
  %2520 = vmatprep.subr.mxu0 %v224
  %2521 = vmatpush1.msra.mxu0 %v223
  %2522 = vmatprep.subr.mxu0 %v228
  %2523 = vmatpush1.msra.mxu0 %v227
  %2524 = vmatprep.subr.mxu0 %v232
  %2525 = vmatpush1.msra.mxu0 %v231
  %2526 = vmatprep.subr.mxu0 0.0
  %2527 = vmatpush1.msra.mxu0 0.0
  %2528 = vmatprep.subr.mxu0 0.0
  %2529 = vmatpush1.msra.mxu0 0.0
  %2530 = vmatprep.subr.mxu0 0.0
  %2531 = vmatpush1.msra.mxu0 0.0
  %2532 = vmatprep.subr.mxu0 0.0
  %2533 = vmatpush1.msra.mxu0 0.0
  %2534 = vmatprep.subr.mxu0 0.0
  %2535 = vmatpush1.msra.mxu0 0.0
  %2536 = vmatprep.subr.mxu0 0.0
  %2537 = vmatpush1.msra.mxu0 0.0
  %2538 = vmatprep.subr.mxu0 0.0
  %2539 = vmatpush1.msra.mxu0 0.0
  %2540 = vmatprep.subr.mxu0 0.0
  %2541 = vmatpush1.msra.mxu0 0.0
  %2542 = vmatprep.subr.mxu0 0.0
  %2543 = vmatpush1.msra.mxu0 0.0
  %2544 = vmatprep.subr.mxu0 0.0
  %2545 = vmatpush1.msra.mxu0 0.0
  %2546 = vmatprep.subr.mxu0 0.0
  %2547 = vmatpush1.msra.mxu0 0.0
  %2548 = vmatprep.subr.mxu0 0.0
  %2549 = vmatpush1.msra.mxu0 0.0
  %2550 = vmatprep.subr.mxu0 0.0
  %2551 = vmatpush1.msra.mxu0 0.0
  %2552 = vmatprep.subr.mxu0 0.0
  %2553 = vmatpush1.msra.mxu0 0.0
  %2554 = vmatprep.subr.mxu0 0.0
  %2555 = vmatpush1.msra.mxu0 0.0
  %2556 = vmatprep.subr.mxu0 0.0
  %2557 = vmatpush1.msra.mxu0 0.0
  %2558 = vmatprep.mubr.f32.mxu0 0.0
  %2559 = vmatmul.mubr.f32.gmra.mrb[0].mxu0 %v2422
  %v2560 = vpop.f32.mrb[0].mxu0
  %v2561 = vadd.f32 0.0, %v2560
  %v2562 = vpop.f32.mrb[0].mxu0
  %v2563 = vadd.f32 0.0, %v2562
  %2564 = vdwg.mxu0
  %2565 = vmatprep.subr.mxu0 %v106
  %2566 = vmatpush1.msra.mxu0 %v105
  %2567 = vmatprep.subr.mxu0 %v110
  %2568 = vmatpush1.msra.mxu0 %v109
  %2569 = vmatprep.subr.mxu0 %v114
  %2570 = vmatpush1.msra.mxu0 %v113
  %2571 = vmatprep.subr.mxu0 %v118
  %2572 = vmatpush1.msra.mxu0 %v117
  %2573 = vmatprep.subr.mxu0 %v122
  %2574 = vmatpush1.msra.mxu0 %v121
  %2575 = vmatprep.subr.mxu0 %v126
  %2576 = vmatpush1.msra.mxu0 %v125
  %2577 = vmatprep.subr.mxu0 %v130
  %2578 = vmatpush1.msra.mxu0 %v129
  %2579 = vmatprep.subr.mxu0 %v134
  %2580 = vmatpush1.msra.mxu0 %v133
  %2581 = vmatprep.subr.mxu0 %v138
  %2582 = vmatpush1.msra.mxu0 %v137
  %2583 = vmatprep.subr.mxu0 %v142
  %2584 = vmatpush1.msra.mxu0 %v141
  %2585 = vmatprep.subr.mxu0 %v146
  %2586 = vmatpush1.msra.mxu0 %v145
  %2587 = vmatprep.subr.mxu0 %v150
  %2588 = vmatpush1.msra.mxu0 %v149
  %2589 = vmatprep.subr.mxu0 %v154
  %2590 = vmatpush1.msra.mxu0 %v153
  %2591 = vmatprep.subr.mxu0 %v158
  %2592 = vmatpush1.msra.mxu0 %v157
  %2593 = vmatprep.subr.mxu0 %v162
  %2594 = vmatpush1.msra.mxu0 %v161
  %2595 = vmatprep.subr.mxu0 %v166
  %2596 = vmatpush1.msra.mxu0 %v165
  %2597 = vmatprep.subr.mxu0 0.0
  %2598 = vmatpush1.msra.mxu0 0.0
  %2599 = vmatprep.subr.mxu0 0.0
  %2600 = vmatpush1.msra.mxu0 0.0
  %2601 = vmatprep.subr.mxu0 0.0
  %2602 = vmatpush1.msra.mxu0 0.0
  %2603 = vmatprep.subr.mxu0 0.0
  %2604 = vmatpush1.msra.mxu0 0.0
  %2605 = vmatprep.subr.mxu0 0.0
  %2606 = vmatpush1.msra.mxu0 0.0
  %2607 = vmatprep.subr.mxu0 0.0
  %2608 = vmatpush1.msra.mxu0 0.0
  %2609 = vmatprep.subr.mxu0 0.0
  %2610 = vmatpush1.msra.mxu0 0.0
  %2611 = vmatprep.subr.mxu0 0.0
  %2612 = vmatpush1.msra.mxu0 0.0
  %2613 = vmatprep.subr.mxu0 0.0
  %2614 = vmatpush1.msra.mxu0 0.0
  %2615 = vmatprep.subr.mxu0 0.0
  %2616 = vmatpush1.msra.mxu0 0.0
  %2617 = vmatprep.subr.mxu0 0.0
  %2618 = vmatpush1.msra.mxu0 0.0
  %2619 = vmatprep.subr.mxu0 0.0
  %2620 = vmatpush1.msra.mxu0 0.0
  %2621 = vmatprep.subr.mxu0 0.0
  %2622 = vmatpush1.msra.mxu0 0.0
  %2623 = vmatprep.subr.mxu0 0.0
  %2624 = vmatpush1.msra.mxu0 0.0
  %2625 = vmatprep.subr.mxu0 0.0
  %2626 = vmatpush1.msra.mxu0 0.0
  %2627 = vmatprep.subr.mxu0 0.0
  %2628 = vmatpush1.msra.mxu0 0.0
  %2629 = vmatprep.mubr.f32.mxu0 0.0
  %2630 = vmatmul.mubr.f32.gmra.mrb[0].mxu0 %v2419
  %v2631 = vpop.f32.mrb[0].mxu0
  %v2632 = vadd.f32 %v2490, %v2631
  %v2633 = vpop.f32.mrb[0].mxu0
  %v2634 = vadd.f32 %v2492, %v2633
  %2635 = vdwg.mxu0
  %2636 = vmatprep.subr.mxu0 %v108
  %2637 = vmatpush1.msra.mxu0 %v107
  %2638 = vmatprep.subr.mxu0 %v112
  %2639 = vmatpush1.msra.mxu0 %v111
  %2640 = vmatprep.subr.mxu0 %v116
  %2641 = vmatpush1.msra.mxu0 %v115
  %2642 = vmatprep.subr.mxu0 %v120
  %2643 = vmatpush1.msra.mxu0 %v119
  %2644 = vmatprep.subr.mxu0 %v124
  %2645 = vmatpush1.msra.mxu0 %v123
  %2646 = vmatprep.subr.mxu0 %v128
  %2647 = vmatpush1.msra.mxu0 %v127
  %2648 = vmatprep.subr.mxu0 %v132
  %2649 = vmatpush1.msra.mxu0 %v131
  %2650 = vmatprep.subr.mxu0 %v136
  %2651 = vmatpush1.msra.mxu0 %v135
  %2652 = vmatprep.subr.mxu0 %v140
  %2653 = vmatpush1.msra.mxu0 %v139
  %2654 = vmatprep.subr.mxu0 %v144
  %2655 = vmatpush1.msra.mxu0 %v143
  %2656 = vmatprep.subr.mxu0 %v148
  %2657 = vmatpush1.msra.mxu0 %v147
  %2658 = vmatprep.subr.mxu0 %v152
  %2659 = vmatpush1.msra.mxu0 %v151
  %2660 = vmatprep.subr.mxu0 %v156
  %2661 = vmatpush1.msra.mxu0 %v155
  %2662 = vmatprep.subr.mxu0 %v160
  %2663 = vmatpush1.msra.mxu0 %v159
  %2664 = vmatprep.subr.mxu0 %v164
  %2665 = vmatpush1.msra.mxu0 %v163
  %2666 = vmatprep.subr.mxu0 %v168
  %2667 = vmatpush1.msra.mxu0 %v167
  %2668 = vmatprep.subr.mxu0 0.0
  %2669 = vmatpush1.msra.mxu0 0.0
  %2670 = vmatprep.subr.mxu0 0.0
  %2671 = vmatpush1.msra.mxu0 0.0
  %2672 = vmatprep.subr.mxu0 0.0
  %2673 = vmatpush1.msra.mxu0 0.0
  %2674 = vmatprep.subr.mxu0 0.0
  %2675 = vmatpush1.msra.mxu0 0.0
  %2676 = vmatprep.subr.mxu0 0.0
  %2677 = vmatpush1.msra.mxu0 0.0
  %2678 = vmatprep.subr.mxu0 0.0
  %2679 = vmatpush1.msra.mxu0 0.0
  %2680 = vmatprep.subr.mxu0 0.0
  %2681 = vmatpush1.msra.mxu0 0.0
  %2682 = vmatprep.subr.mxu0 0.0
  %2683 = vmatpush1.msra.mxu0 0.0
  %2684 = vmatprep.subr.mxu0 0.0
  %2685 = vmatpush1.msra.mxu0 0.0
  %2686 = vmatprep.subr.mxu0 0.0
  %2687 = vmatpush1.msra.mxu0 0.0
  %2688 = vmatprep.subr.mxu0 0.0
  %2689 = vmatpush1.msra.mxu0 0.0
  %2690 = vmatprep.subr.mxu0 0.0
  %2691 = vmatpush1.msra.mxu0 0.0
  %2692 = vmatprep.subr.mxu0 0.0
  %2693 = vmatpush1.msra.mxu0 0.0
  %2694 = vmatprep.subr.mxu0 0.0
  %2695 = vmatpush1.msra.mxu0 0.0
  %2696 = vmatprep.subr.mxu0 0.0
  %2697 = vmatpush1.msra.mxu0 0.0
  %2698 = vmatprep.subr.mxu0 0.0
  %2699 = vmatpush1.msra.mxu0 0.0
  %2700 = vmatprep.mubr.f32.mxu0 0.0
  %2701 = vmatmul.mubr.f32.gmra.mrb[0].mxu0 %v2419
  %v2702 = vpop.f32.mrb[0].mxu0
  %v2703 = vadd.f32 %v2561, %v2702
  %v2704 = vpop.f32.mrb[0].mxu0
  %v2705 = vadd.f32 %v2563, %v2704
  %2706 = vdwg.mxu0
  %v2707 = vadd.f32 %v2632, %v702
  %v2708 = vadd.f32 %v2634, %v706
  %v2709 = vadd.f32 %v2703, %v710
  %v2710 = vadd.f32 %v2705, %v714
  %v2711 = vld [vmem:[%s723] sm:$0xff]
  %v2712 = vxor.u32 %v2707, 2147483648
  %v2713 = vxor.u32 %v2708, 2147483648
  %v2714 = vxor.u32 %v2709, 2147483648
  %v2715 = vmul.f32 %v2712, 1.442695
  %v2716 = vpow.pop %v2715
  %v2717 = vmul.f32 %v2713, 1.442695
  %v2718 = vpow.pop %v2717
  %v2719 = vmul.f32 %v2714, 1.442695
  %v2720 = vpow.pop %v2719
  %v2721 = vadd.f32 %v2716, 1.0
  %v2722 = vadd.f32 %v2718, 1.0
  %v2723 = vadd.f32 %v2720, 1.0
  %v2724 = vrcp.pop %v2721
  %v2725 = vmul.f32 1.0, %v2724
  %v2726 = vrcp.pop %v2722
  %v2727 = vmul.f32 1.0, %v2726
  %v2728 = vrcp.pop %v2723
  %v2729 = vmul.f32 1.0, %v2728
  %v2730 = vtanh.pop %v2710
  %v2731 = vmul.f32 %v2727, %v2711
  %v2732 = vmul.f32 %v2725, %v2730
  %v2733 = vadd.f32 %v2731, %v2732
  %v2734 = vtanh.pop %v2733
  %v2735 = vmul.f32 %v2729, %v2734
  %2736 = vst [vmem:[%s412] sm:$0xff] %v2735
  %2737 = vst [vmem:[%s723] sm:$0xff] %v2733
  %s2738 = scalar_lea.vmem %s7, 32
  %2739 = vst [vmem:[%s2738] sm:$0xff] %v2735
  %s2740 = scalar_lea.vmem %s0, 160
  %v2741 = vld [vmem:[%s2740] sm:$0xff]
  %v2742 = vld [vmem:[%s2740 + $0x8] sm:$0xff]
  %v2743 = vld [vmem:[%s2740 + $0x10] sm:$0xff]
  %v2744 = vld [vmem:[%s2740 + $0x18] sm:$0xff]
  %v2745 = vld [vmem:[%s8] sm:$0xff]
  %2746 = vmatprep.subr.mxu0 %v42
  %2747 = vmatpush1.msra.mxu0 %v41
  %2748 = vmatprep.subr.mxu0 %v46
  %2749 = vmatpush1.msra.mxu0 %v45
  %2750 = vmatprep.subr.mxu0 %v50
  %2751 = vmatpush1.msra.mxu0 %v49
  %2752 = vmatprep.subr.mxu0 %v54
  %2753 = vmatpush1.msra.mxu0 %v53
  %2754 = vmatprep.subr.mxu0 %v58
  %2755 = vmatpush1.msra.mxu0 %v57
  %2756 = vmatprep.subr.mxu0 %v62
  %2757 = vmatpush1.msra.mxu0 %v61
  %2758 = vmatprep.subr.mxu0 %v66
  %2759 = vmatpush1.msra.mxu0 %v65
  %2760 = vmatprep.subr.mxu0 %v70
  %2761 = vmatpush1.msra.mxu0 %v69
  %2762 = vmatprep.subr.mxu0 %v74
  %2763 = vmatpush1.msra.mxu0 %v73
  %2764 = vmatprep.subr.mxu0 %v78
  %2765 = vmatpush1.msra.mxu0 %v77
  %2766 = vmatprep.subr.mxu0 %v82
  %2767 = vmatpush1.msra.mxu0 %v81
  %2768 = vmatprep.subr.mxu0 %v86
  %2769 = vmatpush1.msra.mxu0 %v85
  %2770 = vmatprep.subr.mxu0 %v90
  %2771 = vmatpush1.msra.mxu0 %v89
  %2772 = vmatprep.subr.mxu0 %v94
  %2773 = vmatpush1.msra.mxu0 %v93
  %2774 = vmatprep.subr.mxu0 %v98
  %2775 = vmatpush1.msra.mxu0 %v97
  %2776 = vmatprep.subr.mxu0 %v102
  %2777 = vmatpush1.msra.mxu0 %v101
  %2778 = vmatprep.subr.mxu0 0.0
  %2779 = vmatpush1.msra.mxu0 0.0
  %2780 = vmatprep.subr.mxu0 0.0
  %2781 = vmatpush1.msra.mxu0 0.0
  %2782 = vmatprep.subr.mxu0 0.0
  %2783 = vmatpush1.msra.mxu0 0.0
  %2784 = vmatprep.subr.mxu0 0.0
  %2785 = vmatpush1.msra.mxu0 0.0
  %2786 = vmatprep.subr.mxu0 0.0
  %2787 = vmatpush1.msra.mxu0 0.0
  %2788 = vmatprep.subr.mxu0 0.0
  %2789 = vmatpush1.msra.mxu0 0.0
  %2790 = vmatprep.subr.mxu0 0.0
  %2791 = vmatpush1.msra.mxu0 0.0
  %2792 = vmatprep.subr.mxu0 0.0
  %2793 = vmatpush1.msra.mxu0 0.0
  %2794 = vmatprep.subr.mxu0 0.0
  %2795 = vmatpush1.msra.mxu0 0.0
  %2796 = vmatprep.subr.mxu0 0.0
  %2797 = vmatpush1.msra.mxu0 0.0
  %2798 = vmatprep.subr.mxu0 0.0
  %2799 = vmatpush1.msra.mxu0 0.0
  %2800 = vmatprep.subr.mxu0 0.0
  %2801 = vmatpush1.msra.mxu0 0.0
  %2802 = vmatprep.subr.mxu0 0.0
  %2803 = vmatpush1.msra.mxu0 0.0
  %2804 = vmatprep.subr.mxu0 0.0
  %2805 = vmatpush1.msra.mxu0 0.0
  %2806 = vmatprep.subr.mxu0 0.0
  %2807 = vmatpush1.msra.mxu0 0.0
  %2808 = vmatprep.subr.mxu0 0.0
  %2809 = vmatpush1.msra.mxu0 0.0
  %2810 = vmatprep.mubr.f32.mxu0 0.0
  %2811 = vmatmul.mubr.f32.gmra.mrb[0].mxu0 %v2745
  %v2812 = vpop.f32.mrb[0].mxu0
  %v2813 = vadd.f32 0.0, %v2812
  %v2814 = vpop.f32.mrb[0].mxu0
  %v2815 = vadd.f32 0.0, %v2814
  %2816 = vdwg.mxu0
  %2817 = vmatprep.subr.mxu0 %v44
  %2818 = vmatpush1.msra.mxu0 %v43
  %2819 = vmatprep.subr.mxu0 %v48
  %2820 = vmatpush1.msra.mxu0 %v47
  %2821 = vmatprep.subr.mxu0 %v52
  %2822 = vmatpush1.msra.mxu0 %v51
  %2823 = vmatprep.subr.mxu0 %v56
  %2824 = vmatpush1.msra.mxu0 %v55
  %2825 = vmatprep.subr.mxu0 %v60
  %2826 = vmatpush1.msra.mxu0 %v59
  %2827 = vmatprep.subr.mxu0 %v64
  %2828 = vmatpush1.msra.mxu0 %v63
  %2829 = vmatprep.subr.mxu0 %v68
  %2830 = vmatpush1.msra.mxu0 %v67
  %2831 = vmatprep.subr.mxu0 %v72
  %2832 = vmatpush1.msra.mxu0 %v71
  %2833 = vmatprep.subr.mxu0 %v76
  %2834 = vmatpush1.msra.mxu0 %v75
  %2835 = vmatprep.subr.mxu0 %v80
  %2836 = vmatpush1.msra.mxu0 %v79
  %2837 = vmatprep.subr.mxu0 %v84
  %2838 = vmatpush1.msra.mxu0 %v83
  %2839 = vmatprep.subr.mxu0 %v88
  %2840 = vmatpush1.msra.mxu0 %v87
  %2841 = vmatprep.subr.mxu0 %v92
  %2842 = vmatpush1.msra.mxu0 %v91
  %2843 = vmatprep.subr.mxu0 %v96
  %2844 = vmatpush1.msra.mxu0 %v95
  %2845 = vmatprep.subr.mxu0 %v100
  %2846 = vmatpush1.msra.mxu0 %v99
  %2847 = vmatprep.subr.mxu0 %v104
  %2848 = vmatpush1.msra.mxu0 %v103
  %2849 = vmatprep.subr.mxu0 0.0
  %2850 = vmatpush1.msra.mxu0 0.0
  %2851 = vmatprep.subr.mxu0 0.0
  %2852 = vmatpush1.msra.mxu0 0.0
  %2853 = vmatprep.subr.mxu0 0.0
  %2854 = vmatpush1.msra.mxu0 0.0
  %2855 = vmatprep.subr.mxu0 0.0
  %2856 = vmatpush1.msra.mxu0 0.0
  %2857 = vmatprep.subr.mxu0 0.0
  %2858 = vmatpush1.msra.mxu0 0.0
  %2859 = vmatprep.subr.mxu0 0.0
  %2860 = vmatpush1.msra.mxu0 0.0
  %2861 = vmatprep.subr.mxu0 0.0
  %2862 = vmatpush1.msra.mxu0 0.0
  %2863 = vmatprep.subr.mxu0 0.0
  %2864 = vmatpush1.msra.mxu0 0.0
  %2865 = vmatprep.subr.mxu0 0.0
  %2866 = vmatpush1.msra.mxu0 0.0
  %2867 = vmatprep.subr.mxu0 0.0
  %2868 = vmatpush1.msra.mxu0 0.0
  %2869 = vmatprep.subr.mxu0 0.0
  %2870 = vmatpush1.msra.mxu0 0.0
  %2871 = vmatprep.subr.mxu0 0.0
  %2872 = vmatpush1.msra.mxu0 0.0
  %2873 = vmatprep.subr.mxu0 0.0
  %2874 = vmatpush1.msra.mxu0 0.0
  %2875 = vmatprep.subr.mxu0 0.0
  %2876 = vmatpush1.msra.mxu0 0.0
  %2877 = vmatprep.subr.mxu0 0.0
  %2878 = vmatpush1.msra.mxu0 0.0
  %2879 = vmatprep.subr.mxu0 0.0
  %2880 = vmatpush1.msra.mxu0 0.0
  %2881 = vmatprep.mubr.f32.mxu0 0.0
  %2882 = vmatmul.mubr.f32.gmra.mrb[0].mxu0 %v2745
  %v2883 = vpop.f32.mrb[0].mxu0
  %v2884 = vadd.f32 0.0, %v2883
  %v2885 = vpop.f32.mrb[0].mxu0
  %v2886 = vadd.f32 0.0, %v2885
  %2887 = vdwg.mxu0
  %v2888 = vadd.f32 %v2741, %v2813
  %v2889 = vadd.f32 %v2742, %v2815
  %v2890 = vadd.f32 %v2743, %v2884
  %v2891 = vadd.f32 %v2744, %v2886
  %v2892 = vld [vmem:[%s9] sm:$0xff]
  %v2893 = vxor.u32 %v2888, 2147483648
  %v2894 = vxor.u32 %v2889, 2147483648
  %v2895 = vxor.u32 %v2890, 2147483648
  %v2896 = vmul.f32 %v2893, 1.442695
  %v2897 = vpow.pop %v2896
  %v2898 = vmul.f32 %v2894, 1.442695
  %v2899 = vpow.pop %v2898
  %v2900 = vmul.f32 %v2895, 1.442695
  %v2901 = vpow.pop %v2900
  %v2902 = vadd.f32 %v2897, 1.0
  %v2903 = vadd.f32 %v2899, 1.0
  %v2904 = vadd.f32 %v2901, 1.0
  %v2905 = vrcp.pop %v2902
  %v2906 = vmul.f32 1.0, %v2905
  %v2907 = vrcp.pop %v2903
  %v2908 = vmul.f32 1.0, %v2907
  %v2909 = vrcp.pop %v2904
  %v2910 = vmul.f32 1.0, %v2909
  %v2911 = vtanh.pop %v2891
  %v2912 = vmul.f32 %v2908, %v2892
  %v2913 = vmul.f32 %v2906, %v2911
  %v2914 = vadd.f32 %v2912, %v2913
  %v2915 = vtanh.pop %v2914
  %v2916 = vmul.f32 %v2910, %v2915
  %2917 = vst [vmem:[%s8] sm:$0xff] %v2916
  %2918 = vst [vmem:[%s9] sm:$0xff] %v2914
  %v2919 = vld [vmem:[%s412] sm:$0xff]
  %2920 = vmatprep.subr.mxu0 %v170
  %2921 = vmatpush1.msra.mxu0 %v169
  %2922 = vmatprep.subr.mxu0 %v174
  %2923 = vmatpush1.msra.mxu0 %v173
  %2924 = vmatprep.subr.mxu0 %v178
  %2925 = vmatpush1.msra.mxu0 %v177
  %2926 = vmatprep.subr.mxu0 %v182
  %2927 = vmatpush1.msra.mxu0 %v181
  %2928 = vmatprep.subr.mxu0 %v186
  %2929 = vmatpush1.msra.mxu0 %v185
  %2930 = vmatprep.subr.mxu0 %v190
  %2931 = vmatpush1.msra.mxu0 %v189
  %2932 = vmatprep.subr.mxu0 %v194
  %2933 = vmatpush1.msra.mxu0 %v193
  %2934 = vmatprep.subr.mxu0 %v198
  %2935 = vmatpush1.msra.mxu0 %v197
  %2936 = vmatprep.subr.mxu0 %v202
  %2937 = vmatpush1.msra.mxu0 %v201
  %2938 = vmatprep.subr.mxu0 %v206
  %2939 = vmatpush1.msra.mxu0 %v205
  %2940 = vmatprep.subr.mxu0 %v210
  %2941 = vmatpush1.msra.mxu0 %v209
  %2942 = vmatprep.subr.mxu0 %v214
  %2943 = vmatpush1.msra.mxu0 %v213
  %2944 = vmatprep.subr.mxu0 %v218
  %2945 = vmatpush1.msra.mxu0 %v217
  %2946 = vmatprep.subr.mxu0 %v222
  %2947 = vmatpush1.msra.mxu0 %v221
  %2948 = vmatprep.subr.mxu0 %v226
  %2949 = vmatpush1.msra.mxu0 %v225
  %2950 = vmatprep.subr.mxu0 %v230
  %2951 = vmatpush1.msra.mxu0 %v229
  %2952 = vmatprep.subr.mxu0 0.0
  %2953 = vmatpush1.msra.mxu0 0.0
  %2954 = vmatprep.subr.mxu0 0.0
  %2955 = vmatpush1.msra.mxu0 0.0
  %2956 = vmatprep.subr.mxu0 0.0
  %2957 = vmatpush1.msra.mxu0 0.0
  %2958 = vmatprep.subr.mxu0 0.0
  %2959 = vmatpush1.msra.mxu0 0.0
  %2960 = vmatprep.subr.mxu0 0.0
  %2961 = vmatpush1.msra.mxu0 0.0
  %2962 = vmatprep.subr.mxu0 0.0
  %2963 = vmatpush1.msra.mxu0 0.0
  %2964 = vmatprep.subr.mxu0 0.0
  %2965 = vmatpush1.msra.mxu0 0.0
  %2966 = vmatprep.subr.mxu0 0.0
  %2967 = vmatpush1.msra.mxu0 0.0
  %2968 = vmatprep.subr.mxu0 0.0
  %2969 = vmatpush1.msra.mxu0 0.0
  %2970 = vmatprep.subr.mxu0 0.0
  %2971 = vmatpush1.msra.mxu0 0.0
  %2972 = vmatprep.subr.mxu0 0.0
  %2973 = vmatpush1.msra.mxu0 0.0
  %2974 = vmatprep.subr.mxu0 0.0
  %2975 = vmatpush1.msra.mxu0 0.0
  %2976 = vmatprep.subr.mxu0 0.0
  %2977 = vmatpush1.msra.mxu0 0.0
  %2978 = vmatprep.subr.mxu0 0.0
  %2979 = vmatpush1.msra.mxu0 0.0
  %2980 = vmatprep.subr.mxu0 0.0
  %2981 = vmatpush1.msra.mxu0 0.0
  %2982 = vmatprep.subr.mxu0 0.0
  %2983 = vmatpush1.msra.mxu0 0.0
  %2984 = vmatprep.mubr.f32.mxu0 0.0
  %2985 = vmatmul.mubr.f32.gmra.mrb[0].mxu0 %v2919
  %v2986 = vpop.f32.mrb[0].mxu0
  %v2987 = vadd.f32 0.0, %v2986
  %v2988 = vpop.f32.mrb[0].mxu0
  %v2989 = vadd.f32 0.0, %v2988
  %2990 = vdwg.mxu0
  %2991 = vmatprep.subr.mxu0 %v172
  %2992 = vmatpush1.msra.mxu0 %v171
  %2993 = vmatprep.subr.mxu0 %v176
  %2994 = vmatpush1.msra.mxu0 %v175
  %2995 = vmatprep.subr.mxu0 %v180
  %2996 = vmatpush1.msra.mxu0 %v179
  %2997 = vmatprep.subr.mxu0 %v184
  %2998 = vmatpush1.msra.mxu0 %v183
  %2999 = vmatprep.subr.mxu0 %v188
  %3000 = vmatpush1.msra.mxu0 %v187
  %3001 = vmatprep.subr.mxu0 %v192
  %3002 = vmatpush1.msra.mxu0 %v191
  %3003 = vmatprep.subr.mxu0 %v196
  %3004 = vmatpush1.msra.mxu0 %v195
  %3005 = vmatprep.subr.mxu0 %v200
  %3006 = vmatpush1.msra.mxu0 %v199
  %3007 = vmatprep.subr.mxu0 %v204
  %3008 = vmatpush1.msra.mxu0 %v203
  %3009 = vmatprep.subr.mxu0 %v208
  %3010 = vmatpush1.msra.mxu0 %v207
  %3011 = vmatprep.subr.mxu0 %v212
  %3012 = vmatpush1.msra.mxu0 %v211
  %3013 = vmatprep.subr.mxu0 %v216
  %3014 = vmatpush1.msra.mxu0 %v215
  %3015 = vmatprep.subr.mxu0 %v220
  %3016 = vmatpush1.msra.mxu0 %v219
  %3017 = vmatprep.subr.mxu0 %v224
  %3018 = vmatpush1.msra.mxu0 %v223
  %3019 = vmatprep.subr.mxu0 %v228
  %3020 = vmatpush1.msra.mxu0 %v227
  %3021 = vmatprep.subr.mxu0 %v232
  %3022 = vmatpush1.msra.mxu0 %v231
  %3023 = vmatprep.subr.mxu0 0.0
  %3024 = vmatpush1.msra.mxu0 0.0
  %3025 = vmatprep.subr.mxu0 0.0
  %3026 = vmatpush1.msra.mxu0 0.0
  %3027 = vmatprep.subr.mxu0 0.0
  %3028 = vmatpush1.msra.mxu0 0.0
  %3029 = vmatprep.subr.mxu0 0.0
  %3030 = vmatpush1.msra.mxu0 0.0
  %3031 = vmatprep.subr.mxu0 0.0
  %3032 = vmatpush1.msra.mxu0 0.0
  %3033 = vmatprep.subr.mxu0 0.0
  %3034 = vmatpush1.msra.mxu0 0.0
  %3035 = vmatprep.subr.mxu0 0.0
  %3036 = vmatpush1.msra.mxu0 0.0
  %3037 = vmatprep.subr.mxu0 0.0
  %3038 = vmatpush1.msra.mxu0 0.0
  %3039 = vmatprep.subr.mxu0 0.0
  %3040 = vmatpush1.msra.mxu0 0.0
  %3041 = vmatprep.subr.mxu0 0.0
  %3042 = vmatpush1.msra.mxu0 0.0
  %3043 = vmatprep.subr.mxu0 0.0
  %3044 = vmatpush1.msra.mxu0 0.0
  %3045 = vmatprep.subr.mxu0 0.0
  %3046 = vmatpush1.msra.mxu0 0.0
  %3047 = vmatprep.subr.mxu0 0.0
  %3048 = vmatpush1.msra.mxu0 0.0
  %3049 = vmatprep.subr.mxu0 0.0
  %3050 = vmatpush1.msra.mxu0 0.0
  %3051 = vmatprep.subr.mxu0 0.0
  %3052 = vmatpush1.msra.mxu0 0.0
  %3053 = vmatprep.subr.mxu0 0.0
  %3054 = vmatpush1.msra.mxu0 0.0
  %3055 = vmatprep.mubr.f32.mxu0 0.0
  %3056 = vmatmul.mubr.f32.gmra.mrb[0].mxu0 %v2919
  %v3057 = vpop.f32.mrb[0].mxu0
  %v3058 = vadd.f32 0.0, %v3057
  %v3059 = vpop.f32.mrb[0].mxu0
  %v3060 = vadd.f32 0.0, %v3059
  %3061 = vdwg.mxu0
  %3062 = vmatprep.subr.mxu0 %v106
  %3063 = vmatpush1.msra.mxu0 %v105
  %3064 = vmatprep.subr.mxu0 %v110
  %3065 = vmatpush1.msra.mxu0 %v109
  %3066 = vmatprep.subr.mxu0 %v114
  %3067 = vmatpush1.msra.mxu0 %v113
  %3068 = vmatprep.subr.mxu0 %v118
  %3069 = vmatpush1.msra.mxu0 %v117
  %3070 = vmatprep.subr.mxu0 %v122
  %3071 = vmatpush1.msra.mxu0 %v121
  %3072 = vmatprep.subr.mxu0 %v126
  %3073 = vmatpush1.msra.mxu0 %v125
  %3074 = vmatprep.subr.mxu0 %v130
  %3075 = vmatpush1.msra.mxu0 %v129
  %3076 = vmatprep.subr.mxu0 %v134
  %3077 = vmatpush1.msra.mxu0 %v133
  %3078 = vmatprep.subr.mxu0 %v138
  %3079 = vmatpush1.msra.mxu0 %v137
  %3080 = vmatprep.subr.mxu0 %v142
  %3081 = vmatpush1.msra.mxu0 %v141
  %3082 = vmatprep.subr.mxu0 %v146
  %3083 = vmatpush1.msra.mxu0 %v145
  %3084 = vmatprep.subr.mxu0 %v150
  %3085 = vmatpush1.msra.mxu0 %v149
  %3086 = vmatprep.subr.mxu0 %v154
  %3087 = vmatpush1.msra.mxu0 %v153
  %3088 = vmatprep.subr.mxu0 %v158
  %3089 = vmatpush1.msra.mxu0 %v157
  %3090 = vmatprep.subr.mxu0 %v162
  %3091 = vmatpush1.msra.mxu0 %v161
  %3092 = vmatprep.subr.mxu0 %v166
  %3093 = vmatpush1.msra.mxu0 %v165
  %3094 = vmatprep.subr.mxu0 0.0
  %3095 = vmatpush1.msra.mxu0 0.0
  %3096 = vmatprep.subr.mxu0 0.0
  %3097 = vmatpush1.msra.mxu0 0.0
  %3098 = vmatprep.subr.mxu0 0.0
  %3099 = vmatpush1.msra.mxu0 0.0
  %3100 = vmatprep.subr.mxu0 0.0
  %3101 = vmatpush1.msra.mxu0 0.0
  %3102 = vmatprep.subr.mxu0 0.0
  %3103 = vmatpush1.msra.mxu0 0.0
  %3104 = vmatprep.subr.mxu0 0.0
  %3105 = vmatpush1.msra.mxu0 0.0
  %3106 = vmatprep.subr.mxu0 0.0
  %3107 = vmatpush1.msra.mxu0 0.0
  %3108 = vmatprep.subr.mxu0 0.0
  %3109 = vmatpush1.msra.mxu0 0.0
  %3110 = vmatprep.subr.mxu0 0.0
  %3111 = vmatpush1.msra.mxu0 0.0
  %3112 = vmatprep.subr.mxu0 0.0
  %3113 = vmatpush1.msra.mxu0 0.0
  %3114 = vmatprep.subr.mxu0 0.0
  %3115 = vmatpush1.msra.mxu0 0.0
  %3116 = vmatprep.subr.mxu0 0.0
  %3117 = vmatpush1.msra.mxu0 0.0
  %3118 = vmatprep.subr.mxu0 0.0
  %3119 = vmatpush1.msra.mxu0 0.0
  %3120 = vmatprep.subr.mxu0 0.0
  %3121 = vmatpush1.msra.mxu0 0.0
  %3122 = vmatprep.subr.mxu0 0.0
  %3123 = vmatpush1.msra.mxu0 0.0
  %3124 = vmatprep.subr.mxu0 0.0
  %3125 = vmatpush1.msra.mxu0 0.0
  %3126 = vmatprep.mubr.f32.mxu0 0.0
  %3127 = vmatmul.mubr.f32.gmra.mrb[0].mxu0 %v2916
  %v3128 = vpop.f32.mrb[0].mxu0
  %v3129 = vadd.f32 %v2987, %v3128
  %v3130 = vpop.f32.mrb[0].mxu0
  %v3131 = vadd.f32 %v2989, %v3130
  %3132 = vdwg.mxu0
  %3133 = vmatprep.subr.mxu0 %v108
  %3134 = vmatpush1.msra.mxu0 %v107
  %3135 = vmatprep.subr.mxu0 %v112
  %3136 = vmatpush1.msra.mxu0 %v111
  %3137 = vmatprep.subr.mxu0 %v116
  %3138 = vmatpush1.msra.mxu0 %v115
  %3139 = vmatprep.subr.mxu0 %v120
  %3140 = vmatpush1.msra.mxu0 %v119
  %3141 = vmatprep.subr.mxu0 %v124
  %3142 = vmatpush1.msra.mxu0 %v123
  %3143 = vmatprep.subr.mxu0 %v128
  %3144 = vmatpush1.msra.mxu0 %v127
  %3145 = vmatprep.subr.mxu0 %v132
  %3146 = vmatpush1.msra.mxu0 %v131
  %3147 = vmatprep.subr.mxu0 %v136
  %3148 = vmatpush1.msra.mxu0 %v135
  %3149 = vmatprep.subr.mxu0 %v140
  %3150 = vmatpush1.msra.mxu0 %v139
  %3151 = vmatprep.subr.mxu0 %v144
  %3152 = vmatpush1.msra.mxu0 %v143
  %3153 = vmatprep.subr.mxu0 %v148
  %3154 = vmatpush1.msra.mxu0 %v147
  %3155 = vmatprep.subr.mxu0 %v152
  %3156 = vmatpush1.msra.mxu0 %v151
  %3157 = vmatprep.subr.mxu0 %v156
  %3158 = vmatpush1.msra.mxu0 %v155
  %3159 = vmatprep.subr.mxu0 %v160
  %3160 = vmatpush1.msra.mxu0 %v159
  %3161 = vmatprep.subr.mxu0 %v164
  %3162 = vmatpush1.msra.mxu0 %v163
  %3163 = vmatprep.subr.mxu0 %v168
  %3164 = vmatpush1.msra.mxu0 %v167
  %3165 = vmatprep.subr.mxu0 0.0
  %3166 = vmatpush1.msra.mxu0 0.0
  %3167 = vmatprep.subr.mxu0 0.0
  %3168 = vmatpush1.msra.mxu0 0.0
  %3169 = vmatprep.subr.mxu0 0.0
  %3170 = vmatpush1.msra.mxu0 0.0
  %3171 = vmatprep.subr.mxu0 0.0
  %3172 = vmatpush1.msra.mxu0 0.0
  %3173 = vmatprep.subr.mxu0 0.0
  %3174 = vmatpush1.msra.mxu0 0.0
  %3175 = vmatprep.subr.mxu0 0.0
  %3176 = vmatpush1.msra.mxu0 0.0
  %3177 = vmatprep.subr.mxu0 0.0
  %3178 = vmatpush1.msra.mxu0 0.0
  %3179 = vmatprep.subr.mxu0 0.0
  %3180 = vmatpush1.msra.mxu0 0.0
  %3181 = vmatprep.subr.mxu0 0.0
  %3182 = vmatpush1.msra.mxu0 0.0
  %3183 = vmatprep.subr.mxu0 0.0
  %3184 = vmatpush1.msra.mxu0 0.0
  %3185 = vmatprep.subr.mxu0 0.0
  %3186 = vmatpush1.msra.mxu0 0.0
  %3187 = vmatprep.subr.mxu0 0.0
  %3188 = vmatpush1.msra.mxu0 0.0
  %3189 = vmatprep.subr.mxu0 0.0
  %3190 = vmatpush1.msra.mxu0 0.0
  %3191 = vmatprep.subr.mxu0 0.0
  %3192 = vmatpush1.msra.mxu0 0.0
  %3193 = vmatprep.subr.mxu0 0.0
  %3194 = vmatpush1.msra.mxu0 0.0
  %3195 = vmatprep.subr.mxu0 0.0
  %3196 = vmatpush1.msra.mxu0 0.0
  %3197 = vmatprep.mubr.f32.mxu0 0.0
  %3198 = vmatmul.mubr.f32.gmra.mrb[0].mxu0 %v2916
  %v3199 = vpop.f32.mrb[0].mxu0
  %v3200 = vadd.f32 %v3058, %v3199
  %v3201 = vpop.f32.mrb[0].mxu0
  %v3202 = vadd.f32 %v3060, %v3201
  %3203 = vdwg.mxu0
  %v3204 = vadd.f32 %v3129, %v702
  %v3205 = vadd.f32 %v3131, %v706
  %v3206 = vadd.f32 %v3200, %v710
  %v3207 = vadd.f32 %v3202, %v714
  %v3208 = vld [vmem:[%s723] sm:$0xff]
  %v3209 = vxor.u32 %v3204, 2147483648
  %v3210 = vxor.u32 %v3205, 2147483648
  %v3211 = vxor.u32 %v3206, 2147483648
  %v3212 = vmul.f32 %v3209, 1.442695
  %v3213 = vpow.pop %v3212
  %v3214 = vmul.f32 %v3210, 1.442695
  %v3215 = vpow.pop %v3214
  %v3216 = vmul.f32 %v3211, 1.442695
  %v3217 = vpow.pop %v3216
  %v3218 = vadd.f32 %v3213, 1.0
  %v3219 = vadd.f32 %v3215, 1.0
  %v3220 = vadd.f32 %v3217, 1.0
  %v3221 = vrcp.pop %v3218
  %v3222 = vmul.f32 1.0, %v3221
  %v3223 = vrcp.pop %v3219
  %v3224 = vmul.f32 1.0, %v3223
  %v3225 = vrcp.pop %v3220
  %v3226 = vmul.f32 1.0, %v3225
  %v3227 = vtanh.pop %v3207
  %v3228 = vmul.f32 %v3224, %v3208
  %v3229 = vmul.f32 %v3222, %v3227
  %v3230 = vadd.f32 %v3228, %v3229
  %v3231 = vtanh.pop %v3230
  %v3232 = vmul.f32 %v3226, %v3231
  %3233 = vst [vmem:[%s412] sm:$0xff] %v3232
  %3234 = vst [vmem:[%s723] sm:$0xff] %v3230
  %s3235 = scalar_lea.vmem %s7, 40
  %3236 = vst [vmem:[%s3235] sm:$0xff] %v3232
  %s3237 = scalar_lea.vmem %s0, 192
  %v3238 = vld [vmem:[%s3237] sm:$0xff]
  %v3239 = vld [vmem:[%s3237 + $0x8] sm:$0xff]
  %v3240 = vld [vmem:[%s3237 + $0x10] sm:$0xff]
  %v3241 = vld [vmem:[%s3237 + $0x18] sm:$0xff]
  %v3242 = vld [vmem:[%s8] sm:$0xff]
  %3243 = vmatprep.subr.mxu0 %v42
  %3244 = vmatpush1.msra.mxu0 %v41
  %3245 = vmatprep.subr.mxu0 %v46
  %3246 = vmatpush1.msra.mxu0 %v45
  %3247 = vmatprep.subr.mxu0 %v50
  %3248 = vmatpush1.msra.mxu0 %v49
  %3249 = vmatprep.subr.mxu0 %v54
  %3250 = vmatpush1.msra.mxu0 %v53
  %3251 = vmatprep.subr.mxu0 %v58
  %3252 = vmatpush1.msra.mxu0 %v57
  %3253 = vmatprep.subr.mxu0 %v62
  %3254 = vmatpush1.msra.mxu0 %v61
  %3255 = vmatprep.subr.mxu0 %v66
  %3256 = vmatpush1.msra.mxu0 %v65
  %3257 = vmatprep.subr.mxu0 %v70
  %3258 = vmatpush1.msra.mxu0 %v69
  %3259 = vmatprep.subr.mxu0 %v74
  %3260 = vmatpush1.msra.mxu0 %v73
  %3261 = vmatprep.subr.mxu0 %v78
  %3262 = vmatpush1.msra.mxu0 %v77
  %3263 = vmatprep.subr.mxu0 %v82
  %3264 = vmatpush1.msra.mxu0 %v81
  %3265 = vmatprep.subr.mxu0 %v86
  %3266 = vmatpush1.msra.mxu0 %v85
  %3267 = vmatprep.subr.mxu0 %v90
  %3268 = vmatpush1.msra.mxu0 %v89
  %3269 = vmatprep.subr.mxu0 %v94
  %3270 = vmatpush1.msra.mxu0 %v93
  %3271 = vmatprep.subr.mxu0 %v98
  %3272 = vmatpush1.msra.mxu0 %v97
  %3273 = vmatprep.subr.mxu0 %v102
  %3274 = vmatpush1.msra.mxu0 %v101
  %3275 = vmatprep.subr.mxu0 0.0
  %3276 = vmatpush1.msra.mxu0 0.0
  %3277 = vmatprep.subr.mxu0 0.0
  %3278 = vmatpush1.msra.mxu0 0.0
  %3279 = vmatprep.subr.mxu0 0.0
  %3280 = vmatpush1.msra.mxu0 0.0
  %3281 = vmatprep.subr.mxu0 0.0
  %3282 = vmatpush1.msra.mxu0 0.0
  %3283 = vmatprep.subr.mxu0 0.0
  %3284 = vmatpush1.msra.mxu0 0.0
  %3285 = vmatprep.subr.mxu0 0.0
  %3286 = vmatpush1.msra.mxu0 0.0
  %3287 = vmatprep.subr.mxu0 0.0
  %3288 = vmatpush1.msra.mxu0 0.0
  %3289 = vmatprep.subr.mxu0 0.0
  %3290 = vmatpush1.msra.mxu0 0.0
  %3291 = vmatprep.subr.mxu0 0.0
  %3292 = vmatpush1.msra.mxu0 0.0
  %3293 = vmatprep.subr.mxu0 0.0
  %3294 = vmatpush1.msra.mxu0 0.0
  %3295 = vmatprep.subr.mxu0 0.0
  %3296 = vmatpush1.msra.mxu0 0.0
  %3297 = vmatprep.subr.mxu0 0.0
  %3298 = vmatpush1.msra.mxu0 0.0
  %3299 = vmatprep.subr.mxu0 0.0
  %3300 = vmatpush1.msra.mxu0 0.0
  %3301 = vmatprep.subr.mxu0 0.0
  %3302 = vmatpush1.msra.mxu0 0.0
  %3303 = vmatprep.subr.mxu0 0.0
  %3304 = vmatpush1.msra.mxu0 0.0
  %3305 = vmatprep.subr.mxu0 0.0
  %3306 = vmatpush1.msra.mxu0 0.0
  %3307 = vmatprep.mubr.f32.mxu0 0.0
  %3308 = vmatmul.mubr.f32.gmra.mrb[0].mxu0 %v3242
  %v3309 = vpop.f32.mrb[0].mxu0
  %v3310 = vadd.f32 0.0, %v3309
  %v3311 = vpop.f32.mrb[0].mxu0
  %v3312 = vadd.f32 0.0, %v3311
  %3313 = vdwg.mxu0
  %3314 = vmatprep.subr.mxu0 %v44
  %3315 = vmatpush1.msra.mxu0 %v43
  %3316 = vmatprep.subr.mxu0 %v48
  %3317 = vmatpush1.msra.mxu0 %v47
  %3318 = vmatprep.subr.mxu0 %v52
  %3319 = vmatpush1.msra.mxu0 %v51
  %3320 = vmatprep.subr.mxu0 %v56
  %3321 = vmatpush1.msra.mxu0 %v55
  %3322 = vmatprep.subr.mxu0 %v60
  %3323 = vmatpush1.msra.mxu0 %v59
  %3324 = vmatprep.subr.mxu0 %v64
  %3325 = vmatpush1.msra.mxu0 %v63
  %3326 = vmatprep.subr.mxu0 %v68
  %3327 = vmatpush1.msra.mxu0 %v67
  %3328 = vmatprep.subr.mxu0 %v72
  %3329 = vmatpush1.msra.mxu0 %v71
  %3330 = vmatprep.subr.mxu0 %v76
  %3331 = vmatpush1.msra.mxu0 %v75
  %3332 = vmatprep.subr.mxu0 %v80
  %3333 = vmatpush1.msra.mxu0 %v79
  %3334 = vmatprep.subr.mxu0 %v84
  %3335 = vmatpush1.msra.mxu0 %v83
  %3336 = vmatprep.subr.mxu0 %v88
  %3337 = vmatpush1.msra.mxu0 %v87
  %3338 = vmatprep.subr.mxu0 %v92
  %3339 = vmatpush1.msra.mxu0 %v91
  %3340 = vmatprep.subr.mxu0 %v96
  %3341 = vmatpush1.msra.mxu0 %v95
  %3342 = vmatprep.subr.mxu0 %v100
  %3343 = vmatpush1.msra.mxu0 %v99
  %3344 = vmatprep.subr.mxu0 %v104
  %3345 = vmatpush1.msra.mxu0 %v103
  %3346 = vmatprep.subr.mxu0 0.0
  %3347 = vmatpush1.msra.mxu0 0.0
  %3348 = vmatprep.subr.mxu0 0.0
  %3349 = vmatpush1.msra.mxu0 0.0
  %3350 = vmatprep.subr.mxu0 0.0
  %3351 = vmatpush1.msra.mxu0 0.0
  %3352 = vmatprep.subr.mxu0 0.0
  %3353 = vmatpush1.msra.mxu0 0.0
  %3354 = vmatprep.subr.mxu0 0.0
  %3355 = vmatpush1.msra.mxu0 0.0
  %3356 = vmatprep.subr.mxu0 0.0
  %3357 = vmatpush1.msra.mxu0 0.0
  %3358 = vmatprep.subr.mxu0 0.0
  %3359 = vmatpush1.msra.mxu0 0.0
  %3360 = vmatprep.subr.mxu0 0.0
  %3361 = vmatpush1.msra.mxu0 0.0
  %3362 = vmatprep.subr.mxu0 0.0
  %3363 = vmatpush1.msra.mxu0 0.0
  %3364 = vmatprep.subr.mxu0 0.0
  %3365 = vmatpush1.msra.mxu0 0.0
  %3366 = vmatprep.subr.mxu0 0.0
  %3367 = vmatpush1.msra.mxu0 0.0
  %3368 = vmatprep.subr.mxu0 0.0
  %3369 = vmatpush1.msra.mxu0 0.0
  %3370 = vmatprep.subr.mxu0 0.0
  %3371 = vmatpush1.msra.mxu0 0.0
  %3372 = vmatprep.subr.mxu0 0.0
  %3373 = vmatpush1.msra.mxu0 0.0
  %3374 = vmatprep.subr.mxu0 0.0
  %3375 = vmatpush1.msra.mxu0 0.0
  %3376 = vmatprep.subr.mxu0 0.0
  %3377 = vmatpush1.msra.mxu0 0.0
  %3378 = vmatprep.mubr.f32.mxu0 0.0
  %3379 = vmatmul.mubr.f32.gmra.mrb[0].mxu0 %v3242
  %v3380 = vpop.f32.mrb[0].mxu0
  %v3381 = vadd.f32 0.0, %v3380
  %v3382 = vpop.f32.mrb[0].mxu0
  %v3383 = vadd.f32 0.0, %v3382
  %3384 = vdwg.mxu0
  %v3385 = vadd.f32 %v3238, %v3310
  %v3386 = vadd.f32 %v3239, %v3312
  %v3387 = vadd.f32 %v3240, %v3381
  %v3388 = vadd.f32 %v3241, %v3383
  %v3389 = vld [vmem:[%s9] sm:$0xff]
  %v3390 = vxor.u32 %v3385, 2147483648
  %v3391 = vxor.u32 %v3386, 2147483648
  %v3392 = vxor.u32 %v3387, 2147483648
  %v3393 = vmul.f32 %v3390, 1.442695
  %v3394 = vpow.pop %v3393
  %v3395 = vmul.f32 %v3391, 1.442695
  %v3396 = vpow.pop %v3395
  %v3397 = vmul.f32 %v3392, 1.442695
  %v3398 = vpow.pop %v3397
  %v3399 = vadd.f32 %v3394, 1.0
  %v3400 = vadd.f32 %v3396, 1.0
  %v3401 = vadd.f32 %v3398, 1.0
  %v3402 = vrcp.pop %v3399
  %v3403 = vmul.f32 1.0, %v3402
  %v3404 = vrcp.pop %v3400
  %v3405 = vmul.f32 1.0, %v3404
  %v3406 = vrcp.pop %v3401
  %v3407 = vmul.f32 1.0, %v3406
  %v3408 = vtanh.pop %v3388
  %v3409 = vmul.f32 %v3405, %v3389
  %v3410 = vmul.f32 %v3403, %v3408
  %v3411 = vadd.f32 %v3409, %v3410
  %v3412 = vtanh.pop %v3411
  %v3413 = vmul.f32 %v3407, %v3412
  %3414 = vst [vmem:[%s8] sm:$0xff] %v3413
  %3415 = vst [vmem:[%s9] sm:$0xff] %v3411
  %v3416 = vld [vmem:[%s412] sm:$0xff]
  %3417 = vmatprep.subr.mxu0 %v170
  %3418 = vmatpush1.msra.mxu0 %v169
  %3419 = vmatprep.subr.mxu0 %v174
  %3420 = vmatpush1.msra.mxu0 %v173
  %3421 = vmatprep.subr.mxu0 %v178
  %3422 = vmatpush1.msra.mxu0 %v177
  %3423 = vmatprep.subr.mxu0 %v182
  %3424 = vmatpush1.msra.mxu0 %v181
  %3425 = vmatprep.subr.mxu0 %v186
  %3426 = vmatpush1.msra.mxu0 %v185
  %3427 = vmatprep.subr.mxu0 %v190
  %3428 = vmatpush1.msra.mxu0 %v189
  %3429 = vmatprep.subr.mxu0 %v194
  %3430 = vmatpush1.msra.mxu0 %v193
  %3431 = vmatprep.subr.mxu0 %v198
  %3432 = vmatpush1.msra.mxu0 %v197
  %3433 = vmatprep.subr.mxu0 %v202
  %3434 = vmatpush1.msra.mxu0 %v201
  %3435 = vmatprep.subr.mxu0 %v206
  %3436 = vmatpush1.msra.mxu0 %v205
  %3437 = vmatprep.subr.mxu0 %v210
  %3438 = vmatpush1.msra.mxu0 %v209
  %3439 = vmatprep.subr.mxu0 %v214
  %3440 = vmatpush1.msra.mxu0 %v213
  %3441 = vmatprep.subr.mxu0 %v218
  %3442 = vmatpush1.msra.mxu0 %v217
  %3443 = vmatprep.subr.mxu0 %v222
  %3444 = vmatpush1.msra.mxu0 %v221
  %3445 = vmatprep.subr.mxu0 %v226
  %3446 = vmatpush1.msra.mxu0 %v225
  %3447 = vmatprep.subr.mxu0 %v230
  %3448 = vmatpush1.msra.mxu0 %v229
  %3449 = vmatprep.subr.mxu0 0.0
  %3450 = vmatpush1.msra.mxu0 0.0
  %3451 = vmatprep.subr.mxu0 0.0
  %3452 = vmatpush1.msra.mxu0 0.0
  %3453 = vmatprep.subr.mxu0 0.0
  %3454 = vmatpush1.msra.mxu0 0.0
  %3455 = vmatprep.subr.mxu0 0.0
  %3456 = vmatpush1.msra.mxu0 0.0
  %3457 = vmatprep.subr.mxu0 0.0
  %3458 = vmatpush1.msra.mxu0 0.0
  %3459 = vmatprep.subr.mxu0 0.0
  %3460 = vmatpush1.msra.mxu0 0.0
  %3461 = vmatprep.subr.mxu0 0.0
  %3462 = vmatpush1.msra.mxu0 0.0
  %3463 = vmatprep.subr.mxu0 0.0
  %3464 = vmatpush1.msra.mxu0 0.0
  %3465 = vmatprep.subr.mxu0 0.0
  %3466 = vmatpush1.msra.mxu0 0.0
  %3467 = vmatprep.subr.mxu0 0.0
  %3468 = vmatpush1.msra.mxu0 0.0
  %3469 = vmatprep.subr.mxu0 0.0
  %3470 = vmatpush1.msra.mxu0 0.0
  %3471 = vmatprep.subr.mxu0 0.0
  %3472 = vmatpush1.msra.mxu0 0.0
  %3473 = vmatprep.subr.mxu0 0.0
  %3474 = vmatpush1.msra.mxu0 0.0
  %3475 = vmatprep.subr.mxu0 0.0
  %3476 = vmatpush1.msra.mxu0 0.0
  %3477 = vmatprep.subr.mxu0 0.0
  %3478 = vmatpush1.msra.mxu0 0.0
  %3479 = vmatprep.subr.mxu0 0.0
  %3480 = vmatpush1.msra.mxu0 0.0
  %3481 = vmatprep.mubr.f32.mxu0 0.0
  %3482 = vmatmul.mubr.f32.gmra.mrb[0].mxu0 %v3416
  %v3483 = vpop.f32.mrb[0].mxu0
  %v3484 = vadd.f32 0.0, %v3483
  %v3485 = vpop.f32.mrb[0].mxu0
  %v3486 = vadd.f32 0.0, %v3485
  %3487 = vdwg.mxu0
  %3488 = vmatprep.subr.mxu0 %v172
  %3489 = vmatpush1.msra.mxu0 %v171
  %3490 = vmatprep.subr.mxu0 %v176
  %3491 = vmatpush1.msra.mxu0 %v175
  %3492 = vmatprep.subr.mxu0 %v180
  %3493 = vmatpush1.msra.mxu0 %v179
  %3494 = vmatprep.subr.mxu0 %v184
  %3495 = vmatpush1.msra.mxu0 %v183
  %3496 = vmatprep.subr.mxu0 %v188
  %3497 = vmatpush1.msra.mxu0 %v187
  %3498 = vmatprep.subr.mxu0 %v192
  %3499 = vmatpush1.msra.mxu0 %v191
  %3500 = vmatprep.subr.mxu0 %v196
  %3501 = vmatpush1.msra.mxu0 %v195
  %3502 = vmatprep.subr.mxu0 %v200
  %3503 = vmatpush1.msra.mxu0 %v199
  %3504 = vmatprep.subr.mxu0 %v204
  %3505 = vmatpush1.msra.mxu0 %v203
  %3506 = vmatprep.subr.mxu0 %v208
  %3507 = vmatpush1.msra.mxu0 %v207
  %3508 = vmatprep.subr.mxu0 %v212
  %3509 = vmatpush1.msra.mxu0 %v211
  %3510 = vmatprep.subr.mxu0 %v216
  %3511 = vmatpush1.msra.mxu0 %v215
  %3512 = vmatprep.subr.mxu0 %v220
  %3513 = vmatpush1.msra.mxu0 %v219
  %3514 = vmatprep.subr.mxu0 %v224
  %3515 = vmatpush1.msra.mxu0 %v223
  %3516 = vmatprep.subr.mxu0 %v228
  %3517 = vmatpush1.msra.mxu0 %v227
  %3518 = vmatprep.subr.mxu0 %v232
  %3519 = vmatpush1.msra.mxu0 %v231
  %3520 = vmatprep.subr.mxu0 0.0
  %3521 = vmatpush1.msra.mxu0 0.0
  %3522 = vmatprep.subr.mxu0 0.0
  %3523 = vmatpush1.msra.mxu0 0.0
  %3524 = vmatprep.subr.mxu0 0.0
  %3525 = vmatpush1.msra.mxu0 0.0
  %3526 = vmatprep.subr.mxu0 0.0
  %3527 = vmatpush1.msra.mxu0 0.0
  %3528 = vmatprep.subr.mxu0 0.0
  %3529 = vmatpush1.msra.mxu0 0.0
  %3530 = vmatprep.subr.mxu0 0.0
  %3531 = vmatpush1.msra.mxu0 0.0
  %3532 = vmatprep.subr.mxu0 0.0
  %3533 = vmatpush1.msra.mxu0 0.0
  %3534 = vmatprep.subr.mxu0 0.0
  %3535 = vmatpush1.msra.mxu0 0.0
  %3536 = vmatprep.subr.mxu0 0.0
  %3537 = vmatpush1.msra.mxu0 0.0
  %3538 = vmatprep.subr.mxu0 0.0
  %3539 = vmatpush1.msra.mxu0 0.0
  %3540 = vmatprep.subr.mxu0 0.0
  %3541 = vmatpush1.msra.mxu0 0.0
  %3542 = vmatprep.subr.mxu0 0.0
  %3543 = vmatpush1.msra.mxu0 0.0
  %3544 = vmatprep.subr.mxu0 0.0
  %3545 = vmatpush1.msra.mxu0 0.0
  %3546 = vmatprep.subr.mxu0 0.0
  %3547 = vmatpush1.msra.mxu0 0.0
  %3548 = vmatprep.subr.mxu0 0.0
  %3549 = vmatpush1.msra.mxu0 0.0
  %3550 = vmatprep.subr.mxu0 0.0
  %3551 = vmatpush1.msra.mxu0 0.0
  %3552 = vmatprep.mubr.f32.mxu0 0.0
  %3553 = vmatmul.mubr.f32.gmra.mrb[0].mxu0 %v3416
  %v3554 = vpop.f32.mrb[0].mxu0
  %v3555 = vadd.f32 0.0, %v3554
  %v3556 = vpop.f32.mrb[0].mxu0
  %v3557 = vadd.f32 0.0, %v3556
  %3558 = vdwg.mxu0
  %3559 = vmatprep.subr.mxu0 %v106
  %3560 = vmatpush1.msra.mxu0 %v105
  %3561 = vmatprep.subr.mxu0 %v110
  %3562 = vmatpush1.msra.mxu0 %v109
  %3563 = vmatprep.subr.mxu0 %v114
  %3564 = vmatpush1.msra.mxu0 %v113
  %3565 = vmatprep.subr.mxu0 %v118
  %3566 = vmatpush1.msra.mxu0 %v117
  %3567 = vmatprep.subr.mxu0 %v122
  %3568 = vmatpush1.msra.mxu0 %v121
  %3569 = vmatprep.subr.mxu0 %v126
  %3570 = vmatpush1.msra.mxu0 %v125
  %3571 = vmatprep.subr.mxu0 %v130
  %3572 = vmatpush1.msra.mxu0 %v129
  %3573 = vmatprep.subr.mxu0 %v134
  %3574 = vmatpush1.msra.mxu0 %v133
  %3575 = vmatprep.subr.mxu0 %v138
  %3576 = vmatpush1.msra.mxu0 %v137
  %3577 = vmatprep.subr.mxu0 %v142
  %3578 = vmatpush1.msra.mxu0 %v141
  %3579 = vmatprep.subr.mxu0 %v146
  %3580 = vmatpush1.msra.mxu0 %v145
  %3581 = vmatprep.subr.mxu0 %v150
  %3582 = vmatpush1.msra.mxu0 %v149
  %3583 = vmatprep.subr.mxu0 %v154
  %3584 = vmatpush1.msra.mxu0 %v153
  %3585 = vmatprep.subr.mxu0 %v158
  %3586 = vmatpush1.msra.mxu0 %v157
  %3587 = vmatprep.subr.mxu0 %v162
  %3588 = vmatpush1.msra.mxu0 %v161
  %3589 = vmatprep.subr.mxu0 %v166
  %3590 = vmatpush1.msra.mxu0 %v165
  %3591 = vmatprep.subr.mxu0 0.0
  %3592 = vmatpush1.msra.mxu0 0.0
  %3593 = vmatprep.subr.mxu0 0.0
  %3594 = vmatpush1.msra.mxu0 0.0
  %3595 = vmatprep.subr.mxu0 0.0
  %3596 = vmatpush1.msra.mxu0 0.0
  %3597 = vmatprep.subr.mxu0 0.0
  %3598 = vmatpush1.msra.mxu0 0.0
  %3599 = vmatprep.subr.mxu0 0.0
  %3600 = vmatpush1.msra.mxu0 0.0
  %3601 = vmatprep.subr.mxu0 0.0
  %3602 = vmatpush1.msra.mxu0 0.0
  %3603 = vmatprep.subr.mxu0 0.0
  %3604 = vmatpush1.msra.mxu0 0.0
  %3605 = vmatprep.subr.mxu0 0.0
  %3606 = vmatpush1.msra.mxu0 0.0
  %3607 = vmatprep.subr.mxu0 0.0
  %3608 = vmatpush1.msra.mxu0 0.0
  %3609 = vmatprep.subr.mxu0 0.0
  %3610 = vmatpush1.msra.mxu0 0.0
  %3611 = vmatprep.subr.mxu0 0.0
  %3612 = vmatpush1.msra.mxu0 0.0
  %3613 = vmatprep.subr.mxu0 0.0
  %3614 = vmatpush1.msra.mxu0 0.0
  %3615 = vmatprep.subr.mxu0 0.0
  %3616 = vmatpush1.msra.mxu0 0.0
  %3617 = vmatprep.subr.mxu0 0.0
  %3618 = vmatpush1.msra.mxu0 0.0
  %3619 = vmatprep.subr.mxu0 0.0
  %3620 = vmatpush1.msra.mxu0 0.0
  %3621 = vmatprep.subr.mxu0 0.0
  %3622 = vmatpush1.msra.mxu0 0.0
  %3623 = vmatprep.mubr.f32.mxu0 0.0
  %3624 = vmatmul.mubr.f32.gmra.mrb[0].mxu0 %v3413
  %v3625 = vpop.f32.mrb[0].mxu0
  %v3626 = vadd.f32 %v3484, %v3625
  %v3627 = vpop.f32.mrb[0].mxu0
  %v3628 = vadd.f32 %v3486, %v3627
  %3629 = vdwg.mxu0
  %3630 = vmatprep.subr.mxu0 %v108
  %3631 = vmatpush1.msra.mxu0 %v107
  %3632 = vmatprep.subr.mxu0 %v112
  %3633 = vmatpush1.msra.mxu0 %v111
  %3634 = vmatprep.subr.mxu0 %v116
  %3635 = vmatpush1.msra.mxu0 %v115
  %3636 = vmatprep.subr.mxu0 %v120
  %3637 = vmatpush1.msra.mxu0 %v119
  %3638 = vmatprep.subr.mxu0 %v124
  %3639 = vmatpush1.msra.mxu0 %v123
  %3640 = vmatprep.subr.mxu0 %v128
  %3641 = vmatpush1.msra.mxu0 %v127
  %3642 = vmatprep.subr.mxu0 %v132
  %3643 = vmatpush1.msra.mxu0 %v131
  %3644 = vmatprep.subr.mxu0 %v136
  %3645 = vmatpush1.msra.mxu0 %v135
  %3646 = vmatprep.subr.mxu0 %v140
  %3647 = vmatpush1.msra.mxu0 %v139
  %3648 = vmatprep.subr.mxu0 %v144
  %3649 = vmatpush1.msra.mxu0 %v143
  %3650 = vmatprep.subr.mxu0 %v148
  %3651 = vmatpush1.msra.mxu0 %v147
  %3652 = vmatprep.subr.mxu0 %v152
  %3653 = vmatpush1.msra.mxu0 %v151
  %3654 = vmatprep.subr.mxu0 %v156
  %3655 = vmatpush1.msra.mxu0 %v155
  %3656 = vmatprep.subr.mxu0 %v160
  %3657 = vmatpush1.msra.mxu0 %v159
  %3658 = vmatprep.subr.mxu0 %v164
  %3659 = vmatpush1.msra.mxu0 %v163
  %3660 = vmatprep.subr.mxu0 %v168
  %3661 = vmatpush1.msra.mxu0 %v167
  %3662 = vmatprep.subr.mxu0 0.0
  %3663 = vmatpush1.msra.mxu0 0.0
  %3664 = vmatprep.subr.mxu0 0.0
  %3665 = vmatpush1.msra.mxu0 0.0
  %3666 = vmatprep.subr.mxu0 0.0
  %3667 = vmatpush1.msra.mxu0 0.0
  %3668 = vmatprep.subr.mxu0 0.0
  %3669 = vmatpush1.msra.mxu0 0.0
  %3670 = vmatprep.subr.mxu0 0.0
  %3671 = vmatpush1.msra.mxu0 0.0
  %3672 = vmatprep.subr.mxu0 0.0
  %3673 = vmatpush1.msra.mxu0 0.0
  %3674 = vmatprep.subr.mxu0 0.0
  %3675 = vmatpush1.msra.mxu0 0.0
  %3676 = vmatprep.subr.mxu0 0.0
  %3677 = vmatpush1.msra.mxu0 0.0
  %3678 = vmatprep.subr.mxu0 0.0
  %3679 = vmatpush1.msra.mxu0 0.0
  %3680 = vmatprep.subr.mxu0 0.0
  %3681 = vmatpush1.msra.mxu0 0.0
  %3682 = vmatprep.subr.mxu0 0.0
  %3683 = vmatpush1.msra.mxu0 0.0
  %3684 = vmatprep.subr.mxu0 0.0
  %3685 = vmatpush1.msra.mxu0 0.0
  %3686 = vmatprep.subr.mxu0 0.0
  %3687 = vmatpush1.msra.mxu0 0.0
  %3688 = vmatprep.subr.mxu0 0.0
  %3689 = vmatpush1.msra.mxu0 0.0
  %3690 = vmatprep.subr.mxu0 0.0
  %3691 = vmatpush1.msra.mxu0 0.0
  %3692 = vmatprep.subr.mxu0 0.0
  %3693 = vmatpush1.msra.mxu0 0.0
  %3694 = vmatprep.mubr.f32.mxu0 0.0
  %3695 = vmatmul.mubr.f32.gmra.mrb[0].mxu0 %v3413
  %v3696 = vpop.f32.mrb[0].mxu0
  %v3697 = vadd.f32 %v3555, %v3696
  %v3698 = vpop.f32.mrb[0].mxu0
  %v3699 = vadd.f32 %v3557, %v3698
  %3700 = vdwg.mxu0
  %v3701 = vadd.f32 %v3626, %v702
  %v3702 = vadd.f32 %v3628, %v706
  %v3703 = vadd.f32 %v3697, %v710
  %v3704 = vadd.f32 %v3699, %v714
  %v3705 = vld [vmem:[%s723] sm:$0xff]
  %v3706 = vxor.u32 %v3701, 2147483648
  %v3707 = vxor.u32 %v3702, 2147483648
  %v3708 = vxor.u32 %v3703, 2147483648
  %v3709 = vmul.f32 %v3706, 1.442695
  %v3710 = vpow.pop %v3709
  %v3711 = vmul.f32 %v3707, 1.442695
  %v3712 = vpow.pop %v3711
  %v3713 = vmul.f32 %v3708, 1.442695
  %v3714 = vpow.pop %v3713
  %v3715 = vadd.f32 %v3710, 1.0
  %v3716 = vadd.f32 %v3712, 1.0
  %v3717 = vadd.f32 %v3714, 1.0
  %v3718 = vrcp.pop %v3715
  %v3719 = vmul.f32 1.0, %v3718
  %v3720 = vrcp.pop %v3716
  %v3721 = vmul.f32 1.0, %v3720
  %v3722 = vrcp.pop %v3717
  %v3723 = vmul.f32 1.0, %v3722
  %v3724 = vtanh.pop %v3704
  %v3725 = vmul.f32 %v3721, %v3705
  %v3726 = vmul.f32 %v3719, %v3724
  %v3727 = vadd.f32 %v3725, %v3726
  %v3728 = vtanh.pop %v3727
  %v3729 = vmul.f32 %v3723, %v3728
  %3730 = vst [vmem:[%s412] sm:$0xff] %v3729
  %3731 = vst [vmem:[%s723] sm:$0xff] %v3727
  %s3732 = scalar_lea.vmem %s7, 48
  %3733 = vst [vmem:[%s3732] sm:$0xff] %v3729
  %s3734 = scalar_lea.vmem %s0, 224
  %v3735 = vld [vmem:[%s3734] sm:$0xff]
  %v3736 = vld [vmem:[%s3734 + $0x8] sm:$0xff]
  %v3737 = vld [vmem:[%s3734 + $0x10] sm:$0xff]
  %v3738 = vld [vmem:[%s3734 + $0x18] sm:$0xff]
  %v3739 = vld [vmem:[%s8] sm:$0xff]
  %3740 = vmatprep.subr.mxu0 %v42
  %3741 = vmatpush1.msra.mxu0 %v41
  %3742 = vmatprep.subr.mxu0 %v46
  %3743 = vmatpush1.msra.mxu0 %v45
  %3744 = vmatprep.subr.mxu0 %v50
  %3745 = vmatpush1.msra.mxu0 %v49
  %3746 = vmatprep.subr.mxu0 %v54
  %3747 = vmatpush1.msra.mxu0 %v53
  %3748 = vmatprep.subr.mxu0 %v58
  %3749 = vmatpush1.msra.mxu0 %v57
  %3750 = vmatprep.subr.mxu0 %v62
  %3751 = vmatpush1.msra.mxu0 %v61
  %3752 = vmatprep.subr.mxu0 %v66
  %3753 = vmatpush1.msra.mxu0 %v65
  %3754 = vmatprep.subr.mxu0 %v70
  %3755 = vmatpush1.msra.mxu0 %v69
  %3756 = vmatprep.subr.mxu0 %v74
  %3757 = vmatpush1.msra.mxu0 %v73
  %3758 = vmatprep.subr.mxu0 %v78
  %3759 = vmatpush1.msra.mxu0 %v77
  %3760 = vmatprep.subr.mxu0 %v82
  %3761 = vmatpush1.msra.mxu0 %v81
  %3762 = vmatprep.subr.mxu0 %v86
  %3763 = vmatpush1.msra.mxu0 %v85
  %3764 = vmatprep.subr.mxu0 %v90
  %3765 = vmatpush1.msra.mxu0 %v89
  %3766 = vmatprep.subr.mxu0 %v94
  %3767 = vmatpush1.msra.mxu0 %v93
  %3768 = vmatprep.subr.mxu0 %v98
  %3769 = vmatpush1.msra.mxu0 %v97
  %3770 = vmatprep.subr.mxu0 %v102
  %3771 = vmatpush1.msra.mxu0 %v101
  %3772 = vmatprep.subr.mxu0 0.0
  %3773 = vmatpush1.msra.mxu0 0.0
  %3774 = vmatprep.subr.mxu0 0.0
  %3775 = vmatpush1.msra.mxu0 0.0
  %3776 = vmatprep.subr.mxu0 0.0
  %3777 = vmatpush1.msra.mxu0 0.0
  %3778 = vmatprep.subr.mxu0 0.0
  %3779 = vmatpush1.msra.mxu0 0.0
  %3780 = vmatprep.subr.mxu0 0.0
  %3781 = vmatpush1.msra.mxu0 0.0
  %3782 = vmatprep.subr.mxu0 0.0
  %3783 = vmatpush1.msra.mxu0 0.0
  %3784 = vmatprep.subr.mxu0 0.0
  %3785 = vmatpush1.msra.mxu0 0.0
  %3786 = vmatprep.subr.mxu0 0.0
  %3787 = vmatpush1.msra.mxu0 0.0
  %3788 = vmatprep.subr.mxu0 0.0
  %3789 = vmatpush1.msra.mxu0 0.0
  %3790 = vmatprep.subr.mxu0 0.0
  %3791 = vmatpush1.msra.mxu0 0.0
  %3792 = vmatprep.subr.mxu0 0.0
  %3793 = vmatpush1.msra.mxu0 0.0
  %3794 = vmatprep.subr.mxu0 0.0
  %3795 = vmatpush1.msra.mxu0 0.0
  %3796 = vmatprep.subr.mxu0 0.0
  %3797 = vmatpush1.msra.mxu0 0.0
  %3798 = vmatprep.subr.mxu0 0.0
  %3799 = vmatpush1.msra.mxu0 0.0
  %3800 = vmatprep.subr.mxu0 0.0
  %3801 = vmatpush1.msra.mxu0 0.0
  %3802 = vmatprep.subr.mxu0 0.0
  %3803 = vmatpush1.msra.mxu0 0.0
  %3804 = vmatprep.mubr.f32.mxu0 0.0
  %3805 = vmatmul.mubr.f32.gmra.mrb[0].mxu0 %v3739
  %v3806 = vpop.f32.mrb[0].mxu0
  %v3807 = vadd.f32 0.0, %v3806
  %v3808 = vpop.f32.mrb[0].mxu0
  %v3809 = vadd.f32 0.0, %v3808
  %3810 = vdwg.mxu0
  %3811 = vmatprep.subr.mxu0 %v44
  %3812 = vmatpush1.msra.mxu0 %v43
  %3813 = vmatprep.subr.mxu0 %v48
  %3814 = vmatpush1.msra.mxu0 %v47
  %3815 = vmatprep.subr.mxu0 %v52
  %3816 = vmatpush1.msra.mxu0 %v51
  %3817 = vmatprep.subr.mxu0 %v56
  %3818 = vmatpush1.msra.mxu0 %v55
  %3819 = vmatprep.subr.mxu0 %v60
  %3820 = vmatpush1.msra.mxu0 %v59
  %3821 = vmatprep.subr.mxu0 %v64
  %3822 = vmatpush1.msra.mxu0 %v63
  %3823 = vmatprep.subr.mxu0 %v68
  %3824 = vmatpush1.msra.mxu0 %v67
  %3825 = vmatprep.subr.mxu0 %v72
  %3826 = vmatpush1.msra.mxu0 %v71
  %3827 = vmatprep.subr.mxu0 %v76
  %3828 = vmatpush1.msra.mxu0 %v75
  %3829 = vmatprep.subr.mxu0 %v80
  %3830 = vmatpush1.msra.mxu0 %v79
  %3831 = vmatprep.subr.mxu0 %v84
  %3832 = vmatpush1.msra.mxu0 %v83
  %3833 = vmatprep.subr.mxu0 %v88
  %3834 = vmatpush1.msra.mxu0 %v87
  %3835 = vmatprep.subr.mxu0 %v92
  %3836 = vmatpush1.msra.mxu0 %v91
  %3837 = vmatprep.subr.mxu0 %v96
  %3838 = vmatpush1.msra.mxu0 %v95
  %3839 = vmatprep.subr.mxu0 %v100
  %3840 = vmatpush1.msra.mxu0 %v99
  %3841 = vmatprep.subr.mxu0 %v104
  %3842 = vmatpush1.msra.mxu0 %v103
  %3843 = vmatprep.subr.mxu0 0.0
  %3844 = vmatpush1.msra.mxu0 0.0
  %3845 = vmatprep.subr.mxu0 0.0
  %3846 = vmatpush1.msra.mxu0 0.0
  %3847 = vmatprep.subr.mxu0 0.0
  %3848 = vmatpush1.msra.mxu0 0.0
  %3849 = vmatprep.subr.mxu0 0.0
  %3850 = vmatpush1.msra.mxu0 0.0
  %3851 = vmatprep.subr.mxu0 0.0
  %3852 = vmatpush1.msra.mxu0 0.0
  %3853 = vmatprep.subr.mxu0 0.0
  %3854 = vmatpush1.msra.mxu0 0.0
  %3855 = vmatprep.subr.mxu0 0.0
  %3856 = vmatpush1.msra.mxu0 0.0
  %3857 = vmatprep.subr.mxu0 0.0
  %3858 = vmatpush1.msra.mxu0 0.0
  %3859 = vmatprep.subr.mxu0 0.0
  %3860 = vmatpush1.msra.mxu0 0.0
  %3861 = vmatprep.subr.mxu0 0.0
  %3862 = vmatpush1.msra.mxu0 0.0
  %3863 = vmatprep.subr.mxu0 0.0
  %3864 = vmatpush1.msra.mxu0 0.0
  %3865 = vmatprep.subr.mxu0 0.0
  %3866 = vmatpush1.msra.mxu0 0.0
  %3867 = vmatprep.subr.mxu0 0.0
  %3868 = vmatpush1.msra.mxu0 0.0
  %3869 = vmatprep.subr.mxu0 0.0
  %3870 = vmatpush1.msra.mxu0 0.0
  %3871 = vmatprep.subr.mxu0 0.0
  %3872 = vmatpush1.msra.mxu0 0.0
  %3873 = vmatprep.subr.mxu0 0.0
  %3874 = vmatpush1.msra.mxu0 0.0
  %3875 = vmatprep.mubr.f32.mxu0 0.0
  %3876 = vmatmul.mubr.f32.gmra.mrb[0].mxu0 %v3739
  %v3877 = vpop.f32.mrb[0].mxu0
  %v3878 = vadd.f32 0.0, %v3877
  %v3879 = vpop.f32.mrb[0].mxu0
  %v3880 = vadd.f32 0.0, %v3879
  %3881 = vdwg.mxu0
  %v3882 = vadd.f32 %v3735, %v3807
  %v3883 = vadd.f32 %v3736, %v3809
  %v3884 = vadd.f32 %v3737, %v3878
  %v3885 = vadd.f32 %v3738, %v3880
  %v3886 = vld [vmem:[%s9] sm:$0xff]
  %v3887 = vxor.u32 %v3882, 2147483648
  %v3888 = vxor.u32 %v3883, 2147483648
  %v3889 = vxor.u32 %v3884, 2147483648
  %v3890 = vmul.f32 %v3887, 1.442695
  %v3891 = vpow.pop %v3890
  %v3892 = vmul.f32 %v3888, 1.442695
  %v3893 = vpow.pop %v3892
  %v3894 = vmul.f32 %v3889, 1.442695
  %v3895 = vpow.pop %v3894
  %v3896 = vadd.f32 %v3891, 1.0
  %v3897 = vadd.f32 %v3893, 1.0
  %v3898 = vadd.f32 %v3895, 1.0
  %v3899 = vrcp.pop %v3896
  %v3900 = vmul.f32 1.0, %v3899
  %v3901 = vrcp.pop %v3897
  %v3902 = vmul.f32 1.0, %v3901
  %v3903 = vrcp.pop %v3898
  %v3904 = vmul.f32 1.0, %v3903
  %v3905 = vtanh.pop %v3885
  %v3906 = vmul.f32 %v3902, %v3886
  %v3907 = vmul.f32 %v3900, %v3905
  %v3908 = vadd.f32 %v3906, %v3907
  %v3909 = vtanh.pop %v3908
  %v3910 = vmul.f32 %v3904, %v3909
  %3911 = vst [vmem:[%s8] sm:$0xff] %v3910
  %3912 = vst [vmem:[%s9] sm:$0xff] %v3908
  %v3913 = vld [vmem:[%s412] sm:$0xff]
  %3914 = vmatprep.subr.mxu0 %v170
  %3915 = vmatpush1.msra.mxu0 %v169
  %3916 = vmatprep.subr.mxu0 %v174
  %3917 = vmatpush1.msra.mxu0 %v173
  %3918 = vmatprep.subr.mxu0 %v178
  %3919 = vmatpush1.msra.mxu0 %v177
  %3920 = vmatprep.subr.mxu0 %v182
  %3921 = vmatpush1.msra.mxu0 %v181
  %3922 = vmatprep.subr.mxu0 %v186
  %3923 = vmatpush1.msra.mxu0 %v185
  %3924 = vmatprep.subr.mxu0 %v190
  %3925 = vmatpush1.msra.mxu0 %v189
  %3926 = vmatprep.subr.mxu0 %v194
  %3927 = vmatpush1.msra.mxu0 %v193
  %3928 = vmatprep.subr.mxu0 %v198
  %3929 = vmatpush1.msra.mxu0 %v197
  %3930 = vmatprep.subr.mxu0 %v202
  %3931 = vmatpush1.msra.mxu0 %v201
  %3932 = vmatprep.subr.mxu0 %v206
  %3933 = vmatpush1.msra.mxu0 %v205
  %3934 = vmatprep.subr.mxu0 %v210
  %3935 = vmatpush1.msra.mxu0 %v209
  %3936 = vmatprep.subr.mxu0 %v214
  %3937 = vmatpush1.msra.mxu0 %v213
  %3938 = vmatprep.subr.mxu0 %v218
  %3939 = vmatpush1.msra.mxu0 %v217
  %3940 = vmatprep.subr.mxu0 %v222
  %3941 = vmatpush1.msra.mxu0 %v221
  %3942 = vmatprep.subr.mxu0 %v226
  %3943 = vmatpush1.msra.mxu0 %v225
  %3944 = vmatprep.subr.mxu0 %v230
  %3945 = vmatpush1.msra.mxu0 %v229
  %3946 = vmatprep.subr.mxu0 0.0
  %3947 = vmatpush1.msra.mxu0 0.0
  %3948 = vmatprep.subr.mxu0 0.0
  %3949 = vmatpush1.msra.mxu0 0.0
  %3950 = vmatprep.subr.mxu0 0.0
  %3951 = vmatpush1.msra.mxu0 0.0
  %3952 = vmatprep.subr.mxu0 0.0
  %3953 = vmatpush1.msra.mxu0 0.0
  %3954 = vmatprep.subr.mxu0 0.0
  %3955 = vmatpush1.msra.mxu0 0.0
  %3956 = vmatprep.subr.mxu0 0.0
  %3957 = vmatpush1.msra.mxu0 0.0
  %3958 = vmatprep.subr.mxu0 0.0
  %3959 = vmatpush1.msra.mxu0 0.0
  %3960 = vmatprep.subr.mxu0 0.0
  %3961 = vmatpush1.msra.mxu0 0.0
  %3962 = vmatprep.subr.mxu0 0.0
  %3963 = vmatpush1.msra.mxu0 0.0
  %3964 = vmatprep.subr.mxu0 0.0
  %3965 = vmatpush1.msra.mxu0 0.0
  %3966 = vmatprep.subr.mxu0 0.0
  %3967 = vmatpush1.msra.mxu0 0.0
  %3968 = vmatprep.subr.mxu0 0.0
  %3969 = vmatpush1.msra.mxu0 0.0
  %3970 = vmatprep.subr.mxu0 0.0
  %3971 = vmatpush1.msra.mxu0 0.0
  %3972 = vmatprep.subr.mxu0 0.0
  %3973 = vmatpush1.msra.mxu0 0.0
  %3974 = vmatprep.subr.mxu0 0.0
  %3975 = vmatpush1.msra.mxu0 0.0
  %3976 = vmatprep.subr.mxu0 0.0
  %3977 = vmatpush1.msra.mxu0 0.0
  %3978 = vmatprep.mubr.f32.mxu0 0.0
  %3979 = vmatmul.mubr.f32.gmra.mrb[0].mxu0 %v3913
  %v3980 = vpop.f32.mrb[0].mxu0
  %v3981 = vadd.f32 0.0, %v3980
  %v3982 = vpop.f32.mrb[0].mxu0
  %v3983 = vadd.f32 0.0, %v3982
  %3984 = vdwg.mxu0
  %3985 = vmatprep.subr.mxu0 %v172
  %3986 = vmatpush1.msra.mxu0 %v171
  %3987 = vmatprep.subr.mxu0 %v176
  %3988 = vmatpush1.msra.mxu0 %v175
  %3989 = vmatprep.subr.mxu0 %v180
  %3990 = vmatpush1.msra.mxu0 %v179
  %3991 = vmatprep.subr.mxu0 %v184
  %3992 = vmatpush1.msra.mxu0 %v183
  %3993 = vmatprep.subr.mxu0 %v188
  %3994 = vmatpush1.msra.mxu0 %v187
  %3995 = vmatprep.subr.mxu0 %v192
  %3996 = vmatpush1.msra.mxu0 %v191
  %3997 = vmatprep.subr.mxu0 %v196
  %3998 = vmatpush1.msra.mxu0 %v195
  %3999 = vmatprep.subr.mxu0 %v200
  %4000 = vmatpush1.msra.mxu0 %v199
  %4001 = vmatprep.subr.mxu0 %v204
  %4002 = vmatpush1.msra.mxu0 %v203
  %4003 = vmatprep.subr.mxu0 %v208
  %4004 = vmatpush1.msra.mxu0 %v207
  %4005 = vmatprep.subr.mxu0 %v212
  %4006 = vmatpush1.msra.mxu0 %v211
  %4007 = vmatprep.subr.mxu0 %v216
  %4008 = vmatpush1.msra.mxu0 %v215
  %4009 = vmatprep.subr.mxu0 %v220
  %4010 = vmatpush1.msra.mxu0 %v219
  %4011 = vmatprep.subr.mxu0 %v224
  %4012 = vmatpush1.msra.mxu0 %v223
  %4013 = vmatprep.subr.mxu0 %v228
  %4014 = vmatpush1.msra.mxu0 %v227
  %4015 = vmatprep.subr.mxu0 %v232
  %4016 = vmatpush1.msra.mxu0 %v231
  %4017 = vmatprep.subr.mxu0 0.0
  %4018 = vmatpush1.msra.mxu0 0.0
  %4019 = vmatprep.subr.mxu0 0.0
  %4020 = vmatpush1.msra.mxu0 0.0
  %4021 = vmatprep.subr.mxu0 0.0
  %4022 = vmatpush1.msra.mxu0 0.0
  %4023 = vmatprep.subr.mxu0 0.0
  %4024 = vmatpush1.msra.mxu0 0.0
  %4025 = vmatprep.subr.mxu0 0.0
  %4026 = vmatpush1.msra.mxu0 0.0
  %4027 = vmatprep.subr.mxu0 0.0
  %4028 = vmatpush1.msra.mxu0 0.0
  %4029 = vmatprep.subr.mxu0 0.0
  %4030 = vmatpush1.msra.mxu0 0.0
  %4031 = vmatprep.subr.mxu0 0.0
  %4032 = vmatpush1.msra.mxu0 0.0
  %4033 = vmatprep.subr.mxu0 0.0
  %4034 = vmatpush1.msra.mxu0 0.0
  %4035 = vmatprep.subr.mxu0 0.0
  %4036 = vmatpush1.msra.mxu0 0.0
  %4037 = vmatprep.subr.mxu0 0.0
  %4038 = vmatpush1.msra.mxu0 0.0
  %4039 = vmatprep.subr.mxu0 0.0
  %4040 = vmatpush1.msra.mxu0 0.0
  %4041 = vmatprep.subr.mxu0 0.0
  %4042 = vmatpush1.msra.mxu0 0.0
  %4043 = vmatprep.subr.mxu0 0.0
  %4044 = vmatpush1.msra.mxu0 0.0
  %4045 = vmatprep.subr.mxu0 0.0
  %4046 = vmatpush1.msra.mxu0 0.0
  %4047 = vmatprep.subr.mxu0 0.0
  %4048 = vmatpush1.msra.mxu0 0.0
  %4049 = vmatprep.mubr.f32.mxu0 0.0
  %4050 = vmatmul.mubr.f32.gmra.mrb[0].mxu0 %v3913
  %v4051 = vpop.f32.mrb[0].mxu0
  %v4052 = vadd.f32 0.0, %v4051
  %v4053 = vpop.f32.mrb[0].mxu0
  %v4054 = vadd.f32 0.0, %v4053
  %4055 = vdwg.mxu0
  %4056 = vmatprep.subr.mxu0 %v106
  %4057 = vmatpush1.msra.mxu0 %v105
  %4058 = vmatprep.subr.mxu0 %v110
  %4059 = vmatpush1.msra.mxu0 %v109
  %4060 = vmatprep.subr.mxu0 %v114
  %4061 = vmatpush1.msra.mxu0 %v113
  %4062 = vmatprep.subr.mxu0 %v118
  %4063 = vmatpush1.msra.mxu0 %v117
  %4064 = vmatprep.subr.mxu0 %v122
  %4065 = vmatpush1.msra.mxu0 %v121
  %4066 = vmatprep.subr.mxu0 %v126
  %4067 = vmatpush1.msra.mxu0 %v125
  %4068 = vmatprep.subr.mxu0 %v130
  %4069 = vmatpush1.msra.mxu0 %v129
  %4070 = vmatprep.subr.mxu0 %v134
  %4071 = vmatpush1.msra.mxu0 %v133
  %4072 = vmatprep.subr.mxu0 %v138
  %4073 = vmatpush1.msra.mxu0 %v137
  %4074 = vmatprep.subr.mxu0 %v142
  %4075 = vmatpush1.msra.mxu0 %v141
  %4076 = vmatprep.subr.mxu0 %v146
  %4077 = vmatpush1.msra.mxu0 %v145
  %4078 = vmatprep.subr.mxu0 %v150
  %4079 = vmatpush1.msra.mxu0 %v149
  %4080 = vmatprep.subr.mxu0 %v154
  %4081 = vmatpush1.msra.mxu0 %v153
  %4082 = vmatprep.subr.mxu0 %v158
  %4083 = vmatpush1.msra.mxu0 %v157
  %4084 = vmatprep.subr.mxu0 %v162
  %4085 = vmatpush1.msra.mxu0 %v161
  %4086 = vmatprep.subr.mxu0 %v166
  %4087 = vmatpush1.msra.mxu0 %v165
  %4088 = vmatprep.subr.mxu0 0.0
  %4089 = vmatpush1.msra.mxu0 0.0
  %4090 = vmatprep.subr.mxu0 0.0
  %4091 = vmatpush1.msra.mxu0 0.0
  %4092 = vmatprep.subr.mxu0 0.0
  %4093 = vmatpush1.msra.mxu0 0.0
  %4094 = vmatprep.subr.mxu0 0.0
  %4095 = vmatpush1.msra.mxu0 0.0
  %4096 = vmatprep.subr.mxu0 0.0
  %4097 = vmatpush1.msra.mxu0 0.0
  %4098 = vmatprep.subr.mxu0 0.0
  %4099 = vmatpush1.msra.mxu0 0.0
  %4100 = vmatprep.subr.mxu0 0.0
  %4101 = vmatpush1.msra.mxu0 0.0
  %4102 = vmatprep.subr.mxu0 0.0
  %4103 = vmatpush1.msra.mxu0 0.0
  %4104 = vmatprep.subr.mxu0 0.0
  %4105 = vmatpush1.msra.mxu0 0.0
  %4106 = vmatprep.subr.mxu0 0.0
  %4107 = vmatpush1.msra.mxu0 0.0
  %4108 = vmatprep.subr.mxu0 0.0
  %4109 = vmatpush1.msra.mxu0 0.0
  %4110 = vmatprep.subr.mxu0 0.0
  %4111 = vmatpush1.msra.mxu0 0.0
  %4112 = vmatprep.subr.mxu0 0.0
  %4113 = vmatpush1.msra.mxu0 0.0
  %4114 = vmatprep.subr.mxu0 0.0
  %4115 = vmatpush1.msra.mxu0 0.0
  %4116 = vmatprep.subr.mxu0 0.0
  %4117 = vmatpush1.msra.mxu0 0.0
  %4118 = vmatprep.subr.mxu0 0.0
  %4119 = vmatpush1.msra.mxu0 0.0
  %4120 = vmatprep.mubr.f32.mxu0 0.0
  %4121 = vmatmul.mubr.f32.gmra.mrb[0].mxu0 %v3910
  %v4122 = vpop.f32.mrb[0].mxu0
  %v4123 = vadd.f32 %v3981, %v4122
  %v4124 = vpop.f32.mrb[0].mxu0
  %v4125 = vadd.f32 %v3983, %v4124
  %4126 = vdwg.mxu0
  %4127 = vmatprep.subr.mxu0 %v108
  %4128 = vmatpush1.msra.mxu0 %v107
  %4129 = vmatprep.subr.mxu0 %v112
  %4130 = vmatpush1.msra.mxu0 %v111
  %4131 = vmatprep.subr.mxu0 %v116
  %4132 = vmatpush1.msra.mxu0 %v115
  %4133 = vmatprep.subr.mxu0 %v120
  %4134 = vmatpush1.msra.mxu0 %v119
  %4135 = vmatprep.subr.mxu0 %v124
  %4136 = vmatpush1.msra.mxu0 %v123
  %4137 = vmatprep.subr.mxu0 %v128
  %4138 = vmatpush1.msra.mxu0 %v127
  %4139 = vmatprep.subr.mxu0 %v132
  %4140 = vmatpush1.msra.mxu0 %v131
  %4141 = vmatprep.subr.mxu0 %v136
  %4142 = vmatpush1.msra.mxu0 %v135
  %4143 = vmatprep.subr.mxu0 %v140
  %4144 = vmatpush1.msra.mxu0 %v139
  %4145 = vmatprep.subr.mxu0 %v144
  %4146 = vmatpush1.msra.mxu0 %v143
  %4147 = vmatprep.subr.mxu0 %v148
  %4148 = vmatpush1.msra.mxu0 %v147
  %4149 = vmatprep.subr.mxu0 %v152
  %4150 = vmatpush1.msra.mxu0 %v151
  %4151 = vmatprep.subr.mxu0 %v156
  %4152 = vmatpush1.msra.mxu0 %v155
  %4153 = vmatprep.subr.mxu0 %v160
  %4154 = vmatpush1.msra.mxu0 %v159
  %4155 = vmatprep.subr.mxu0 %v164
  %4156 = vmatpush1.msra.mxu0 %v163
  %4157 = vmatprep.subr.mxu0 %v168
  %4158 = vmatpush1.msra.mxu0 %v167
  %4159 = vmatprep.subr.mxu0 0.0
  %4160 = vmatpush1.msra.mxu0 0.0
  %4161 = vmatprep.subr.mxu0 0.0
  %4162 = vmatpush1.msra.mxu0 0.0
  %4163 = vmatprep.subr.mxu0 0.0
  %4164 = vmatpush1.msra.mxu0 0.0
  %4165 = vmatprep.subr.mxu0 0.0
  %4166 = vmatpush1.msra.mxu0 0.0
  %4167 = vmatprep.subr.mxu0 0.0
  %4168 = vmatpush1.msra.mxu0 0.0
  %4169 = vmatprep.subr.mxu0 0.0
  %4170 = vmatpush1.msra.mxu0 0.0
  %4171 = vmatprep.subr.mxu0 0.0
  %4172 = vmatpush1.msra.mxu0 0.0
  %4173 = vmatprep.subr.mxu0 0.0
  %4174 = vmatpush1.msra.mxu0 0.0
  %4175 = vmatprep.subr.mxu0 0.0
  %4176 = vmatpush1.msra.mxu0 0.0
  %4177 = vmatprep.subr.mxu0 0.0
  %4178 = vmatpush1.msra.mxu0 0.0
  %4179 = vmatprep.subr.mxu0 0.0
  %4180 = vmatpush1.msra.mxu0 0.0
  %4181 = vmatprep.subr.mxu0 0.0
  %4182 = vmatpush1.msra.mxu0 0.0
  %4183 = vmatprep.subr.mxu0 0.0
  %4184 = vmatpush1.msra.mxu0 0.0
  %4185 = vmatprep.subr.mxu0 0.0
  %4186 = vmatpush1.msra.mxu0 0.0
  %4187 = vmatprep.subr.mxu0 0.0
  %4188 = vmatpush1.msra.mxu0 0.0
  %4189 = vmatprep.subr.mxu0 0.0
  %4190 = vmatpush1.msra.mxu0 0.0
  %4191 = vmatprep.mubr.f32.mxu0 0.0
  %4192 = vmatmul.mubr.f32.gmra.mrb[0].mxu0 %v3910
  %v4193 = vpop.f32.mrb[0].mxu0
  %v4194 = vadd.f32 %v4052, %v4193
  %v4195 = vpop.f32.mrb[0].mxu0
  %v4196 = vadd.f32 %v4054, %v4195
  %4197 = vdwg.mxu0
  %v4198 = vadd.f32 %v4123, %v702
  %v4199 = vadd.f32 %v4125, %v706
  %v4200 = vadd.f32 %v4194, %v710
  %v4201 = vadd.f32 %v4196, %v714
  %v4202 = vld [vmem:[%s723] sm:$0xff]
  %v4203 = vxor.u32 %v4198, 2147483648
  %v4204 = vxor.u32 %v4199, 2147483648
  %v4205 = vxor.u32 %v4200, 2147483648
  %v4206 = vmul.f32 %v4203, 1.442695
  %v4207 = vpow.pop %v4206
  %v4208 = vmul.f32 %v4204, 1.442695
  %v4209 = vpow.pop %v4208
  %v4210 = vmul.f32 %v4205, 1.442695
  %v4211 = vpow.pop %v4210
  %v4212 = vadd.f32 %v4207, 1.0
  %v4213 = vadd.f32 %v4209, 1.0
  %v4214 = vadd.f32 %v4211, 1.0
  %v4215 = vrcp.pop %v4212
  %v4216 = vmul.f32 1.0, %v4215
  %v4217 = vrcp.pop %v4213
  %v4218 = vmul.f32 1.0, %v4217
  %v4219 = vrcp.pop %v4214
  %v4220 = vmul.f32 1.0, %v4219
  %v4221 = vtanh.pop %v4201
  %v4222 = vmul.f32 %v4218, %v4202
  %v4223 = vmul.f32 %v4216, %v4221
  %v4224 = vadd.f32 %v4222, %v4223
  %v4225 = vtanh.pop %v4224
  %v4226 = vmul.f32 %v4220, %v4225
  %4227 = vst [vmem:[%s412] sm:$0xff] %v4226
  %4228 = vst [vmem:[%s723] sm:$0xff] %v4224
  %s4229 = scalar_lea.vmem %s7, 56
  %4230 = vst [vmem:[%s4229] sm:$0xff] %v4226
  // Predicated region
  $region34: #{lstm_language_model_forward.4} parent=0 // pred_check
    _
  $region35: #{lstm_language_model_forward.4} parent=0 // pred_check_branch
    %4232 = sbr.rel (0) target = $region37
  $region36: #{lstm_language_model_forward.4} parent=0 // pred_region
    _
  $region37: #{lstm_language_model_forward.4} parent=0 // pred_fallthru
    _
  // Predicated region
  $region38: #{lstm_language_model_forward.4} parent=0 // pred_check
    _
  $region39: #{lstm_language_model_forward.4} parent=0 // pred_check_branch
    %4234 = sbr.rel (0) target = $region41
  $region40: #{lstm_language_model_forward.4} parent=0 // pred_region
    _
  $region41: #{lstm_language_model_forward.4} parent=0 // pred_fallthru
    _
  // Predicated region
  $region42: #{lstm_language_model_forward.4} parent=0 // pred_check
    _
  $region43: #{lstm_language_model_forward.4} parent=0 // pred_check_branch
    %4236 = sbr.rel (0) target = $region45
  $region44: #{lstm_language_model_forward.4} parent=0 // pred_region
    _
  $region45: #{lstm_language_model_forward.4} parent=0 // pred_fallthru
    _
  // Predicated region
  $region46: #{lstm_language_model_forward.4} parent=0 // pred_check
    _
  $region47: #{lstm_language_model_forward.4} parent=0 // pred_check_branch
    %4238 = sbr.rel (0) target = $region49
  $region48: #{lstm_language_model_forward.4} parent=0 // pred_region
    _
  $region49: #{lstm_language_model_forward.4} parent=0 // pred_fallthru
    _
  // Predicated region
  $region50: #{lstm_language_model_forward.4} parent=0 // pred_check
    _
  $region51: #{lstm_language_model_forward.4} parent=0 // pred_check_branch
    %4240 = sbr.rel (0) target = $region53
  $region52: #{lstm_language_model_forward.4} parent=0 // pred_region
    _
  $region53: #{lstm_language_model_forward.4} parent=0 // pred_fallthru
    _
  // Predicated region
  $region54: #{lstm_language_model_forward.4} parent=0 // pred_check
    _
  $region55: #{lstm_language_model_forward.4} parent=0 // pred_check_branch
    %4242 = sbr.rel (0) target = $region57
  $region56: #{lstm_language_model_forward.4} parent=0 // pred_region
    _
  $region57: #{lstm_language_model_forward.4} parent=0 // pred_fallthru
    _

</llo_original>
